<compile_context>
chip_gen: v7x
topology: tpu7x:2x2x1
jax: 0.10.0
libtpu: 0.0.40
codegen_flags: <defaults>
</compile_context>

<pallas_src>
import jax
import jax.numpy as jnp
import numpy as np
from jax.experimental import pallas as pl
from jax.experimental.pallas import tpu as pltpu

LN_EPS = 1e-5
_VMEM = pl.BlockSpec(memory_space=pltpu.MemorySpace.VMEM)


def _ln(h, g, b):
    mu = jnp.mean(h, axis=-1, keepdims=True)
    var = jnp.mean((h - mu) ** 2, axis=-1, keepdims=True)
    return (h - mu) * jax.lax.rsqrt(var + LN_EPS) * g + b


# --------------------------------------------------------------------------
# Fused Pallas kernel: conv -> norm1 -> feed -> LSTM -> norm2 -> pred -> logsm
# --------------------------------------------------------------------------
def _build_model_kernel(B, F, H, K, To):
    N = To * B

    def kernel(xe_ref, xo_ref, wc_ref, bc_ref,
               g0_ref, b0_ref, w1_ref, bb1_ref, g1_ref, b1_ref,
               w2_ref, bb2_ref, g2_ref, b2_ref,
               wih_ref, bl_ref, whh_ref, g3_ref, b3_ref, wp_ref, bp_ref,
               out_ref, gates_sc, hs_sc):
        mxu_dt = wc_ref.dtype   # bf16 on v6e/v7x, f32 otherwise / in self-check

        # ---- Conv1d(stride=2): K accumulating matmuls straight from the
        #      even/odd phase refs (no im2col concat / lane shuffles).
        #      Padded time index 2*to + k lies in phase (k%2) at row offset
        #      (to + k//2)*B, i.e. a contiguous (N, F) row slice of a phase.
        acc = None
        for k in range(K):
            ke = k // 2
            src = xe_ref if (k % 2 == 0) else xo_ref
            xk = src[ke * B: ke * B + N, :].astype(mxu_dt)           # (N, F)
            part = jnp.dot(xk, wc_ref[k],
                           preferred_element_type=jnp.float32)       # (N, F)
            acc = part if acc is None else acc + part
        h = acc + bc_ref[...]

        # ---- norm1 + feed (rows = time-major flattened (to, b)) ----
        h = jnp.maximum(_ln(h, g0_ref[...], b0_ref[...]), 0.0)
        h = jnp.dot(h.astype(mxu_dt), w1_ref[...],
                    preferred_element_type=jnp.float32) + bb1_ref[...]
        h = jnp.maximum(_ln(h, g1_ref[...], b1_ref[...]), 0.0)
        h = jnp.dot(h.astype(mxu_dt), w2_ref[...],
                    preferred_element_type=jnp.float32) + bb2_ref[...]
        h = jnp.maximum(_ln(h, g2_ref[...], b2_ref[...]), 0.0)

        # ---- LSTM input projection hoisted out of the recurrence ----
        gates_sc[...] = (jnp.dot(h.astype(mxu_dt), wih_ref[...],
                                 preferred_element_type=jnp.float32)
                         + bl_ref[...])                               # (N, 4H)

        # ---- recurrence: only h @ W_hh + gate nonlinearities are serial ----
        # Statically unrolled (To small & static): no loop overhead, static
        # scratch offsets, full scheduler visibility.
        whh = whh_ref[...]                                            # (H, 4H) f32
        hp = jnp.zeros((B, H), jnp.float32)
        cp = jnp.zeros((B, H), jnp.float32)
        for t in range(To):
            gates = gates_sc[t * B:(t + 1) * B, :] + jnp.dot(
                hp, whh, preferred_element_type=jnp.float32)          # (B, 4H)
            # One sigmoid + one tanh EUP push over the full 128-lane gates
            # vreg, then slice i/f/o from the sigmoid and g from the tanh
            # (PyTorch gate order [i | f | g | o]).
            sg = jax.nn.sigmoid(gates)
            th = jnp.tanh(gates)
            i_g = sg[:, 0 * H:1 * H]
            f_g = sg[:, 1 * H:2 * H]
            g_g = th[:, 2 * H:3 * H]
            o_g = sg[:, 3 * H:4 * H]
            cp = f_g * cp + i_g * g_g
            hp = o_g * jnp.tanh(cp)
            hs_sc[t * B:(t + 1) * B, :] = hp

        # ---- norm2 + pred + log_softmax (one matmul over all rows) ----
        h2 = jnp.maximum(_ln(hs_sc[...], g3_ref[...], b3_ref[...]), 0.0)
        logits = jnp.dot(h2.astype(mxu_dt), wp_ref[...],
                         preferred_element_type=jnp.float32) + bp_ref[...]
        m = jnp.max(logits, axis=-1, keepdims=True)
        s = logits - m
        lse = jnp.log(jnp.sum(jnp.exp(s), axis=-1, keepdims=True))
        out_ref[...] = (s - lse).astype(out_ref.dtype)

    return kernel


# --------------------------------------------------------------------------
# One-time parameter preparation (all transposes / gate stacking / padding)
# --------------------------------------------------------------------------
def prepare_params(p, vocab_size, mxu_dtype=jnp.float32):
    # mxu_dtype=jnp.bfloat16 recommended on v6e/v7x at production sizes
    # (parallel matmuls only; the serial W_hh recurrence stays f32).
    F = p['b_conv'].shape[0]
    K = p['w_conv'].shape[-1]
    H = p['w_hh'].shape[-1]
    Vp = ((vocab_size + 127) // 128) * 128          # lane-dense head output
    f32 = jnp.float32
    row = lambda v: v.reshape(1, -1).astype(f32)
    mx = lambda w: w.astype(mxu_dtype)
    wp_pad = jnp.zeros((H, Vp), f32).at[:, :vocab_size].set(p['wp'].T.astype(f32))
    return dict(
        # conv weight (Cout, Cin, K) -> (K, Cin, Cout); tap k used as x_k @ w[k]
        w_conv_k=mx(jnp.transpose(p['w_conv'], (2, 1, 0))),
        b_conv=row(p['b_conv']),
        g0=row(p['g0']), b0=row(p['b0']),
        w1=mx(p['w1'].T), bb1=row(p['bb1']),
        g1=row(p['g1']), b1=row(p['b1']),
        w2=mx(p['w2'].T), bb2=row(p['bb2']),
        g2=row(p['g2']), b2=row(p['b2']),
        # gate-stacked LSTM weights: columns ordered [i | f | g | o]
        w_ih_s=mx(jnp.transpose(p['w_ih'], (2, 0, 1)).reshape(F, 4 * H)),
        w_hh_s=jnp.transpose(p['w_hh'], (2, 0, 1)).reshape(H, 4 * H).astype(f32),
        b_lstm=(p['b_ih'] + p['b_hh']).reshape(1, 4 * H).astype(f32),
        g3=row(p['g3']), b3=row(p['b3']),
        # vocab padded to 128 lanes: zero weight cols, -1e30 bias (sliced off)
        wp_pad=mx(wp_pad),
        bp_pad=jnp.full((1, Vp), -1e30, f32).at[0, :vocab_size].set(p['bp']),
    )


# --------------------------------------------------------------------------
# Wrapper (glue: pad + even/odd phase split + free reshapes; no transposes)
# --------------------------------------------------------------------------
def model_forward(x, prep, vocab_size):
    T, B, F = x.shape
    K = prep['w_conv_k'].shape[0]
    H = prep['g3'].shape[-1]
    Vp = prep['wp_pad'].shape[-1]
    stride, pad = 2, K // 2
    To = (T + 2 * pad - K) // stride + 1
    N = To * B

    # zero-pad time (time-major, no transpose) and split stride phases so a
    # stride-2 conv window is a contiguous row slice inside the kernel.
    xp = jnp.pad(x, ((pad, pad), (0, 0), (0, 0)))
    xe = xp[0::2].reshape(-1, F)
    xo = xp[1::2].reshape(-1, F)
    n_even = (xp.shape[0] + 1) // 2
    n_odd = xp.shape[0] // 2
    assert (K - 1) // 2 + To <= n_even and (K - 1) // 2 + To <= n_odd

    out2d = pl.pallas_call(
        _build_model_kernel(B, F, H, K, To),
        out_shape=jax.ShapeDtypeStruct((N, Vp), jnp.float32),
        in_specs=[_VMEM] * 21,
        out_specs=_VMEM,
        scratch_shapes=[pltpu.VMEM((N, 4 * H), jnp.float32),   # gate pre-acts
                        pltpu.VMEM((N, H), jnp.float32)],      # LSTM hiddens
    )(xe, xo, prep['w_conv_k'], prep['b_conv'],
      prep['g0'], prep['b0'], prep['w1'], prep['bb1'], prep['g1'], prep['b1'],
      prep['w2'], prep['bb2'], prep['g2'], prep['b2'],
      prep['w_ih_s'], prep['b_lstm'], prep['w_hh_s'],
      prep['g3'], prep['b3'], prep['wp_pad'], prep['bp_pad'])

    return out2d.reshape(To, B, Vp)[:, :, :vocab_size]


# --------------------------------------------------------------------------
# Deterministic parameter init (mirrors the PyTorch module's shapes)
# --------------------------------------------------------------------------
def init_params(key, n_feats, hidden, vocab, K=10):
    ks = jax.random.split(key, 12)
    F, H = n_feats, hidden

    def nrm(k, shape, scale):
        return scale * jax.random.normal(k, shape, jnp.float32)

    return dict(
        w_conv=nrm(ks[0], (F, F, K), 0.08), b_conv=nrm(ks[1], (F,), 0.05),
        g0=jnp.ones((F,), jnp.float32), b0=jnp.zeros((F,), jnp.float32),
        w1=nrm(ks[2], (F, F), 0.15), bb1=nrm(ks[3], (F,), 0.05),
        g1=jnp.ones((F,), jnp.float32), b1=jnp.zeros((F,), jnp.float32),
        w2=nrm(ks[4], (F, F), 0.15), bb2=nrm(ks[5], (F,), 0.05),
        g2=jnp.ones((F,), jnp.float32), b2=jnp.zeros((F,), jnp.float32),
        w_ih=nrm(ks[6], (4, H, F), 0.15), w_hh=nrm(ks[7], (4, H, H), 0.15),
        b_ih=nrm(ks[8], (4, H), 0.05), b_hh=nrm(ks[9], (4, H), 0.05),
        g3=jnp.ones((H,), jnp.float32), b3=jnp.zeros((H,), jnp.float32),
        wp=nrm(ks[10], (vocab, H), 0.2), bp=nrm(ks[11], (vocab,), 0.05),
    )


# --------------------------------------------------------------------------
# Pure-JAX reference (eval-mode PyTorch semantics) for correctness check
# --------------------------------------------------------------------------
def reference_forward(x, p):
    xb = jnp.transpose(x, (1, 2, 0))                             # (B, F, T)
    y = jax.lax.conv_general_dilated(
        xb, p['w_conv'], window_strides=(2,), padding=[(5, 5)],
        dimension_numbers=('NCH', 'OIH', 'NCH'),
        precision=jax.lax.Precision.HIGHEST)
    y = y + p['b_conv'][None, :, None]
    y = jnp.transpose(y, (2, 0, 1))                              # (To, B, F)

    def ln(h, g, b):
        mu = h.mean(-1, keepdims=True)
        var = ((h - mu) ** 2).mean(-1, keepdims=True)
        return (h - mu) * jax.lax.rsqrt(var + LN_EPS) * g + b

    h = jax.nn.relu(ln(y, p['g0'], p['b0']))
    h = jax.nn.relu(ln(h @ p['w1'].T + p['bb1'], p['g1'], p['b1']))
    h = jax.nn.relu(ln(h @ p['w2'].T + p['bb2'], p['g2'], p['b2']))

    Bn, H = h.shape[1], p['w_hh'].shape[-1]

    def step(carry, xt):
        hp, cp = carry

        def gate(i):
            return (xt @ p['w_ih'][i].T + hp @ p['w_hh'][i].T
                    + p['b_ih'][i] + p['b_hh'][i])

        i = jax.nn.sigmoid(gate(0))
        f = jax.nn.sigmoid(gate(1))
        g = jnp.tanh(gate(2))
        o = jax.nn.sigmoid(gate(3))
        c = f * cp + i * g
        hn = o * jnp.tanh(c)
        return (hn, c), hn

    (_, _), hs = jax.lax.scan(
        step,
        (jnp.zeros((Bn, H), jnp.float32), jnp.zeros((Bn, H), jnp.float32)),
        h)

    h2 = jax.nn.relu(ln(hs, p['g3'], p['b3']))
    logits = h2 @ p['wp'].T + p['bp']
    return jax.nn.log_softmax(logits, axis=-1)


if __name__ == "__main__":
    T, B, F, H, V = 16, 2, 32, 32, 30   # seq, batch, n_feats, hidden, vocab
    key = jax.random.PRNGKey(0)
    kx, kp = jax.random.split(key)
    x = jax.random.normal(kx, (T, B, F), jnp.float32)
    params = init_params(kp, F, H, V)
    # f32 MXU operands for the tight self-check; use mxu_dtype=jnp.bfloat16 on
    # v6e/v7x at production sizes (loosen tolerance accordingly).
    prep = jax.tree_util.tree_map(
        jnp.asarray, prepare_params(params, V, mxu_dtype=jnp.float32))

    fwd = jax.jit(model_forward, static_argnums=(2,))
    out = jax.block_until_ready(fwd(x, prep, V))

    with jax.default_matmul_precision("highest"):
        ref = jax.block_until_ready(reference_forward(x, params))

    To = (T + 2 * 5 - 10) // 2 + 1
    assert out.shape == (To, B, V), out.shape
    np.testing.assert_allclose(np.asarray(out), np.asarray(ref),
                               atol=3e-3, rtol=3e-3)
    print("KERNEL_OK")
</pallas_src>

<mosaic_0001>
module attributes {stable_mosaic.version = 11 : i64} {
  func.func @kernel(%arg0: memref<26x32xf32, #tpu.memory_space<vmem>>, %arg1: memref<26x32xf32, #tpu.memory_space<vmem>>, %arg2: memref<10x32x32xf32, #tpu.memory_space<vmem>>, %arg3: memref<1x32xf32, #tpu.memory_space<vmem>>, %arg4: memref<1x32xf32, #tpu.memory_space<vmem>>, %arg5: memref<1x32xf32, #tpu.memory_space<vmem>>, %arg6: memref<32x32xf32, #tpu.memory_space<vmem>>, %arg7: memref<1x32xf32, #tpu.memory_space<vmem>>, %arg8: memref<1x32xf32, #tpu.memory_space<vmem>>, %arg9: memref<1x32xf32, #tpu.memory_space<vmem>>, %arg10: memref<32x32xf32, #tpu.memory_space<vmem>>, %arg11: memref<1x32xf32, #tpu.memory_space<vmem>>, %arg12: memref<1x32xf32, #tpu.memory_space<vmem>>, %arg13: memref<1x32xf32, #tpu.memory_space<vmem>>, %arg14: memref<32x128xf32, #tpu.memory_space<vmem>>, %arg15: memref<1x128xf32, #tpu.memory_space<vmem>>, %arg16: memref<32x128xf32, #tpu.memory_space<vmem>>, %arg17: memref<1x32xf32, #tpu.memory_space<vmem>>, %arg18: memref<1x32xf32, #tpu.memory_space<vmem>>, %arg19: memref<32x128xf32, #tpu.memory_space<vmem>>, %arg20: memref<1x128xf32, #tpu.memory_space<vmem>>, %arg21: memref<18x128xf32, #tpu.memory_space<vmem>>, %arg22: memref<18x128xf32, #tpu.memory_space<vmem>>, %arg23: memref<18x32xf32, #tpu.memory_space<vmem>>) attributes {dimension_semantics = [], scalar_prefetch = 0 : i64, scratch_operands = 2 : i64, tpu.core_type = #tpu.core_type<tc>} {
    %c0 = arith.constant 0 : index
    %c0_0 = arith.constant 0 : index
    %0 = vector.load %arg0[%c0, %c0_0] : memref<26x32xf32, #tpu.memory_space<vmem>>, vector<18x32xf32>
    %c0_1 = arith.constant 0 : index
    %c0_2 = arith.constant 0 : index
    %c0_3 = arith.constant 0 : index
    %1 = vector.load %arg2[%c0_1, %c0_2, %c0_3] : memref<10x32x32xf32, #tpu.memory_space<vmem>>, vector<1x32x32xf32>
    %2 = vector.shape_cast %1 : vector<1x32x32xf32> to vector<32x32xf32>
    %cst = arith.constant dense<0.000000e+00> : vector<18x32xf32>
    %3 = tpu.matmul %0, %2, %cst {dimension_numbers = #tpu.dot_dimension_numbers<[1], [0], [0], [1], [0, 0, 1, 1], [], []>} : vector<18x32xf32>, vector<32x32xf32>, vector<18x32xf32> -> vector<18x32xf32>
    %c0_4 = arith.constant 0 : index
    %c0_5 = arith.constant 0 : index
    %4 = vector.load %arg1[%c0_4, %c0_5] : memref<26x32xf32, #tpu.memory_space<vmem>>, vector<18x32xf32>
    %c1 = arith.constant 1 : index
    %c0_6 = arith.constant 0 : index
    %c0_7 = arith.constant 0 : index
    %5 = vector.load %arg2[%c1, %c0_6, %c0_7] : memref<10x32x32xf32, #tpu.memory_space<vmem>>, vector<1x32x32xf32>
    %6 = vector.shape_cast %5 : vector<1x32x32xf32> to vector<32x32xf32>
    %cst_8 = arith.constant dense<0.000000e+00> : vector<18x32xf32>
    %7 = tpu.matmul %4, %6, %cst_8 {dimension_numbers = #tpu.dot_dimension_numbers<[1], [0], [0], [1], [0, 0, 1, 1], [], []>} : vector<18x32xf32>, vector<32x32xf32>, vector<18x32xf32> -> vector<18x32xf32>
    %8 = arith.addf %3, %7 : vector<18x32xf32>
    %c2 = arith.constant 2 : index
    %c0_9 = arith.constant 0 : index
    %9 = vector.load %arg0[%c2, %c0_9] : memref<26x32xf32, #tpu.memory_space<vmem>>, vector<18x32xf32>
    %c2_10 = arith.constant 2 : index
    %c0_11 = arith.constant 0 : index
    %c0_12 = arith.constant 0 : index
    %10 = vector.load %arg2[%c2_10, %c0_11, %c0_12] : memref<10x32x32xf32, #tpu.memory_space<vmem>>, vector<1x32x32xf32>
    %11 = vector.shape_cast %10 : vector<1x32x32xf32> to vector<32x32xf32>
    %cst_13 = arith.constant dense<0.000000e+00> : vector<18x32xf32>
    %12 = tpu.matmul %9, %11, %cst_13 {dimension_numbers = #tpu.dot_dimension_numbers<[1], [0], [0], [1], [0, 0, 1, 1], [], []>} : vector<18x32xf32>, vector<32x32xf32>, vector<18x32xf32> -> vector<18x32xf32>
    %13 = arith.addf %8, %12 : vector<18x32xf32>
    %c2_14 = arith.constant 2 : index
    %c0_15 = arith.constant 0 : index
    %14 = vector.load %arg1[%c2_14, %c0_15] : memref<26x32xf32, #tpu.memory_space<vmem>>, vector<18x32xf32>
    %c3 = arith.constant 3 : index
    %c0_16 = arith.constant 0 : index
    %c0_17 = arith.constant 0 : index
    %15 = vector.load %arg2[%c3, %c0_16, %c0_17] : memref<10x32x32xf32, #tpu.memory_space<vmem>>, vector<1x32x32xf32>
    %16 = vector.shape_cast %15 : vector<1x32x32xf32> to vector<32x32xf32>
    %cst_18 = arith.constant dense<0.000000e+00> : vector<18x32xf32>
    %17 = tpu.matmul %14, %16, %cst_18 {dimension_numbers = #tpu.dot_dimension_numbers<[1], [0], [0], [1], [0, 0, 1, 1], [], []>} : vector<18x32xf32>, vector<32x32xf32>, vector<18x32xf32> -> vector<18x32xf32>
    %18 = arith.addf %13, %17 : vector<18x32xf32>
    %c4 = arith.constant 4 : index
    %c0_19 = arith.constant 0 : index
    %19 = vector.load %arg0[%c4, %c0_19] : memref<26x32xf32, #tpu.memory_space<vmem>>, vector<18x32xf32>
    %c4_20 = arith.constant 4 : index
    %c0_21 = arith.constant 0 : index
    %c0_22 = arith.constant 0 : index
    %20 = vector.load %arg2[%c4_20, %c0_21, %c0_22] : memref<10x32x32xf32, #tpu.memory_space<vmem>>, vector<1x32x32xf32>
    %21 = vector.shape_cast %20 : vector<1x32x32xf32> to vector<32x32xf32>
    %cst_23 = arith.constant dense<0.000000e+00> : vector<18x32xf32>
    %22 = tpu.matmul %19, %21, %cst_23 {dimension_numbers = #tpu.dot_dimension_numbers<[1], [0], [0], [1], [0, 0, 1, 1], [], []>} : vector<18x32xf32>, vector<32x32xf32>, vector<18x32xf32> -> vector<18x32xf32>
    %23 = arith.addf %18, %22 : vector<18x32xf32>
    %c4_24 = arith.constant 4 : index
    %c0_25 = arith.constant 0 : index
    %24 = vector.load %arg1[%c4_24, %c0_25] : memref<26x32xf32, #tpu.memory_space<vmem>>, vector<18x32xf32>
    %c5 = arith.constant 5 : index
    %c0_26 = arith.constant 0 : index
    %c0_27 = arith.constant 0 : index
    %25 = vector.load %arg2[%c5, %c0_26, %c0_27] : memref<10x32x32xf32, #tpu.memory_space<vmem>>, vector<1x32x32xf32>
    %26 = vector.shape_cast %25 : vector<1x32x32xf32> to vector<32x32xf32>
    %cst_28 = arith.constant dense<0.000000e+00> : vector<18x32xf32>
    %27 = tpu.matmul %24, %26, %cst_28 {dimension_numbers = #tpu.dot_dimension_numbers<[1], [0], [0], [1], [0, 0, 1, 1], [], []>} : vector<18x32xf32>, vector<32x32xf32>, vector<18x32xf32> -> vector<18x32xf32>
    %28 = arith.addf %23, %27 : vector<18x32xf32>
    %c6 = arith.constant 6 : index
    %c0_29 = arith.constant 0 : index
    %29 = vector.load %arg0[%c6, %c0_29] : memref<26x32xf32, #tpu.memory_space<vmem>>, vector<18x32xf32>
    %c6_30 = arith.constant 6 : index
    %c0_31 = arith.constant 0 : index
    %c0_32 = arith.constant 0 : index
    %30 = vector.load %arg2[%c6_30, %c0_31, %c0_32] : memref<10x32x32xf32, #tpu.memory_space<vmem>>, vector<1x32x32xf32>
    %31 = vector.shape_cast %30 : vector<1x32x32xf32> to vector<32x32xf32>
    %cst_33 = arith.constant dense<0.000000e+00> : vector<18x32xf32>
    %32 = tpu.matmul %29, %31, %cst_33 {dimension_numbers = #tpu.dot_dimension_numbers<[1], [0], [0], [1], [0, 0, 1, 1], [], []>} : vector<18x32xf32>, vector<32x32xf32>, vector<18x32xf32> -> vector<18x32xf32>
    %33 = arith.addf %28, %32 : vector<18x32xf32>
    %c6_34 = arith.constant 6 : index
    %c0_35 = arith.constant 0 : index
    %34 = vector.load %arg1[%c6_34, %c0_35] : memref<26x32xf32, #tpu.memory_space<vmem>>, vector<18x32xf32>
    %c7 = arith.constant 7 : index
    %c0_36 = arith.constant 0 : index
    %c0_37 = arith.constant 0 : index
    %35 = vector.load %arg2[%c7, %c0_36, %c0_37] : memref<10x32x32xf32, #tpu.memory_space<vmem>>, vector<1x32x32xf32>
    %36 = vector.shape_cast %35 : vector<1x32x32xf32> to vector<32x32xf32>
    %cst_38 = arith.constant dense<0.000000e+00> : vector<18x32xf32>
    %37 = tpu.matmul %34, %36, %cst_38 {dimension_numbers = #tpu.dot_dimension_numbers<[1], [0], [0], [1], [0, 0, 1, 1], [], []>} : vector<18x32xf32>, vector<32x32xf32>, vector<18x32xf32> -> vector<18x32xf32>
    %38 = arith.addf %33, %37 : vector<18x32xf32>
    %c8 = arith.constant 8 : index
    %c0_39 = arith.constant 0 : index
    %39 = vector.load %arg0[%c8, %c0_39] : memref<26x32xf32, #tpu.memory_space<vmem>>, vector<18x32xf32>
    %c8_40 = arith.constant 8 : index
    %c0_41 = arith.constant 0 : index
    %c0_42 = arith.constant 0 : index
    %40 = vector.load %arg2[%c8_40, %c0_41, %c0_42] : memref<10x32x32xf32, #tpu.memory_space<vmem>>, vector<1x32x32xf32>
    %41 = vector.shape_cast %40 : vector<1x32x32xf32> to vector<32x32xf32>
    %cst_43 = arith.constant dense<0.000000e+00> : vector<18x32xf32>
    %42 = tpu.matmul %39, %41, %cst_43 {dimension_numbers = #tpu.dot_dimension_numbers<[1], [0], [0], [1], [0, 0, 1, 1], [], []>} : vector<18x32xf32>, vector<32x32xf32>, vector<18x32xf32> -> vector<18x32xf32>
    %43 = arith.addf %38, %42 : vector<18x32xf32>
    %c8_44 = arith.constant 8 : index
    %c0_45 = arith.constant 0 : index
    %44 = vector.load %arg1[%c8_44, %c0_45] : memref<26x32xf32, #tpu.memory_space<vmem>>, vector<18x32xf32>
    %c9 = arith.constant 9 : index
    %c0_46 = arith.constant 0 : index
    %c0_47 = arith.constant 0 : index
    %45 = vector.load %arg2[%c9, %c0_46, %c0_47] : memref<10x32x32xf32, #tpu.memory_space<vmem>>, vector<1x32x32xf32>
    %46 = vector.shape_cast %45 : vector<1x32x32xf32> to vector<32x32xf32>
    %cst_48 = arith.constant dense<0.000000e+00> : vector<18x32xf32>
    %47 = tpu.matmul %44, %46, %cst_48 {dimension_numbers = #tpu.dot_dimension_numbers<[1], [0], [0], [1], [0, 0, 1, 1], [], []>} : vector<18x32xf32>, vector<32x32xf32>, vector<18x32xf32> -> vector<18x32xf32>
    %48 = arith.addf %43, %47 : vector<18x32xf32>
    %c0_49 = arith.constant 0 : index
    %c0_50 = arith.constant 0 : index
    %49 = vector.load %arg3[%c0_49, %c0_50] : memref<1x32xf32, #tpu.memory_space<vmem>>, vector<1x32xf32>
    %50 = vector.broadcast %49 : vector<1x32xf32> to vector<18x32xf32>
    %51 = arith.addf %48, %50 : vector<18x32xf32>
    %c0_51 = arith.constant 0 : index
    %c0_52 = arith.constant 0 : index
    %52 = vector.load %arg4[%c0_51, %c0_52] : memref<1x32xf32, #tpu.memory_space<vmem>>, vector<1x32xf32>
    %c0_53 = arith.constant 0 : index
    %c0_54 = arith.constant 0 : index
    %53 = vector.load %arg5[%c0_53, %c0_54] : memref<1x32xf32, #tpu.memory_space<vmem>>, vector<1x32xf32>
    %cst_55 = arith.constant dense<0.000000e+00> : vector<18xf32>
    %54 = vector.multi_reduction <add>, %51, %cst_55 [1] : vector<18x32xf32> to vector<18xf32>
    %55 = vector.shape_cast %54 : vector<18xf32> to vector<18x1xf32>
    %cst_56 = arith.constant 3.200000e+01 : f32
    %56 = vector.broadcast %cst_56 : f32 to vector<18x1xf32>
    %57 = arith.divf %55, %56 : vector<18x1xf32>
    %58 = vector.broadcast %57 : vector<18x1xf32> to vector<18x32xf32>
    %59 = arith.subf %51, %58 : vector<18x32xf32>
    %60 = arith.mulf %59, %59 : vector<18x32xf32>
    %cst_57 = arith.constant dense<0.000000e+00> : vector<18xf32>
    %61 = vector.multi_reduction <add>, %60, %cst_57 [1] : vector<18x32xf32> to vector<18xf32>
    %62 = vector.shape_cast %61 : vector<18xf32> to vector<18x1xf32>
    %cst_58 = arith.constant 3.200000e+01 : f32
    %63 = vector.broadcast %cst_58 : f32 to vector<18x1xf32>
    %64 = arith.divf %62, %63 : vector<18x1xf32>
    %65 = vector.broadcast %57 : vector<18x1xf32> to vector<18x32xf32>
    %66 = arith.subf %51, %65 : vector<18x32xf32>
    %cst_59 = arith.constant 9.99999974E-6 : f32
    %67 = vector.broadcast %cst_59 : f32 to vector<18x1xf32>
    %68 = arith.addf %64, %67 : vector<18x1xf32>
    %69 = math.rsqrt %68 : vector<18x1xf32>
    %70 = vector.broadcast %69 : vector<18x1xf32> to vector<18x32xf32>
    %71 = arith.mulf %66, %70 : vector<18x32xf32>
    %72 = vector.broadcast %52 : vector<1x32xf32> to vector<18x32xf32>
    %73 = arith.mulf %71, %72 : vector<18x32xf32>
    %74 = vector.broadcast %53 : vector<1x32xf32> to vector<18x32xf32>
    %75 = arith.addf %73, %74 : vector<18x32xf32>
    %cst_60 = arith.constant 0.000000e+00 : f32
    %76 = vector.broadcast %cst_60 : f32 to vector<18x32xf32>
    %77 = arith.maximumf %75, %76 : vector<18x32xf32>
    %c0_61 = arith.constant 0 : index
    %c0_62 = arith.constant 0 : index
    %78 = vector.load %arg6[%c0_61, %c0_62] : memref<32x32xf32, #tpu.memory_space<vmem>>, vector<32x32xf32>
    %cst_63 = arith.constant dense<0.000000e+00> : vector<18x32xf32>
    %79 = tpu.matmul %77, %78, %cst_63 {dimension_numbers = #tpu.dot_dimension_numbers<[1], [0], [0], [1], [0, 0, 1, 1], [], []>} : vector<18x32xf32>, vector<32x32xf32>, vector<18x32xf32> -> vector<18x32xf32>
    %c0_64 = arith.constant 0 : index
    %c0_65 = arith.constant 0 : index
    %80 = vector.load %arg7[%c0_64, %c0_65] : memref<1x32xf32, #tpu.memory_space<vmem>>, vector<1x32xf32>
    %81 = vector.broadcast %80 : vector<1x32xf32> to vector<18x32xf32>
    %82 = arith.addf %79, %81 : vector<18x32xf32>
    %c0_66 = arith.constant 0 : index
    %c0_67 = arith.constant 0 : index
    %83 = vector.load %arg8[%c0_66, %c0_67] : memref<1x32xf32, #tpu.memory_space<vmem>>, vector<1x32xf32>
    %c0_68 = arith.constant 0 : index
    %c0_69 = arith.constant 0 : index
    %84 = vector.load %arg9[%c0_68, %c0_69] : memref<1x32xf32, #tpu.memory_space<vmem>>, vector<1x32xf32>
    %cst_70 = arith.constant dense<0.000000e+00> : vector<18xf32>
    %85 = vector.multi_reduction <add>, %82, %cst_70 [1] : vector<18x32xf32> to vector<18xf32>
    %86 = vector.shape_cast %85 : vector<18xf32> to vector<18x1xf32>
    %cst_71 = arith.constant 3.200000e+01 : f32
    %87 = vector.broadcast %cst_71 : f32 to vector<18x1xf32>
    %88 = arith.divf %86, %87 : vector<18x1xf32>
    %89 = vector.broadcast %88 : vector<18x1xf32> to vector<18x32xf32>
    %90 = arith.subf %82, %89 : vector<18x32xf32>
    %91 = arith.mulf %90, %90 : vector<18x32xf32>
    %cst_72 = arith.constant dense<0.000000e+00> : vector<18xf32>
    %92 = vector.multi_reduction <add>, %91, %cst_72 [1] : vector<18x32xf32> to vector<18xf32>
    %93 = vector.shape_cast %92 : vector<18xf32> to vector<18x1xf32>
    %cst_73 = arith.constant 3.200000e+01 : f32
    %94 = vector.broadcast %cst_73 : f32 to vector<18x1xf32>
    %95 = arith.divf %93, %94 : vector<18x1xf32>
    %96 = vector.broadcast %88 : vector<18x1xf32> to vector<18x32xf32>
    %97 = arith.subf %82, %96 : vector<18x32xf32>
    %cst_74 = arith.constant 9.99999974E-6 : f32
    %98 = vector.broadcast %cst_74 : f32 to vector<18x1xf32>
    %99 = arith.addf %95, %98 : vector<18x1xf32>
    %100 = math.rsqrt %99 : vector<18x1xf32>
    %101 = vector.broadcast %100 : vector<18x1xf32> to vector<18x32xf32>
    %102 = arith.mulf %97, %101 : vector<18x32xf32>
    %103 = vector.broadcast %83 : vector<1x32xf32> to vector<18x32xf32>
    %104 = arith.mulf %102, %103 : vector<18x32xf32>
    %105 = vector.broadcast %84 : vector<1x32xf32> to vector<18x32xf32>
    %106 = arith.addf %104, %105 : vector<18x32xf32>
    %cst_75 = arith.constant 0.000000e+00 : f32
    %107 = vector.broadcast %cst_75 : f32 to vector<18x32xf32>
    %108 = arith.maximumf %106, %107 : vector<18x32xf32>
    %c0_76 = arith.constant 0 : index
    %c0_77 = arith.constant 0 : index
    %109 = vector.load %arg10[%c0_76, %c0_77] : memref<32x32xf32, #tpu.memory_space<vmem>>, vector<32x32xf32>
    %cst_78 = arith.constant dense<0.000000e+00> : vector<18x32xf32>
    %110 = tpu.matmul %108, %109, %cst_78 {dimension_numbers = #tpu.dot_dimension_numbers<[1], [0], [0], [1], [0, 0, 1, 1], [], []>} : vector<18x32xf32>, vector<32x32xf32>, vector<18x32xf32> -> vector<18x32xf32>
    %c0_79 = arith.constant 0 : index
    %c0_80 = arith.constant 0 : index
    %111 = vector.load %arg11[%c0_79, %c0_80] : memref<1x32xf32, #tpu.memory_space<vmem>>, vector<1x32xf32>
    %112 = vector.broadcast %111 : vector<1x32xf32> to vector<18x32xf32>
    %113 = arith.addf %110, %112 : vector<18x32xf32>
    %c0_81 = arith.constant 0 : index
    %c0_82 = arith.constant 0 : index
    %114 = vector.load %arg12[%c0_81, %c0_82] : memref<1x32xf32, #tpu.memory_space<vmem>>, vector<1x32xf32>
    %c0_83 = arith.constant 0 : index
    %c0_84 = arith.constant 0 : index
    %115 = vector.load %arg13[%c0_83, %c0_84] : memref<1x32xf32, #tpu.memory_space<vmem>>, vector<1x32xf32>
    %cst_85 = arith.constant dense<0.000000e+00> : vector<18xf32>
    %116 = vector.multi_reduction <add>, %113, %cst_85 [1] : vector<18x32xf32> to vector<18xf32>
    %117 = vector.shape_cast %116 : vector<18xf32> to vector<18x1xf32>
    %cst_86 = arith.constant 3.200000e+01 : f32
    %118 = vector.broadcast %cst_86 : f32 to vector<18x1xf32>
    %119 = arith.divf %117, %118 : vector<18x1xf32>
    %120 = vector.broadcast %119 : vector<18x1xf32> to vector<18x32xf32>
    %121 = arith.subf %113, %120 : vector<18x32xf32>
    %122 = arith.mulf %121, %121 : vector<18x32xf32>
    %cst_87 = arith.constant dense<0.000000e+00> : vector<18xf32>
    %123 = vector.multi_reduction <add>, %122, %cst_87 [1] : vector<18x32xf32> to vector<18xf32>
    %124 = vector.shape_cast %123 : vector<18xf32> to vector<18x1xf32>
    %cst_88 = arith.constant 3.200000e+01 : f32
    %125 = vector.broadcast %cst_88 : f32 to vector<18x1xf32>
    %126 = arith.divf %124, %125 : vector<18x1xf32>
    %127 = vector.broadcast %119 : vector<18x1xf32> to vector<18x32xf32>
    %128 = arith.subf %113, %127 : vector<18x32xf32>
    %cst_89 = arith.constant 9.99999974E-6 : f32
    %129 = vector.broadcast %cst_89 : f32 to vector<18x1xf32>
    %130 = arith.addf %126, %129 : vector<18x1xf32>
    %131 = math.rsqrt %130 : vector<18x1xf32>
    %132 = vector.broadcast %131 : vector<18x1xf32> to vector<18x32xf32>
    %133 = arith.mulf %128, %132 : vector<18x32xf32>
    %134 = vector.broadcast %114 : vector<1x32xf32> to vector<18x32xf32>
    %135 = arith.mulf %133, %134 : vector<18x32xf32>
    %136 = vector.broadcast %115 : vector<1x32xf32> to vector<18x32xf32>
    %137 = arith.addf %135, %136 : vector<18x32xf32>
    %cst_90 = arith.constant 0.000000e+00 : f32
    %138 = vector.broadcast %cst_90 : f32 to vector<18x32xf32>
    %139 = arith.maximumf %137, %138 : vector<18x32xf32>
    %c0_91 = arith.constant 0 : index
    %c0_92 = arith.constant 0 : index
    %140 = vector.load %arg14[%c0_91, %c0_92] : memref<32x128xf32, #tpu.memory_space<vmem>>, vector<32x128xf32>
    %cst_93 = arith.constant dense<0.000000e+00> : vector<18x128xf32>
    %141 = tpu.matmul %139, %140, %cst_93 {dimension_numbers = #tpu.dot_dimension_numbers<[1], [0], [0], [1], [0, 0, 1, 1], [], []>} : vector<18x32xf32>, vector<32x128xf32>, vector<18x128xf32> -> vector<18x128xf32>
    %c0_94 = arith.constant 0 : index
    %c0_95 = arith.constant 0 : index
    %142 = vector.load %arg15[%c0_94, %c0_95] : memref<1x128xf32, #tpu.memory_space<vmem>>, vector<1x128xf32>
    %143 = vector.broadcast %142 : vector<1x128xf32> to vector<18x128xf32>
    %144 = arith.addf %141, %143 : vector<18x128xf32>
    %c0_96 = arith.constant 0 : index
    %c0_97 = arith.constant 0 : index
    %145 = vector.load %arg22[%c0_96, %c0_97] : memref<18x128xf32, #tpu.memory_space<vmem>>, vector<18x128xf32>
    tpu.vector_store %arg22[%c0_96, %c0_97], %144 {strides = array<i32>} : memref<18x128xf32, #tpu.memory_space<vmem>>, vector<18x128xf32>,
    %c0_98 = arith.constant 0 : index
    %c0_99 = arith.constant 0 : index
    %146 = vector.load %arg16[%c0_98, %c0_99] : memref<32x128xf32, #tpu.memory_space<vmem>>, vector<32x128xf32>
    %cst_100 = arith.constant 0.000000e+00 : f32
    %147 = vector.broadcast %cst_100 : f32 to vector<2x32xf32>
    %cst_101 = arith.constant 0.000000e+00 : f32
    %148 = vector.broadcast %cst_101 : f32 to vector<2x32xf32>
    %c0_102 = arith.constant 0 : index
    %c0_103 = arith.constant 0 : index
    %149 = vector.load %arg22[%c0_102, %c0_103] : memref<18x128xf32, #tpu.memory_space<vmem>>, vector<2x128xf32>
    %cst_104 = arith.constant dense<0.000000e+00> : vector<2x128xf32>
    %150 = tpu.matmul %147, %146, %cst_104 {dimension_numbers = #tpu.dot_dimension_numbers<[1], [0], [0], [1], [0, 0, 1, 1], [], []>} : vector<2x32xf32>, vector<32x128xf32>, vector<2x128xf32> -> vector<2x128xf32>
    %151 = arith.addf %149, %150 : vector<2x128xf32>
    %152 = arith.negf %151 : vector<2x128xf32>
    %153 = math.exp %152 : vector<2x128xf32>
    %cst_105 = arith.constant 1.000000e+00 : f32
    %154 = vector.broadcast %cst_105 : f32 to vector<2x128xf32>
    %155 = arith.addf %154, %153 : vector<2x128xf32>
    %156 = arith.divf %154, %155 : vector<2x128xf32>
    %157 = math.tanh %151 : vector<2x128xf32>
    %158 = vector.extract_strided_slice %156 {offsets = [0, 0], sizes = [2, 32], strides = [1, 1]} : vector<2x128xf32> to vector<2x32xf32>
    %159 = vector.extract_strided_slice %156 {offsets = [0, 32], sizes = [2, 32], strides = [1, 1]} : vector<2x128xf32> to vector<2x32xf32>
    %160 = vector.extract_strided_slice %157 {offsets = [0, 64], sizes = [2, 32], strides = [1, 1]} : vector<2x128xf32> to vector<2x32xf32>
    %161 = vector.extract_strided_slice %156 {offsets = [0, 96], sizes = [2, 32], strides = [1, 1]} : vector<2x128xf32> to vector<2x32xf32>
    %162 = arith.mulf %159, %148 : vector<2x32xf32>
    %163 = arith.mulf %158, %160 : vector<2x32xf32>
    %164 = arith.addf %162, %163 : vector<2x32xf32>
    %165 = math.tanh %164 : vector<2x32xf32>
    %166 = arith.mulf %161, %165 : vector<2x32xf32>
    %c0_106 = arith.constant 0 : index
    %c0_107 = arith.constant 0 : index
    %167 = vector.load %arg23[%c0_106, %c0_107] : memref<18x32xf32, #tpu.memory_space<vmem>>, vector<2x32xf32>
    tpu.vector_store %arg23[%c0_106, %c0_107], %166 {strides = array<i32>} : memref<18x32xf32, #tpu.memory_space<vmem>>, vector<2x32xf32>,
    %c2_108 = arith.constant 2 : index
    %c0_109 = arith.constant 0 : index
    %168 = vector.load %arg22[%c2_108, %c0_109] : memref<18x128xf32, #tpu.memory_space<vmem>>, vector<2x128xf32>
    %cst_110 = arith.constant dense<0.000000e+00> : vector<2x128xf32>
    %169 = tpu.matmul %166, %146, %cst_110 {dimension_numbers = #tpu.dot_dimension_numbers<[1], [0], [0], [1], [0, 0, 1, 1], [], []>} : vector<2x32xf32>, vector<32x128xf32>, vector<2x128xf32> -> vector<2x128xf32>
    %170 = arith.addf %168, %169 : vector<2x128xf32>
    %171 = arith.negf %170 : vector<2x128xf32>
    %172 = math.exp %171 : vector<2x128xf32>
    %cst_111 = arith.constant 1.000000e+00 : f32
    %173 = vector.broadcast %cst_111 : f32 to vector<2x128xf32>
    %174 = arith.addf %173, %172 : vector<2x128xf32>
    %175 = arith.divf %173, %174 : vector<2x128xf32>
    %176 = math.tanh %170 : vector<2x128xf32>
    %177 = vector.extract_strided_slice %175 {offsets = [0, 0], sizes = [2, 32], strides = [1, 1]} : vector<2x128xf32> to vector<2x32xf32>
    %178 = vector.extract_strided_slice %175 {offsets = [0, 32], sizes = [2, 32], strides = [1, 1]} : vector<2x128xf32> to vector<2x32xf32>
    %179 = vector.extract_strided_slice %176 {offsets = [0, 64], sizes = [2, 32], strides = [1, 1]} : vector<2x128xf32> to vector<2x32xf32>
    %180 = vector.extract_strided_slice %175 {offsets = [0, 96], sizes = [2, 32], strides = [1, 1]} : vector<2x128xf32> to vector<2x32xf32>
    %181 = arith.mulf %178, %164 : vector<2x32xf32>
    %182 = arith.mulf %177, %179 : vector<2x32xf32>
    %183 = arith.addf %181, %182 : vector<2x32xf32>
    %184 = math.tanh %183 : vector<2x32xf32>
    %185 = arith.mulf %180, %184 : vector<2x32xf32>
    %c2_112 = arith.constant 2 : index
    %c0_113 = arith.constant 0 : index
    %186 = vector.load %arg23[%c2_112, %c0_113] : memref<18x32xf32, #tpu.memory_space<vmem>>, vector<2x32xf32>
    tpu.vector_store %arg23[%c2_112, %c0_113], %185 {strides = array<i32>} : memref<18x32xf32, #tpu.memory_space<vmem>>, vector<2x32xf32>,
    %c4_114 = arith.constant 4 : index
    %c0_115 = arith.constant 0 : index
    %187 = vector.load %arg22[%c4_114, %c0_115] : memref<18x128xf32, #tpu.memory_space<vmem>>, vector<2x128xf32>
    %cst_116 = arith.constant dense<0.000000e+00> : vector<2x128xf32>
    %188 = tpu.matmul %185, %146, %cst_116 {dimension_numbers = #tpu.dot_dimension_numbers<[1], [0], [0], [1], [0, 0, 1, 1], [], []>} : vector<2x32xf32>, vector<32x128xf32>, vector<2x128xf32> -> vector<2x128xf32>
    %189 = arith.addf %187, %188 : vector<2x128xf32>
    %190 = arith.negf %189 : vector<2x128xf32>
    %191 = math.exp %190 : vector<2x128xf32>
    %cst_117 = arith.constant 1.000000e+00 : f32
    %192 = vector.broadcast %cst_117 : f32 to vector<2x128xf32>
    %193 = arith.addf %192, %191 : vector<2x128xf32>
    %194 = arith.divf %192, %193 : vector<2x128xf32>
    %195 = math.tanh %189 : vector<2x128xf32>
    %196 = vector.extract_strided_slice %194 {offsets = [0, 0], sizes = [2, 32], strides = [1, 1]} : vector<2x128xf32> to vector<2x32xf32>
    %197 = vector.extract_strided_slice %194 {offsets = [0, 32], sizes = [2, 32], strides = [1, 1]} : vector<2x128xf32> to vector<2x32xf32>
    %198 = vector.extract_strided_slice %195 {offsets = [0, 64], sizes = [2, 32], strides = [1, 1]} : vector<2x128xf32> to vector<2x32xf32>
    %199 = vector.extract_strided_slice %194 {offsets = [0, 96], sizes = [2, 32], strides = [1, 1]} : vector<2x128xf32> to vector<2x32xf32>
    %200 = arith.mulf %197, %183 : vector<2x32xf32>
    %201 = arith.mulf %196, %198 : vector<2x32xf32>
    %202 = arith.addf %200, %201 : vector<2x32xf32>
    %203 = math.tanh %202 : vector<2x32xf32>
    %204 = arith.mulf %199, %203 : vector<2x32xf32>
    %c4_118 = arith.constant 4 : index
    %c0_119 = arith.constant 0 : index
    %205 = vector.load %arg23[%c4_118, %c0_119] : memref<18x32xf32, #tpu.memory_space<vmem>>, vector<2x32xf32>
    tpu.vector_store %arg23[%c4_118, %c0_119], %204 {strides = array<i32>} : memref<18x32xf32, #tpu.memory_space<vmem>>, vector<2x32xf32>,
    %c6_120 = arith.constant 6 : index
    %c0_121 = arith.constant 0 : index
    %206 = vector.load %arg22[%c6_120, %c0_121] : memref<18x128xf32, #tpu.memory_space<vmem>>, vector<2x128xf32>
    %cst_122 = arith.constant dense<0.000000e+00> : vector<2x128xf32>
    %207 = tpu.matmul %204, %146, %cst_122 {dimension_numbers = #tpu.dot_dimension_numbers<[1], [0], [0], [1], [0, 0, 1, 1], [], []>} : vector<2x32xf32>, vector<32x128xf32>, vector<2x128xf32> -> vector<2x128xf32>
    %208 = arith.addf %206, %207 : vector<2x128xf32>
    %209 = arith.negf %208 : vector<2x128xf32>
    %210 = math.exp %209 : vector<2x128xf32>
    %cst_123 = arith.constant 1.000000e+00 : f32
    %211 = vector.broadcast %cst_123 : f32 to vector<2x128xf32>
    %212 = arith.addf %211, %210 : vector<2x128xf32>
    %213 = arith.divf %211, %212 : vector<2x128xf32>
    %214 = math.tanh %208 : vector<2x128xf32>
    %215 = vector.extract_strided_slice %213 {offsets = [0, 0], sizes = [2, 32], strides = [1, 1]} : vector<2x128xf32> to vector<2x32xf32>
    %216 = vector.extract_strided_slice %213 {offsets = [0, 32], sizes = [2, 32], strides = [1, 1]} : vector<2x128xf32> to vector<2x32xf32>
    %217 = vector.extract_strided_slice %214 {offsets = [0, 64], sizes = [2, 32], strides = [1, 1]} : vector<2x128xf32> to vector<2x32xf32>
    %218 = vector.extract_strided_slice %213 {offsets = [0, 96], sizes = [2, 32], strides = [1, 1]} : vector<2x128xf32> to vector<2x32xf32>
    %219 = arith.mulf %216, %202 : vector<2x32xf32>
    %220 = arith.mulf %215, %217 : vector<2x32xf32>
    %221 = arith.addf %219, %220 : vector<2x32xf32>
    %222 = math.tanh %221 : vector<2x32xf32>
    %223 = arith.mulf %218, %222 : vector<2x32xf32>
    %c6_124 = arith.constant 6 : index
    %c0_125 = arith.constant 0 : index
    %224 = vector.load %arg23[%c6_124, %c0_125] : memref<18x32xf32, #tpu.memory_space<vmem>>, vector<2x32xf32>
    tpu.vector_store %arg23[%c6_124, %c0_125], %223 {strides = array<i32>} : memref<18x32xf32, #tpu.memory_space<vmem>>, vector<2x32xf32>,
    %c8_126 = arith.constant 8 : index
    %c0_127 = arith.constant 0 : index
    %225 = vector.load %arg22[%c8_126, %c0_127] : memref<18x128xf32, #tpu.memory_space<vmem>>, vector<2x128xf32>
    %cst_128 = arith.constant dense<0.000000e+00> : vector<2x128xf32>
    %226 = tpu.matmul %223, %146, %cst_128 {dimension_numbers = #tpu.dot_dimension_numbers<[1], [0], [0], [1], [0, 0, 1, 1], [], []>} : vector<2x32xf32>, vector<32x128xf32>, vector<2x128xf32> -> vector<2x128xf32>
    %227 = arith.addf %225, %226 : vector<2x128xf32>
    %228 = arith.negf %227 : vector<2x128xf32>
    %229 = math.exp %228 : vector<2x128xf32>
    %cst_129 = arith.constant 1.000000e+00 : f32
    %230 = vector.broadcast %cst_129 : f32 to vector<2x128xf32>
    %231 = arith.addf %230, %229 : vector<2x128xf32>
    %232 = arith.divf %230, %231 : vector<2x128xf32>
    %233 = math.tanh %227 : vector<2x128xf32>
    %234 = vector.extract_strided_slice %232 {offsets = [0, 0], sizes = [2, 32], strides = [1, 1]} : vector<2x128xf32> to vector<2x32xf32>
    %235 = vector.extract_strided_slice %232 {offsets = [0, 32], sizes = [2, 32], strides = [1, 1]} : vector<2x128xf32> to vector<2x32xf32>
    %236 = vector.extract_strided_slice %233 {offsets = [0, 64], sizes = [2, 32], strides = [1, 1]} : vector<2x128xf32> to vector<2x32xf32>
    %237 = vector.extract_strided_slice %232 {offsets = [0, 96], sizes = [2, 32], strides = [1, 1]} : vector<2x128xf32> to vector<2x32xf32>
    %238 = arith.mulf %235, %221 : vector<2x32xf32>
    %239 = arith.mulf %234, %236 : vector<2x32xf32>
    %240 = arith.addf %238, %239 : vector<2x32xf32>
    %241 = math.tanh %240 : vector<2x32xf32>
    %242 = arith.mulf %237, %241 : vector<2x32xf32>
    %c8_130 = arith.constant 8 : index
    %c0_131 = arith.constant 0 : index
    %243 = vector.load %arg23[%c8_130, %c0_131] : memref<18x32xf32, #tpu.memory_space<vmem>>, vector<2x32xf32>
    tpu.vector_store %arg23[%c8_130, %c0_131], %242 {strides = array<i32>} : memref<18x32xf32, #tpu.memory_space<vmem>>, vector<2x32xf32>,
    %c10 = arith.constant 10 : index
    %c0_132 = arith.constant 0 : index
    %244 = vector.load %arg22[%c10, %c0_132] : memref<18x128xf32, #tpu.memory_space<vmem>>, vector<2x128xf32>
    %cst_133 = arith.constant dense<0.000000e+00> : vector<2x128xf32>
    %245 = tpu.matmul %242, %146, %cst_133 {dimension_numbers = #tpu.dot_dimension_numbers<[1], [0], [0], [1], [0, 0, 1, 1], [], []>} : vector<2x32xf32>, vector<32x128xf32>, vector<2x128xf32> -> vector<2x128xf32>
    %246 = arith.addf %244, %245 : vector<2x128xf32>
    %247 = arith.negf %246 : vector<2x128xf32>
    %248 = math.exp %247 : vector<2x128xf32>
    %cst_134 = arith.constant 1.000000e+00 : f32
    %249 = vector.broadcast %cst_134 : f32 to vector<2x128xf32>
    %250 = arith.addf %249, %248 : vector<2x128xf32>
    %251 = arith.divf %249, %250 : vector<2x128xf32>
    %252 = math.tanh %246 : vector<2x128xf32>
    %253 = vector.extract_strided_slice %251 {offsets = [0, 0], sizes = [2, 32], strides = [1, 1]} : vector<2x128xf32> to vector<2x32xf32>
    %254 = vector.extract_strided_slice %251 {offsets = [0, 32], sizes = [2, 32], strides = [1, 1]} : vector<2x128xf32> to vector<2x32xf32>
    %255 = vector.extract_strided_slice %252 {offsets = [0, 64], sizes = [2, 32], strides = [1, 1]} : vector<2x128xf32> to vector<2x32xf32>
    %256 = vector.extract_strided_slice %251 {offsets = [0, 96], sizes = [2, 32], strides = [1, 1]} : vector<2x128xf32> to vector<2x32xf32>
    %257 = arith.mulf %254, %240 : vector<2x32xf32>
    %258 = arith.mulf %253, %255 : vector<2x32xf32>
    %259 = arith.addf %257, %258 : vector<2x32xf32>
    %260 = math.tanh %259 : vector<2x32xf32>
    %261 = arith.mulf %256, %260 : vector<2x32xf32>
    %c10_135 = arith.constant 10 : index
    %c0_136 = arith.constant 0 : index
    %262 = vector.load %arg23[%c10_135, %c0_136] : memref<18x32xf32, #tpu.memory_space<vmem>>, vector<2x32xf32>
    tpu.vector_store %arg23[%c10_135, %c0_136], %261 {strides = array<i32>} : memref<18x32xf32, #tpu.memory_space<vmem>>, vector<2x32xf32>,
    %c12 = arith.constant 12 : index
    %c0_137 = arith.constant 0 : index
    %263 = vector.load %arg22[%c12, %c0_137] : memref<18x128xf32, #tpu.memory_space<vmem>>, vector<2x128xf32>
    %cst_138 = arith.constant dense<0.000000e+00> : vector<2x128xf32>
    %264 = tpu.matmul %261, %146, %cst_138 {dimension_numbers = #tpu.dot_dimension_numbers<[1], [0], [0], [1], [0, 0, 1, 1], [], []>} : vector<2x32xf32>, vector<32x128xf32>, vector<2x128xf32> -> vector<2x128xf32>
    %265 = arith.addf %263, %264 : vector<2x128xf32>
    %266 = arith.negf %265 : vector<2x128xf32>
    %267 = math.exp %266 : vector<2x128xf32>
    %cst_139 = arith.constant 1.000000e+00 : f32
    %268 = vector.broadcast %cst_139 : f32 to vector<2x128xf32>
    %269 = arith.addf %268, %267 : vector<2x128xf32>
    %270 = arith.divf %268, %269 : vector<2x128xf32>
    %271 = math.tanh %265 : vector<2x128xf32>
    %272 = vector.extract_strided_slice %270 {offsets = [0, 0], sizes = [2, 32], strides = [1, 1]} : vector<2x128xf32> to vector<2x32xf32>
    %273 = vector.extract_strided_slice %270 {offsets = [0, 32], sizes = [2, 32], strides = [1, 1]} : vector<2x128xf32> to vector<2x32xf32>
    %274 = vector.extract_strided_slice %271 {offsets = [0, 64], sizes = [2, 32], strides = [1, 1]} : vector<2x128xf32> to vector<2x32xf32>
    %275 = vector.extract_strided_slice %270 {offsets = [0, 96], sizes = [2, 32], strides = [1, 1]} : vector<2x128xf32> to vector<2x32xf32>
    %276 = arith.mulf %273, %259 : vector<2x32xf32>
    %277 = arith.mulf %272, %274 : vector<2x32xf32>
    %278 = arith.addf %276, %277 : vector<2x32xf32>
    %279 = math.tanh %278 : vector<2x32xf32>
    %280 = arith.mulf %275, %279 : vector<2x32xf32>
    %c12_140 = arith.constant 12 : index
    %c0_141 = arith.constant 0 : index
    %281 = vector.load %arg23[%c12_140, %c0_141] : memref<18x32xf32, #tpu.memory_space<vmem>>, vector<2x32xf32>
    tpu.vector_store %arg23[%c12_140, %c0_141], %280 {strides = array<i32>} : memref<18x32xf32, #tpu.memory_space<vmem>>, vector<2x32xf32>,
    %c14 = arith.constant 14 : index
    %c0_142 = arith.constant 0 : index
    %282 = vector.load %arg22[%c14, %c0_142] : memref<18x128xf32, #tpu.memory_space<vmem>>, vector<2x128xf32>
    %cst_143 = arith.constant dense<0.000000e+00> : vector<2x128xf32>
    %283 = tpu.matmul %280, %146, %cst_143 {dimension_numbers = #tpu.dot_dimension_numbers<[1], [0], [0], [1], [0, 0, 1, 1], [], []>} : vector<2x32xf32>, vector<32x128xf32>, vector<2x128xf32> -> vector<2x128xf32>
    %284 = arith.addf %282, %283 : vector<2x128xf32>
    %285 = arith.negf %284 : vector<2x128xf32>
    %286 = math.exp %285 : vector<2x128xf32>
    %cst_144 = arith.constant 1.000000e+00 : f32
    %287 = vector.broadcast %cst_144 : f32 to vector<2x128xf32>
    %288 = arith.addf %287, %286 : vector<2x128xf32>
    %289 = arith.divf %287, %288 : vector<2x128xf32>
    %290 = math.tanh %284 : vector<2x128xf32>
    %291 = vector.extract_strided_slice %289 {offsets = [0, 0], sizes = [2, 32], strides = [1, 1]} : vector<2x128xf32> to vector<2x32xf32>
    %292 = vector.extract_strided_slice %289 {offsets = [0, 32], sizes = [2, 32], strides = [1, 1]} : vector<2x128xf32> to vector<2x32xf32>
    %293 = vector.extract_strided_slice %290 {offsets = [0, 64], sizes = [2, 32], strides = [1, 1]} : vector<2x128xf32> to vector<2x32xf32>
    %294 = vector.extract_strided_slice %289 {offsets = [0, 96], sizes = [2, 32], strides = [1, 1]} : vector<2x128xf32> to vector<2x32xf32>
    %295 = arith.mulf %292, %278 : vector<2x32xf32>
    %296 = arith.mulf %291, %293 : vector<2x32xf32>
    %297 = arith.addf %295, %296 : vector<2x32xf32>
    %298 = math.tanh %297 : vector<2x32xf32>
    %299 = arith.mulf %294, %298 : vector<2x32xf32>
    %c14_145 = arith.constant 14 : index
    %c0_146 = arith.constant 0 : index
    %300 = vector.load %arg23[%c14_145, %c0_146] : memref<18x32xf32, #tpu.memory_space<vmem>>, vector<2x32xf32>
    tpu.vector_store %arg23[%c14_145, %c0_146], %299 {strides = array<i32>} : memref<18x32xf32, #tpu.memory_space<vmem>>, vector<2x32xf32>,
    %c16 = arith.constant 16 : index
    %c0_147 = arith.constant 0 : index
    %301 = vector.load %arg22[%c16, %c0_147] : memref<18x128xf32, #tpu.memory_space<vmem>>, vector<2x128xf32>
    %cst_148 = arith.constant dense<0.000000e+00> : vector<2x128xf32>
    %302 = tpu.matmul %299, %146, %cst_148 {dimension_numbers = #tpu.dot_dimension_numbers<[1], [0], [0], [1], [0, 0, 1, 1], [], []>} : vector<2x32xf32>, vector<32x128xf32>, vector<2x128xf32> -> vector<2x128xf32>
    %303 = arith.addf %301, %302 : vector<2x128xf32>
    %304 = arith.negf %303 : vector<2x128xf32>
    %305 = math.exp %304 : vector<2x128xf32>
    %cst_149 = arith.constant 1.000000e+00 : f32
    %306 = vector.broadcast %cst_149 : f32 to vector<2x128xf32>
    %307 = arith.addf %306, %305 : vector<2x128xf32>
    %308 = arith.divf %306, %307 : vector<2x128xf32>
    %309 = math.tanh %303 : vector<2x128xf32>
    %310 = vector.extract_strided_slice %308 {offsets = [0, 0], sizes = [2, 32], strides = [1, 1]} : vector<2x128xf32> to vector<2x32xf32>
    %311 = vector.extract_strided_slice %308 {offsets = [0, 32], sizes = [2, 32], strides = [1, 1]} : vector<2x128xf32> to vector<2x32xf32>
    %312 = vector.extract_strided_slice %309 {offsets = [0, 64], sizes = [2, 32], strides = [1, 1]} : vector<2x128xf32> to vector<2x32xf32>
    %313 = vector.extract_strided_slice %308 {offsets = [0, 96], sizes = [2, 32], strides = [1, 1]} : vector<2x128xf32> to vector<2x32xf32>
    %314 = arith.mulf %311, %297 : vector<2x32xf32>
    %315 = arith.mulf %310, %312 : vector<2x32xf32>
    %316 = arith.addf %314, %315 : vector<2x32xf32>
    %317 = math.tanh %316 : vector<2x32xf32>
    %318 = arith.mulf %313, %317 : vector<2x32xf32>
    %c16_150 = arith.constant 16 : index
    %c0_151 = arith.constant 0 : index
    %319 = vector.load %arg23[%c16_150, %c0_151] : memref<18x32xf32, #tpu.memory_space<vmem>>, vector<2x32xf32>
    tpu.vector_store %arg23[%c16_150, %c0_151], %318 {strides = array<i32>} : memref<18x32xf32, #tpu.memory_space<vmem>>, vector<2x32xf32>,
    %c0_152 = arith.constant 0 : index
    %c0_153 = arith.constant 0 : index
    %320 = vector.load %arg23[%c0_152, %c0_153] : memref<18x32xf32, #tpu.memory_space<vmem>>, vector<18x32xf32>
    %c0_154 = arith.constant 0 : index
    %c0_155 = arith.constant 0 : index
    %321 = vector.load %arg17[%c0_154, %c0_155] : memref<1x32xf32, #tpu.memory_space<vmem>>, vector<1x32xf32>
    %c0_156 = arith.constant 0 : index
    %c0_157 = arith.constant 0 : index
    %322 = vector.load %arg18[%c0_156, %c0_157] : memref<1x32xf32, #tpu.memory_space<vmem>>, vector<1x32xf32>
    %cst_158 = arith.constant dense<0.000000e+00> : vector<18xf32>
    %323 = vector.multi_reduction <add>, %320, %cst_158 [1] : vector<18x32xf32> to vector<18xf32>
    %324 = vector.shape_cast %323 : vector<18xf32> to vector<18x1xf32>
    %cst_159 = arith.constant 3.200000e+01 : f32
    %325 = vector.broadcast %cst_159 : f32 to vector<18x1xf32>
    %326 = arith.divf %324, %325 : vector<18x1xf32>
    %327 = vector.broadcast %326 : vector<18x1xf32> to vector<18x32xf32>
    %328 = arith.subf %320, %327 : vector<18x32xf32>
    %329 = arith.mulf %328, %328 : vector<18x32xf32>
    %cst_160 = arith.constant dense<0.000000e+00> : vector<18xf32>
    %330 = vector.multi_reduction <add>, %329, %cst_160 [1] : vector<18x32xf32> to vector<18xf32>
    %331 = vector.shape_cast %330 : vector<18xf32> to vector<18x1xf32>
    %cst_161 = arith.constant 3.200000e+01 : f32
    %332 = vector.broadcast %cst_161 : f32 to vector<18x1xf32>
    %333 = arith.divf %331, %332 : vector<18x1xf32>
    %334 = vector.broadcast %326 : vector<18x1xf32> to vector<18x32xf32>
    %335 = arith.subf %320, %334 : vector<18x32xf32>
    %cst_162 = arith.constant 9.99999974E-6 : f32
    %336 = vector.broadcast %cst_162 : f32 to vector<18x1xf32>
    %337 = arith.addf %333, %336 : vector<18x1xf32>
    %338 = math.rsqrt %337 : vector<18x1xf32>
    %339 = vector.broadcast %338 : vector<18x1xf32> to vector<18x32xf32>
    %340 = arith.mulf %335, %339 : vector<18x32xf32>
    %341 = vector.broadcast %321 : vector<1x32xf32> to vector<18x32xf32>
    %342 = arith.mulf %340, %341 : vector<18x32xf32>
    %343 = vector.broadcast %322 : vector<1x32xf32> to vector<18x32xf32>
    %344 = arith.addf %342, %343 : vector<18x32xf32>
    %cst_163 = arith.constant 0.000000e+00 : f32
    %345 = vector.broadcast %cst_163 : f32 to vector<18x32xf32>
    %346 = arith.maximumf %344, %345 : vector<18x32xf32>
    %c0_164 = arith.constant 0 : index
    %c0_165 = arith.constant 0 : index
    %347 = vector.load %arg19[%c0_164, %c0_165] : memref<32x128xf32, #tpu.memory_space<vmem>>, vector<32x128xf32>
    %cst_166 = arith.constant dense<0.000000e+00> : vector<18x128xf32>
    %348 = tpu.matmul %346, %347, %cst_166 {dimension_numbers = #tpu.dot_dimension_numbers<[1], [0], [0], [1], [0, 0, 1, 1], [], []>} : vector<18x32xf32>, vector<32x128xf32>, vector<18x128xf32> -> vector<18x128xf32>
    %c0_167 = arith.constant 0 : index
    %c0_168 = arith.constant 0 : index
    %349 = vector.load %arg20[%c0_167, %c0_168] : memref<1x128xf32, #tpu.memory_space<vmem>>, vector<1x128xf32>
    %350 = vector.broadcast %349 : vector<1x128xf32> to vector<18x128xf32>
    %351 = arith.addf %348, %350 : vector<18x128xf32>
    %cst_169 = arith.constant dense<0xFF800000> : vector<18xf32>
    %352 = vector.multi_reduction <maximumf>, %351, %cst_169 [1] : vector<18x128xf32> to vector<18xf32>
    %353 = vector.shape_cast %352 : vector<18xf32> to vector<18x1xf32>
    %354 = vector.broadcast %353 : vector<18x1xf32> to vector<18x128xf32>
    %355 = arith.subf %351, %354 : vector<18x128xf32>
    %356 = math.exp %355 : vector<18x128xf32>
    %cst_170 = arith.constant dense<0.000000e+00> : vector<18xf32>
    %357 = vector.multi_reduction <add>, %356, %cst_170 [1] : vector<18x128xf32> to vector<18xf32>
    %358 = vector.shape_cast %357 : vector<18xf32> to vector<18x1xf32>
    %359 = math.log %358 : vector<18x1xf32>
    %360 = vector.broadcast %359 : vector<18x1xf32> to vector<18x128xf32>
    %361 = arith.subf %355, %360 : vector<18x128xf32>
    %c0_171 = arith.constant 0 : index
    %c0_172 = arith.constant 0 : index
    %362 = vector.load %arg21[%c0_171, %c0_172] : memref<18x128xf32, #tpu.memory_space<vmem>>, vector<18x128xf32>
    tpu.vector_store %arg21[%c0_171, %c0_172], %361 {strides = array<i32>} : memref<18x128xf32, #tpu.memory_space<vmem>>, vector<18x128xf32>,
    return
  }
}

</mosaic_0001>

<llo_original>
// kernel: model_forward.1
$region0: #{model_forward.1}
  #allocation0 [shape = 'u32[]', space=smem, size = 0x4, offset = 0x4, fixed_abs, tag = 'smem constant byte address 0x4 - core index']
  #allocation1 [shape = 'u32[144,128]{1,0:T(1,128)}', space=vmem, size = 0x12000, scoped, tag = 'internal scratch']
  #allocation2 [shape = 'f32[18,128]{1,0:T(8,128)}', space=vmem, size = 0x3000, scoped, tag = 'scratch operand']
  #allocation3 [shape = 'f32[18,32]{1,0:T(8,128)}', space=vmem, size = 0x3000, scoped, tag = 'scratch operand']
  %s0 = inlined_call_operand.vmem [shape: f32[26,32], index: 0, kind: input, shape index: {}]
  %s1 = inlined_call_operand.vmem [shape: f32[26,32], index: 1, kind: input, shape index: {}]
  %s2 = inlined_call_operand.hbm [shape: f32[10,32,32], index: 2, kind: input, shape index: {}]
  %s3 = inlined_call_operand.vmem [shape: f32[1,32], index: 3, kind: input, shape index: {}]
  %s4 = inlined_call_operand.vmem [shape: f32[1,32], index: 4, kind: input, shape index: {}]
  %s5 = inlined_call_operand.vmem [shape: f32[1,32], index: 5, kind: input, shape index: {}]
  %s6 = inlined_call_operand.vmem [shape: f32[32,32], index: 6, kind: input, shape index: {}]
  %s7 = inlined_call_operand.vmem [shape: f32[1,32], index: 7, kind: input, shape index: {}]
  %s8 = inlined_call_operand.vmem [shape: f32[1,32], index: 8, kind: input, shape index: {}]
  %s9 = inlined_call_operand.vmem [shape: f32[1,32], index: 9, kind: input, shape index: {}]
  %s10 = inlined_call_operand.vmem [shape: f32[32,32], index: 10, kind: input, shape index: {}]
  %s11 = inlined_call_operand.vmem [shape: f32[1,32], index: 11, kind: input, shape index: {}]
  %s12 = inlined_call_operand.vmem [shape: f32[1,32], index: 12, kind: input, shape index: {}]
  %s13 = inlined_call_operand.vmem [shape: f32[1,32], index: 13, kind: input, shape index: {}]
  %s14 = inlined_call_operand.vmem [shape: f32[32,128], index: 14, kind: input, shape index: {}]
  %s15 = inlined_call_operand.vmem [shape: f32[1,128], index: 15, kind: input, shape index: {}]
  %s16 = inlined_call_operand.vmem [shape: f32[32,128], index: 16, kind: input, shape index: {}]
  %s17 = inlined_call_operand.vmem [shape: f32[1,32], index: 17, kind: input, shape index: {}]
  %s18 = inlined_call_operand.vmem [shape: f32[1,32], index: 18, kind: input, shape index: {}]
  %s19 = inlined_call_operand.vmem [shape: f32[32,128], index: 19, kind: input, shape index: {}]
  %s20 = inlined_call_operand.vmem [shape: f32[1,128], index: 20, kind: input, shape index: {}]
  %s21 = inlined_call_operand.vmem [shape: f32[18,128], index: 21, kind: output, shape index: {}]
  %s22 = sld [smem:[#allocation0]]
  $region98: #{model_forward.1} parent=0
    _
  %s24 = ssub.s32 1, %s22
  %s25 = scalar_select 0, %s24, %s22
  $region1: #{model_forward.1} parent=0
    #allocation4 [shape = 'u8[163840]{0}', space=vmem, size = 0x28000, scoped, tag = 'input window, operand 2, single buffered']
    #allocation5 [shape = 's32[1]{0}', space=sflag, size = 0x4, scoped, tag = 'scoped memory for model_forward.1']
    %26 = vsyncpa [#allocation5], 0
    // Predicated region
    $region2: #{model_forward.1} parent=1 // pred_check
      _
    $region3: #{model_forward.1} parent=1 // pred_check_branch
      %28 = sbr.rel (0) target = $region5
    $region4: #{model_forward.1} parent=1 // pred_region
      _
    $region5: #{model_forward.1} parent=1 // pred_fallthru
      _
    // Predicated region
    $region6: #{model_forward.1} parent=1 // pred_check
      _
    $region7: #{model_forward.1} parent=1 // pred_check_branch
      %30 = sbr.rel (0) target = $region9
    $region8: #{model_forward.1} parent=1 // pred_region
      _
    $region9: #{model_forward.1} parent=1 // pred_fallthru
      _
    // Predicated region
    $region10: #{model_forward.1} parent=1 // pred_check
      _
    $region11: #{model_forward.1} parent=1 // pred_check_branch
      %32 = sbr.rel (0) target = $region13
    $region12: #{model_forward.1} parent=1 // pred_region
      %s34 = ssub.s32 5120, 5120
      %35 = vsyncadd [#allocation5], %s34
      %s36 = sshll.u32 [#allocation4], 4
      %s37 = int_to_ptr.vmem [resolvable:$true] %s36
      %42 = dma.hbm_to_vmem [thread:$0]  %s2, 5120, %s37, [#allocation5], 128, 128, 8
    $region13: #{model_forward.1} parent=1 // pred_fallthru
      _
    // Predicated region
    $region14: #{model_forward.1} parent=1 // pred_check
      _
    $region15: #{model_forward.1} parent=1 // pred_check_branch
      %44 = sbr.rel (0) target = $region17
    $region16: #{model_forward.1} parent=1 // pred_region
      _
    $region17: #{model_forward.1} parent=1 // pred_fallthru
      _
    // Predicated region
    $region18: #{model_forward.1} parent=1 // pred_check
      _
    $region19: #{model_forward.1} parent=1 // pred_check_branch
      %46 = sbr.rel (0) target = $region21
    $region20: #{model_forward.1} parent=1 // pred_region
      _
    $region21: #{model_forward.1} parent=1 // pred_fallthru
      _
    // Predicated region
    $region22: #{model_forward.1} parent=1 // pred_check
      _
    $region23: #{model_forward.1} parent=1 // pred_check_branch
      %48 = sbr.rel (0) target = $region25
    $region24: #{model_forward.1} parent=1 // pred_region
      _
    $region25: #{model_forward.1} parent=1 // pred_fallthru
      _
    // Predicated region
    $region26: #{model_forward.1} parent=1 // pred_check
      _
    $region27: #{model_forward.1} parent=1 // pred_check_branch
      %50 = sbr.rel (0) target = $region29
    $region28: #{model_forward.1} parent=1 // pred_region
      _
    $region29: #{model_forward.1} parent=1 // pred_fallthru
      _
    // Predicated region
    $region30: #{model_forward.1} parent=1 // pred_check
      _
    $region31: #{model_forward.1} parent=1 // pred_check_branch
      %52 = sbr.rel (0) target = $region33
    $region32: #{model_forward.1} parent=1 // pred_region
      _
    $region33: #{model_forward.1} parent=1 // pred_fallthru
      _
    // Predicated region
    $region34: #{model_forward.1} parent=1 // pred_check
      _
    $region35: #{model_forward.1} parent=1 // pred_check_branch
      %54 = sbr.rel (0) target = $region37
    $region36: #{model_forward.1} parent=1 // pred_region
      _
    $region37: #{model_forward.1} parent=1 // pred_fallthru
      _
    // Predicated region
    $region38: #{model_forward.1} parent=1 // pred_check
      _
    $region39: #{model_forward.1} parent=1 // pred_check_branch
      %56 = sbr.rel (0) target = $region41
    $region40: #{model_forward.1} parent=1 // pred_region
      _
    $region41: #{model_forward.1} parent=1 // pred_fallthru
      _
    // Predicated region
    $region42: #{model_forward.1} parent=1 // pred_check
      _
    $region43: #{model_forward.1} parent=1 // pred_check_branch
      %58 = sbr.rel (0) target = $region45
    $region44: #{model_forward.1} parent=1 // pred_region
      _
    $region45: #{model_forward.1} parent=1 // pred_fallthru
      _
    // Predicated region
    $region46: #{model_forward.1} parent=1 // pred_check
      _
    $region47: #{model_forward.1} parent=1 // pred_check_branch
      %60 = sbr.rel (0) target = $region49
    $region48: #{model_forward.1} parent=1 // pred_region
      _
    $region49: #{model_forward.1} parent=1 // pred_fallthru
      _
    // Predicated region
    $region50: #{model_forward.1} parent=1 // pred_check
      _
    $region51: #{model_forward.1} parent=1 // pred_check_branch
      %62 = sbr.rel (0) target = $region53
    $region52: #{model_forward.1} parent=1 // pred_region
      _
    $region53: #{model_forward.1} parent=1 // pred_fallthru
      _
    // Predicated region
    $region54: #{model_forward.1} parent=1 // pred_check
      _
    $region55: #{model_forward.1} parent=1 // pred_check_branch
      %64 = sbr.rel (0) target = $region57
    $region56: #{model_forward.1} parent=1 // pred_region
      _
    $region57: #{model_forward.1} parent=1 // pred_fallthru
      _
    // Predicated region
    $region58: #{model_forward.1} parent=1 // pred_check
      _
    $region59: #{model_forward.1} parent=1 // pred_check_branch
      %66 = sbr.rel (0) target = $region61
    $region60: #{model_forward.1} parent=1 // pred_region
      _
    $region61: #{model_forward.1} parent=1 // pred_fallthru
      _
    // Predicated region
    $region62: #{model_forward.1} parent=1 // pred_check
      _
    $region63: #{model_forward.1} parent=1 // pred_check_branch
      %68 = sbr.rel (0) target = $region65
    $region64: #{model_forward.1} parent=1 // pred_region
      _
    $region65: #{model_forward.1} parent=1 // pred_fallthru
      _
    // Predicated region
    $region66: #{model_forward.1} parent=1 // pred_check
      _
    $region67: #{model_forward.1} parent=1 // pred_check_branch
      %70 = sbr.rel (0) target = $region69
    $region68: #{model_forward.1} parent=1 // pred_region
      _
    $region69: #{model_forward.1} parent=1 // pred_fallthru
      _
    // Predicated region
    $region70: #{model_forward.1} parent=1 // pred_check
      _
    $region71: #{model_forward.1} parent=1 // pred_check_branch
      %72 = sbr.rel (0) target = $region73
    $region72: #{model_forward.1} parent=1 // pred_region
      _
    $region73: #{model_forward.1} parent=1 // pred_fallthru
      _
    // Predicated region
    $region74: #{model_forward.1} parent=1 // pred_check
      _
    $region75: #{model_forward.1} parent=1 // pred_check_branch
      %74 = sbr.rel (0) target = $region77
    $region76: #{model_forward.1} parent=1 // pred_region
      _
    $region77: #{model_forward.1} parent=1 // pred_fallthru
      _
    // Predicated region
    $region78: #{model_forward.1} parent=1 // pred_check
      _
    $region79: #{model_forward.1} parent=1 // pred_check_branch
      %76 = sbr.rel (0) target = $region81
    $region80: #{model_forward.1} parent=1 // pred_region
      _
    $region81: #{model_forward.1} parent=1 // pred_fallthru
      _
    // Predicated region
    $region82: #{model_forward.1} parent=1 // pred_check
      _
    $region83: #{model_forward.1} parent=1 // pred_check_branch
      %78 = sbr.rel (0) target = $region85
    $region84: #{model_forward.1} parent=1 // pred_region
      _
    $region85: #{model_forward.1} parent=1 // pred_fallthru
      _
    // Predicated region
    $region86: #{model_forward.1} parent=1 // pred_check
      _
    $region87: #{model_forward.1} parent=1 // pred_check_branch
      %80 = sbr.rel (0) target = $region89
    $region88: #{model_forward.1} parent=1 // pred_region
      %81 = dma.done [#allocation5], 5120
    $region89: #{model_forward.1} parent=1 // pred_fallthru
      _
    %v82 = vld [vmem:[%s0] sm:$0xff]
    %v83 = vld [vmem:[%s0 + $0x8] sm:$0xff]
    %v84 = vld [vmem:[%s0 + $0x10] sm:$0x3]
    %v85 = vld [vmem:[#allocation4] sm:$0xff]
    %v86 = vld [vmem:[#allocation4 + $0x8] sm:$0xff]
    %v87 = vld [vmem:[#allocation4 + $0x10] sm:$0xff]
    %v88 = vld [vmem:[#allocation4 + $0x18] sm:$0xff]
    %v89 = vld [vmem:[%s1] sm:$0xff]
    %v90 = vld [vmem:[%s1 + $0x8] sm:$0xff]
    %v91 = vld [vmem:[%s1 + $0x10] sm:$0x3]
    %s92 = scalar_lea.vmem [#allocation4], 32
    %v93 = vld [vmem:[%s92] sm:$0xff]
    %v94 = vld [vmem:[%s92 + $0x8] sm:$0xff]
    %v95 = vld [vmem:[%s92 + $0x10] sm:$0xff]
    %v96 = vld [vmem:[%s92 + $0x18] sm:$0xff]
    %vm97 = vcmask 261120
    %v99 = vsel %vm97, %v89, 0
    %v102 = vsel %vm97, %v90, 0
    %v105 = vsel %vm97, %v91, 0
    %107 = vmatprep.subr.mxu0 0.0
    %108 = vmatpush1.msra.mxu0 %v93
    %109 = vmatprep.subr.mxu0 0.0
    %110 = vmatpush1.msra.mxu0 %v94
    %111 = vmatprep.subr.mxu0 0.0
    %112 = vmatpush1.msra.mxu0 %v95
    %113 = vmatprep.subr.mxu0 0.0
    %114 = vmatpush1.msra.mxu0 %v96
    %115 = vmatprep.subr.mxu0 0.0
    %116 = vmatpush1.msra.mxu0 0.0
    %117 = vmatprep.subr.mxu0 0.0
    %118 = vmatpush1.msra.mxu0 0.0
    %119 = vmatprep.subr.mxu0 0.0
    %120 = vmatpush1.msra.mxu0 0.0
    %121 = vmatprep.subr.mxu0 0.0
    %122 = vmatpush1.msra.mxu0 0.0
    %123 = vmatprep.subr.mxu0 0.0
    %124 = vmatpush1.msra.mxu0 0.0
    %125 = vmatprep.subr.mxu0 0.0
    %126 = vmatpush1.msra.mxu0 0.0
    %127 = vmatprep.subr.mxu0 0.0
    %128 = vmatpush1.msra.mxu0 0.0
    %129 = vmatprep.subr.mxu0 0.0
    %130 = vmatpush1.msra.mxu0 0.0
    %131 = vmatprep.subr.mxu0 0.0
    %132 = vmatpush1.msra.mxu0 0.0
    %133 = vmatprep.subr.mxu0 0.0
    %134 = vmatpush1.msra.mxu0 0.0
    %135 = vmatprep.subr.mxu0 0.0
    %136 = vmatpush1.msra.mxu0 0.0
    %137 = vmatprep.subr.mxu0 0.0
    %138 = vmatpush1.msra.mxu0 0.0
    %139 = vmatprep.subr.mxu0 0.0
    %140 = vmatpush1.msra.mxu0 0.0
    %141 = vmatprep.subr.mxu0 0.0
    %142 = vmatpush1.msra.mxu0 0.0
    %143 = vmatprep.subr.mxu0 0.0
    %144 = vmatpush1.msra.mxu0 0.0
    %145 = vmatprep.subr.mxu0 0.0
    %146 = vmatpush1.msra.mxu0 0.0
    %147 = vmatprep.subr.mxu0 0.0
    %148 = vmatpush1.msra.mxu0 0.0
    %149 = vmatprep.subr.mxu0 0.0
    %150 = vmatpush1.msra.mxu0 0.0
    %151 = vmatprep.subr.mxu0 0.0
    %152 = vmatpush1.msra.mxu0 0.0
    %153 = vmatprep.subr.mxu0 0.0
    %154 = vmatpush1.msra.mxu0 0.0
    %155 = vmatprep.subr.mxu0 0.0
    %156 = vmatpush1.msra.mxu0 0.0
    %157 = vmatprep.subr.mxu0 0.0
    %158 = vmatpush1.msra.mxu0 0.0
    %159 = vmatprep.subr.mxu0 0.0
    %160 = vmatpush1.msra.mxu0 0.0
    %161 = vmatprep.subr.mxu0 0.0
    %162 = vmatpush1.msra.mxu0 0.0
    %163 = vmatprep.subr.mxu0 0.0
    %164 = vmatpush1.msra.mxu0 0.0
    %165 = vmatprep.subr.mxu0 0.0
    %166 = vmatpush1.msra.mxu0 0.0
    %167 = vmatprep.subr.mxu0 0.0
    %168 = vmatpush1.msra.mxu0 0.0
    %169 = vmatprep.subr.mxu0 0.0
    %170 = vmatpush1.msra.mxu0 0.0
    %171 = vmatprep.mubr.f32.mxu0 0.0
    %172 = vmatmul.mubr.f32.gmra.mrb[0].mxu0 %v99
    %v173 = vpop.f32.mrb[0].mxu0
    %v174 = vadd.f32 0.0, %v173
    %v175 = vpop.f32.mrb[0].mxu0
    %176 = vmatprep.mubr.f32.mxu0 0.0
    %177 = vmatmul.mubr.f32.gmra.mrb[0].mxu0 %v102
    %v178 = vpop.f32.mrb[0].mxu0
    %v179 = vadd.f32 0.0, %v178
    %v180 = vpop.f32.mrb[0].mxu0
    %181 = vmatprep.mubr.f32.mxu0 0.0
    %182 = vmatmul.mubr.f32.gmra.mrb[0].mxu0 %v105
    %v183 = vpop.f32.mrb[0].mxu0
    %v184 = vadd.f32 0.0, %v183
    %v185 = vpop.f32.mrb[0].mxu0
    %186 = vdwg.mxu0
    %v188 = vsel %vm97, %v82, 0
    %v191 = vsel %vm97, %v83, 0
    %v194 = vsel %vm97, %v84, 0
    %196 = vmatprep.subr.mxu0 0.0
    %197 = vmatpush1.msra.mxu0 %v85
    %198 = vmatprep.subr.mxu0 0.0
    %199 = vmatpush1.msra.mxu0 %v86
    %200 = vmatprep.subr.mxu0 0.0
    %201 = vmatpush1.msra.mxu0 %v87
    %202 = vmatprep.subr.mxu0 0.0
    %203 = vmatpush1.msra.mxu0 %v88
    %204 = vmatprep.subr.mxu0 0.0
    %205 = vmatpush1.msra.mxu0 0.0
    %206 = vmatprep.subr.mxu0 0.0
    %207 = vmatpush1.msra.mxu0 0.0
    %208 = vmatprep.subr.mxu0 0.0
    %209 = vmatpush1.msra.mxu0 0.0
    %210 = vmatprep.subr.mxu0 0.0
    %211 = vmatpush1.msra.mxu0 0.0
    %212 = vmatprep.subr.mxu0 0.0
    %213 = vmatpush1.msra.mxu0 0.0
    %214 = vmatprep.subr.mxu0 0.0
    %215 = vmatpush1.msra.mxu0 0.0
    %216 = vmatprep.subr.mxu0 0.0
    %217 = vmatpush1.msra.mxu0 0.0
    %218 = vmatprep.subr.mxu0 0.0
    %219 = vmatpush1.msra.mxu0 0.0
    %220 = vmatprep.subr.mxu0 0.0
    %221 = vmatpush1.msra.mxu0 0.0
    %222 = vmatprep.subr.mxu0 0.0
    %223 = vmatpush1.msra.mxu0 0.0
    %224 = vmatprep.subr.mxu0 0.0
    %225 = vmatpush1.msra.mxu0 0.0
    %226 = vmatprep.subr.mxu0 0.0
    %227 = vmatpush1.msra.mxu0 0.0
    %228 = vmatprep.subr.mxu0 0.0
    %229 = vmatpush1.msra.mxu0 0.0
    %230 = vmatprep.subr.mxu0 0.0
    %231 = vmatpush1.msra.mxu0 0.0
    %232 = vmatprep.subr.mxu0 0.0
    %233 = vmatpush1.msra.mxu0 0.0
    %234 = vmatprep.subr.mxu0 0.0
    %235 = vmatpush1.msra.mxu0 0.0
    %236 = vmatprep.subr.mxu0 0.0
    %237 = vmatpush1.msra.mxu0 0.0
    %238 = vmatprep.subr.mxu0 0.0
    %239 = vmatpush1.msra.mxu0 0.0
    %240 = vmatprep.subr.mxu0 0.0
    %241 = vmatpush1.msra.mxu0 0.0
    %242 = vmatprep.subr.mxu0 0.0
    %243 = vmatpush1.msra.mxu0 0.0
    %244 = vmatprep.subr.mxu0 0.0
    %245 = vmatpush1.msra.mxu0 0.0
    %246 = vmatprep.subr.mxu0 0.0
    %247 = vmatpush1.msra.mxu0 0.0
    %248 = vmatprep.subr.mxu0 0.0
    %249 = vmatpush1.msra.mxu0 0.0
    %250 = vmatprep.subr.mxu0 0.0
    %251 = vmatpush1.msra.mxu0 0.0
    %252 = vmatprep.subr.mxu0 0.0
    %253 = vmatpush1.msra.mxu0 0.0
    %254 = vmatprep.subr.mxu0 0.0
    %255 = vmatpush1.msra.mxu0 0.0
    %256 = vmatprep.subr.mxu0 0.0
    %257 = vmatpush1.msra.mxu0 0.0
    %258 = vmatprep.subr.mxu0 0.0
    %259 = vmatpush1.msra.mxu0 0.0
    %260 = vmatprep.mubr.f32.mxu0 0.0
    %261 = vmatmul.mubr.f32.gmra.mrb[0].mxu0 %v188
    %v262 = vpop.f32.mrb[0].mxu0
    %v263 = vadd.f32 %v174, %v262
    %v264 = vpop.f32.mrb[0].mxu0
    %265 = vmatprep.mubr.f32.mxu0 0.0
    %266 = vmatmul.mubr.f32.gmra.mrb[0].mxu0 %v191
    %v267 = vpop.f32.mrb[0].mxu0
    %v268 = vadd.f32 %v179, %v267
    %v269 = vpop.f32.mrb[0].mxu0
    %270 = vmatprep.mubr.f32.mxu0 0.0
    %271 = vmatmul.mubr.f32.gmra.mrb[0].mxu0 %v194
    %v272 = vpop.f32.mrb[0].mxu0
    %v273 = vadd.f32 %v184, %v272
    %v274 = vpop.f32.mrb[0].mxu0
    %275 = vdwg.mxu0
    %v276 = vld [vmem:[%s0 + $0x2] sm:$0xff]
    %v277 = vld [vmem:[%s0 + $0xa] sm:$0xff]
    %v278 = vld [vmem:[%s0 + $0x12] sm:$0x3]
    %s279 = scalar_lea.vmem [#allocation4], 64
    %v280 = vld [vmem:[%s279] sm:$0xff]
    %v281 = vld [vmem:[%s279 + $0x8] sm:$0xff]
    %v282 = vld [vmem:[%s279 + $0x10] sm:$0xff]
    %v283 = vld [vmem:[%s279 + $0x18] sm:$0xff]
    %v285 = vsel %vm97, %v276, 0
    %v288 = vsel %vm97, %v277, 0
    %v291 = vsel %vm97, %v278, 0
    %293 = vmatprep.subr.mxu0 0.0
    %294 = vmatpush1.msra.mxu0 %v280
    %295 = vmatprep.subr.mxu0 0.0
    %296 = vmatpush1.msra.mxu0 %v281
    %297 = vmatprep.subr.mxu0 0.0
    %298 = vmatpush1.msra.mxu0 %v282
    %299 = vmatprep.subr.mxu0 0.0
    %300 = vmatpush1.msra.mxu0 %v283
    %301 = vmatprep.subr.mxu0 0.0
    %302 = vmatpush1.msra.mxu0 0.0
    %303 = vmatprep.subr.mxu0 0.0
    %304 = vmatpush1.msra.mxu0 0.0
    %305 = vmatprep.subr.mxu0 0.0
    %306 = vmatpush1.msra.mxu0 0.0
    %307 = vmatprep.subr.mxu0 0.0
    %308 = vmatpush1.msra.mxu0 0.0
    %309 = vmatprep.subr.mxu0 0.0
    %310 = vmatpush1.msra.mxu0 0.0
    %311 = vmatprep.subr.mxu0 0.0
    %312 = vmatpush1.msra.mxu0 0.0
    %313 = vmatprep.subr.mxu0 0.0
    %314 = vmatpush1.msra.mxu0 0.0
    %315 = vmatprep.subr.mxu0 0.0
    %316 = vmatpush1.msra.mxu0 0.0
    %317 = vmatprep.subr.mxu0 0.0
    %318 = vmatpush1.msra.mxu0 0.0
    %319 = vmatprep.subr.mxu0 0.0
    %320 = vmatpush1.msra.mxu0 0.0
    %321 = vmatprep.subr.mxu0 0.0
    %322 = vmatpush1.msra.mxu0 0.0
    %323 = vmatprep.subr.mxu0 0.0
    %324 = vmatpush1.msra.mxu0 0.0
    %325 = vmatprep.subr.mxu0 0.0
    %326 = vmatpush1.msra.mxu0 0.0
    %327 = vmatprep.subr.mxu0 0.0
    %328 = vmatpush1.msra.mxu0 0.0
    %329 = vmatprep.subr.mxu0 0.0
    %330 = vmatpush1.msra.mxu0 0.0
    %331 = vmatprep.subr.mxu0 0.0
    %332 = vmatpush1.msra.mxu0 0.0
    %333 = vmatprep.subr.mxu0 0.0
    %334 = vmatpush1.msra.mxu0 0.0
    %335 = vmatprep.subr.mxu0 0.0
    %336 = vmatpush1.msra.mxu0 0.0
    %337 = vmatprep.subr.mxu0 0.0
    %338 = vmatpush1.msra.mxu0 0.0
    %339 = vmatprep.subr.mxu0 0.0
    %340 = vmatpush1.msra.mxu0 0.0
    %341 = vmatprep.subr.mxu0 0.0
    %342 = vmatpush1.msra.mxu0 0.0
    %343 = vmatprep.subr.mxu0 0.0
    %344 = vmatpush1.msra.mxu0 0.0
    %345 = vmatprep.subr.mxu0 0.0
    %346 = vmatpush1.msra.mxu0 0.0
    %347 = vmatprep.subr.mxu0 0.0
    %348 = vmatpush1.msra.mxu0 0.0
    %349 = vmatprep.subr.mxu0 0.0
    %350 = vmatpush1.msra.mxu0 0.0
    %351 = vmatprep.subr.mxu0 0.0
    %352 = vmatpush1.msra.mxu0 0.0
    %353 = vmatprep.subr.mxu0 0.0
    %354 = vmatpush1.msra.mxu0 0.0
    %355 = vmatprep.subr.mxu0 0.0
    %356 = vmatpush1.msra.mxu0 0.0
    %357 = vmatprep.mubr.f32.mxu0 0.0
    %358 = vmatmul.mubr.f32.gmra.mrb[0].mxu0 %v285
    %v359 = vpop.f32.mrb[0].mxu0
    %v360 = vadd.f32 0.0, %v359
    %v361 = vpop.f32.mrb[0].mxu0
    %362 = vmatprep.mubr.f32.mxu0 0.0
    %363 = vmatmul.mubr.f32.gmra.mrb[0].mxu0 %v288
    %v364 = vpop.f32.mrb[0].mxu0
    %v365 = vadd.f32 0.0, %v364
    %v366 = vpop.f32.mrb[0].mxu0
    %367 = vmatprep.mubr.f32.mxu0 0.0
    %368 = vmatmul.mubr.f32.gmra.mrb[0].mxu0 %v291
    %v369 = vpop.f32.mrb[0].mxu0
    %v370 = vadd.f32 0.0, %v369
    %v371 = vpop.f32.mrb[0].mxu0
    %372 = vdwg.mxu0
    %v373 = vadd.f32 %v263, %v360
    %v374 = vadd.f32 %v268, %v365
    %v375 = vadd.f32 %v273, %v370
    %v376 = vld [vmem:[%s1 + $0x2] sm:$0xff]
    %v377 = vld [vmem:[%s1 + $0xa] sm:$0xff]
    %v378 = vld [vmem:[%s1 + $0x12] sm:$0x3]
    %s379 = scalar_lea.vmem [#allocation4], 96
    %v380 = vld [vmem:[%s379] sm:$0xff]
    %v381 = vld [vmem:[%s379 + $0x8] sm:$0xff]
    %v382 = vld [vmem:[%s379 + $0x10] sm:$0xff]
    %v383 = vld [vmem:[%s379 + $0x18] sm:$0xff]
    %v385 = vsel %vm97, %v376, 0
    %v388 = vsel %vm97, %v377, 0
    %v391 = vsel %vm97, %v378, 0
    %393 = vmatprep.subr.mxu0 0.0
    %394 = vmatpush1.msra.mxu0 %v380
    %395 = vmatprep.subr.mxu0 0.0
    %396 = vmatpush1.msra.mxu0 %v381
    %397 = vmatprep.subr.mxu0 0.0
    %398 = vmatpush1.msra.mxu0 %v382
    %399 = vmatprep.subr.mxu0 0.0
    %400 = vmatpush1.msra.mxu0 %v383
    %401 = vmatprep.subr.mxu0 0.0
    %402 = vmatpush1.msra.mxu0 0.0
    %403 = vmatprep.subr.mxu0 0.0
    %404 = vmatpush1.msra.mxu0 0.0
    %405 = vmatprep.subr.mxu0 0.0
    %406 = vmatpush1.msra.mxu0 0.0
    %407 = vmatprep.subr.mxu0 0.0
    %408 = vmatpush1.msra.mxu0 0.0
    %409 = vmatprep.subr.mxu0 0.0
    %410 = vmatpush1.msra.mxu0 0.0
    %411 = vmatprep.subr.mxu0 0.0
    %412 = vmatpush1.msra.mxu0 0.0
    %413 = vmatprep.subr.mxu0 0.0
    %414 = vmatpush1.msra.mxu0 0.0
    %415 = vmatprep.subr.mxu0 0.0
    %416 = vmatpush1.msra.mxu0 0.0
    %417 = vmatprep.subr.mxu0 0.0
    %418 = vmatpush1.msra.mxu0 0.0
    %419 = vmatprep.subr.mxu0 0.0
    %420 = vmatpush1.msra.mxu0 0.0
    %421 = vmatprep.subr.mxu0 0.0
    %422 = vmatpush1.msra.mxu0 0.0
    %423 = vmatprep.subr.mxu0 0.0
    %424 = vmatpush1.msra.mxu0 0.0
    %425 = vmatprep.subr.mxu0 0.0
    %426 = vmatpush1.msra.mxu0 0.0
    %427 = vmatprep.subr.mxu0 0.0
    %428 = vmatpush1.msra.mxu0 0.0
    %429 = vmatprep.subr.mxu0 0.0
    %430 = vmatpush1.msra.mxu0 0.0
    %431 = vmatprep.subr.mxu0 0.0
    %432 = vmatpush1.msra.mxu0 0.0
    %433 = vmatprep.subr.mxu0 0.0
    %434 = vmatpush1.msra.mxu0 0.0
    %435 = vmatprep.subr.mxu0 0.0
    %436 = vmatpush1.msra.mxu0 0.0
    %437 = vmatprep.subr.mxu0 0.0
    %438 = vmatpush1.msra.mxu0 0.0
    %439 = vmatprep.subr.mxu0 0.0
    %440 = vmatpush1.msra.mxu0 0.0
    %441 = vmatprep.subr.mxu0 0.0
    %442 = vmatpush1.msra.mxu0 0.0
    %443 = vmatprep.subr.mxu0 0.0
    %444 = vmatpush1.msra.mxu0 0.0
    %445 = vmatprep.subr.mxu0 0.0
    %446 = vmatpush1.msra.mxu0 0.0
    %447 = vmatprep.subr.mxu0 0.0
    %448 = vmatpush1.msra.mxu0 0.0
    %449 = vmatprep.subr.mxu0 0.0
    %450 = vmatpush1.msra.mxu0 0.0
    %451 = vmatprep.subr.mxu0 0.0
    %452 = vmatpush1.msra.mxu0 0.0
    %453 = vmatprep.subr.mxu0 0.0
    %454 = vmatpush1.msra.mxu0 0.0
    %455 = vmatprep.subr.mxu0 0.0
    %456 = vmatpush1.msra.mxu0 0.0
    %457 = vmatprep.mubr.f32.mxu0 0.0
    %458 = vmatmul.mubr.f32.gmra.mrb[0].mxu0 %v385
    %v459 = vpop.f32.mrb[0].mxu0
    %v460 = vadd.f32 0.0, %v459
    %v461 = vpop.f32.mrb[0].mxu0
    %462 = vmatprep.mubr.f32.mxu0 0.0
    %463 = vmatmul.mubr.f32.gmra.mrb[0].mxu0 %v388
    %v464 = vpop.f32.mrb[0].mxu0
    %v465 = vadd.f32 0.0, %v464
    %v466 = vpop.f32.mrb[0].mxu0
    %467 = vmatprep.mubr.f32.mxu0 0.0
    %468 = vmatmul.mubr.f32.gmra.mrb[0].mxu0 %v391
    %v469 = vpop.f32.mrb[0].mxu0
    %v470 = vadd.f32 0.0, %v469
    %v471 = vpop.f32.mrb[0].mxu0
    %472 = vdwg.mxu0
    %v473 = vadd.f32 %v373, %v460
    %v474 = vadd.f32 %v374, %v465
    %v475 = vadd.f32 %v375, %v470
    %v476 = vld [vmem:[%s0 + $0x4] sm:$0xff]
    %v477 = vld [vmem:[%s0 + $0xc] sm:$0xff]
    %v478 = vld [vmem:[%s0 + $0x14] sm:$0x3]
    %s479 = scalar_lea.vmem [#allocation4], 128
    %v480 = vld [vmem:[%s479] sm:$0xff]
    %v481 = vld [vmem:[%s479 + $0x8] sm:$0xff]
    %v482 = vld [vmem:[%s479 + $0x10] sm:$0xff]
    %v483 = vld [vmem:[%s479 + $0x18] sm:$0xff]
    %v485 = vsel %vm97, %v476, 0
    %v488 = vsel %vm97, %v477, 0
    %v491 = vsel %vm97, %v478, 0
    %493 = vmatprep.subr.mxu0 0.0
    %494 = vmatpush1.msra.mxu0 %v480
    %495 = vmatprep.subr.mxu0 0.0
    %496 = vmatpush1.msra.mxu0 %v481
    %497 = vmatprep.subr.mxu0 0.0
    %498 = vmatpush1.msra.mxu0 %v482
    %499 = vmatprep.subr.mxu0 0.0
    %500 = vmatpush1.msra.mxu0 %v483
    %501 = vmatprep.subr.mxu0 0.0
    %502 = vmatpush1.msra.mxu0 0.0
    %503 = vmatprep.subr.mxu0 0.0
    %504 = vmatpush1.msra.mxu0 0.0
    %505 = vmatprep.subr.mxu0 0.0
    %506 = vmatpush1.msra.mxu0 0.0
    %507 = vmatprep.subr.mxu0 0.0
    %508 = vmatpush1.msra.mxu0 0.0
    %509 = vmatprep.subr.mxu0 0.0
    %510 = vmatpush1.msra.mxu0 0.0
    %511 = vmatprep.subr.mxu0 0.0
    %512 = vmatpush1.msra.mxu0 0.0
    %513 = vmatprep.subr.mxu0 0.0
    %514 = vmatpush1.msra.mxu0 0.0
    %515 = vmatprep.subr.mxu0 0.0
    %516 = vmatpush1.msra.mxu0 0.0
    %517 = vmatprep.subr.mxu0 0.0
    %518 = vmatpush1.msra.mxu0 0.0
    %519 = vmatprep.subr.mxu0 0.0
    %520 = vmatpush1.msra.mxu0 0.0
    %521 = vmatprep.subr.mxu0 0.0
    %522 = vmatpush1.msra.mxu0 0.0
    %523 = vmatprep.subr.mxu0 0.0
    %524 = vmatpush1.msra.mxu0 0.0
    %525 = vmatprep.subr.mxu0 0.0
    %526 = vmatpush1.msra.mxu0 0.0
    %527 = vmatprep.subr.mxu0 0.0
    %528 = vmatpush1.msra.mxu0 0.0
    %529 = vmatprep.subr.mxu0 0.0
    %530 = vmatpush1.msra.mxu0 0.0
    %531 = vmatprep.subr.mxu0 0.0
    %532 = vmatpush1.msra.mxu0 0.0
    %533 = vmatprep.subr.mxu0 0.0
    %534 = vmatpush1.msra.mxu0 0.0
    %535 = vmatprep.subr.mxu0 0.0
    %536 = vmatpush1.msra.mxu0 0.0
    %537 = vmatprep.subr.mxu0 0.0
    %538 = vmatpush1.msra.mxu0 0.0
    %539 = vmatprep.subr.mxu0 0.0
    %540 = vmatpush1.msra.mxu0 0.0
    %541 = vmatprep.subr.mxu0 0.0
    %542 = vmatpush1.msra.mxu0 0.0
    %543 = vmatprep.subr.mxu0 0.0
    %544 = vmatpush1.msra.mxu0 0.0
    %545 = vmatprep.subr.mxu0 0.0
    %546 = vmatpush1.msra.mxu0 0.0
    %547 = vmatprep.subr.mxu0 0.0
    %548 = vmatpush1.msra.mxu0 0.0
    %549 = vmatprep.subr.mxu0 0.0
    %550 = vmatpush1.msra.mxu0 0.0
    %551 = vmatprep.subr.mxu0 0.0
    %552 = vmatpush1.msra.mxu0 0.0
    %553 = vmatprep.subr.mxu0 0.0
    %554 = vmatpush1.msra.mxu0 0.0
    %555 = vmatprep.subr.mxu0 0.0
    %556 = vmatpush1.msra.mxu0 0.0
    %557 = vmatprep.mubr.f32.mxu0 0.0
    %558 = vmatmul.mubr.f32.gmra.mrb[0].mxu0 %v485
    %v559 = vpop.f32.mrb[0].mxu0
    %v560 = vadd.f32 0.0, %v559
    %v561 = vpop.f32.mrb[0].mxu0
    %562 = vmatprep.mubr.f32.mxu0 0.0
    %563 = vmatmul.mubr.f32.gmra.mrb[0].mxu0 %v488
    %v564 = vpop.f32.mrb[0].mxu0
    %v565 = vadd.f32 0.0, %v564
    %v566 = vpop.f32.mrb[0].mxu0
    %567 = vmatprep.mubr.f32.mxu0 0.0
    %568 = vmatmul.mubr.f32.gmra.mrb[0].mxu0 %v491
    %v569 = vpop.f32.mrb[0].mxu0
    %v570 = vadd.f32 0.0, %v569
    %v571 = vpop.f32.mrb[0].mxu0
    %572 = vdwg.mxu0
    %v573 = vadd.f32 %v473, %v560
    %v574 = vadd.f32 %v474, %v565
    %v575 = vadd.f32 %v475, %v570
    %v576 = vld [vmem:[%s1 + $0x4] sm:$0xff]
    %v577 = vld [vmem:[%s1 + $0xc] sm:$0xff]
    %v578 = vld [vmem:[%s1 + $0x14] sm:$0x3]
    %s579 = scalar_lea.vmem [#allocation4], 160
    %v580 = vld [vmem:[%s579] sm:$0xff]
    %v581 = vld [vmem:[%s579 + $0x8] sm:$0xff]
    %v582 = vld [vmem:[%s579 + $0x10] sm:$0xff]
    %v583 = vld [vmem:[%s579 + $0x18] sm:$0xff]
    %v585 = vsel %vm97, %v576, 0
    %v588 = vsel %vm97, %v577, 0
    %v591 = vsel %vm97, %v578, 0
    %593 = vmatprep.subr.mxu0 0.0
    %594 = vmatpush1.msra.mxu0 %v580
    %595 = vmatprep.subr.mxu0 0.0
    %596 = vmatpush1.msra.mxu0 %v581
    %597 = vmatprep.subr.mxu0 0.0
    %598 = vmatpush1.msra.mxu0 %v582
    %599 = vmatprep.subr.mxu0 0.0
    %600 = vmatpush1.msra.mxu0 %v583
    %601 = vmatprep.subr.mxu0 0.0
    %602 = vmatpush1.msra.mxu0 0.0
    %603 = vmatprep.subr.mxu0 0.0
    %604 = vmatpush1.msra.mxu0 0.0
    %605 = vmatprep.subr.mxu0 0.0
    %606 = vmatpush1.msra.mxu0 0.0
    %607 = vmatprep.subr.mxu0 0.0
    %608 = vmatpush1.msra.mxu0 0.0
    %609 = vmatprep.subr.mxu0 0.0
    %610 = vmatpush1.msra.mxu0 0.0
    %611 = vmatprep.subr.mxu0 0.0
    %612 = vmatpush1.msra.mxu0 0.0
    %613 = vmatprep.subr.mxu0 0.0
    %614 = vmatpush1.msra.mxu0 0.0
    %615 = vmatprep.subr.mxu0 0.0
    %616 = vmatpush1.msra.mxu0 0.0
    %617 = vmatprep.subr.mxu0 0.0
    %618 = vmatpush1.msra.mxu0 0.0
    %619 = vmatprep.subr.mxu0 0.0
    %620 = vmatpush1.msra.mxu0 0.0
    %621 = vmatprep.subr.mxu0 0.0
    %622 = vmatpush1.msra.mxu0 0.0
    %623 = vmatprep.subr.mxu0 0.0
    %624 = vmatpush1.msra.mxu0 0.0
    %625 = vmatprep.subr.mxu0 0.0
    %626 = vmatpush1.msra.mxu0 0.0
    %627 = vmatprep.subr.mxu0 0.0
    %628 = vmatpush1.msra.mxu0 0.0
    %629 = vmatprep.subr.mxu0 0.0
    %630 = vmatpush1.msra.mxu0 0.0
    %631 = vmatprep.subr.mxu0 0.0
    %632 = vmatpush1.msra.mxu0 0.0
    %633 = vmatprep.subr.mxu0 0.0
    %634 = vmatpush1.msra.mxu0 0.0
    %635 = vmatprep.subr.mxu0 0.0
    %636 = vmatpush1.msra.mxu0 0.0
    %637 = vmatprep.subr.mxu0 0.0
    %638 = vmatpush1.msra.mxu0 0.0
    %639 = vmatprep.subr.mxu0 0.0
    %640 = vmatpush1.msra.mxu0 0.0
    %641 = vmatprep.subr.mxu0 0.0
    %642 = vmatpush1.msra.mxu0 0.0
    %643 = vmatprep.subr.mxu0 0.0
    %644 = vmatpush1.msra.mxu0 0.0
    %645 = vmatprep.subr.mxu0 0.0
    %646 = vmatpush1.msra.mxu0 0.0
    %647 = vmatprep.subr.mxu0 0.0
    %648 = vmatpush1.msra.mxu0 0.0
    %649 = vmatprep.subr.mxu0 0.0
    %650 = vmatpush1.msra.mxu0 0.0
    %651 = vmatprep.subr.mxu0 0.0
    %652 = vmatpush1.msra.mxu0 0.0
    %653 = vmatprep.subr.mxu0 0.0
    %654 = vmatpush1.msra.mxu0 0.0
    %655 = vmatprep.subr.mxu0 0.0
    %656 = vmatpush1.msra.mxu0 0.0
    %657 = vmatprep.mubr.f32.mxu0 0.0
    %658 = vmatmul.mubr.f32.gmra.mrb[0].mxu0 %v585
    %v659 = vpop.f32.mrb[0].mxu0
    %v660 = vadd.f32 0.0, %v659
    %v661 = vpop.f32.mrb[0].mxu0
    %662 = vmatprep.mubr.f32.mxu0 0.0
    %663 = vmatmul.mubr.f32.gmra.mrb[0].mxu0 %v588
    %v664 = vpop.f32.mrb[0].mxu0
    %v665 = vadd.f32 0.0, %v664
    %v666 = vpop.f32.mrb[0].mxu0
    %667 = vmatprep.mubr.f32.mxu0 0.0
    %668 = vmatmul.mubr.f32.gmra.mrb[0].mxu0 %v591
    %v669 = vpop.f32.mrb[0].mxu0
    %v670 = vadd.f32 0.0, %v669
    %v671 = vpop.f32.mrb[0].mxu0
    %672 = vdwg.mxu0
    %v673 = vadd.f32 %v573, %v660
    %v674 = vadd.f32 %v574, %v665
    %v675 = vadd.f32 %v575, %v670
    %v676 = vld [vmem:[%s0 + $0x6] sm:$0xff]
    %v677 = vld [vmem:[%s0 + $0xe] sm:$0xff]
    %v678 = vld [vmem:[%s0 + $0x16] sm:$0x3]
    %s679 = scalar_lea.vmem [#allocation4], 192
    %v680 = vld [vmem:[%s679] sm:$0xff]
    %v681 = vld [vmem:[%s679 + $0x8] sm:$0xff]
    %v682 = vld [vmem:[%s679 + $0x10] sm:$0xff]
    %v683 = vld [vmem:[%s679 + $0x18] sm:$0xff]
    %v685 = vsel %vm97, %v676, 0
    %v688 = vsel %vm97, %v677, 0
    %v691 = vsel %vm97, %v678, 0
    %693 = vmatprep.subr.mxu0 0.0
    %694 = vmatpush1.msra.mxu0 %v680
    %695 = vmatprep.subr.mxu0 0.0
    %696 = vmatpush1.msra.mxu0 %v681
    %697 = vmatprep.subr.mxu0 0.0
    %698 = vmatpush1.msra.mxu0 %v682
    %699 = vmatprep.subr.mxu0 0.0
    %700 = vmatpush1.msra.mxu0 %v683
    %701 = vmatprep.subr.mxu0 0.0
    %702 = vmatpush1.msra.mxu0 0.0
    %703 = vmatprep.subr.mxu0 0.0
    %704 = vmatpush1.msra.mxu0 0.0
    %705 = vmatprep.subr.mxu0 0.0
    %706 = vmatpush1.msra.mxu0 0.0
    %707 = vmatprep.subr.mxu0 0.0
    %708 = vmatpush1.msra.mxu0 0.0
    %709 = vmatprep.subr.mxu0 0.0
    %710 = vmatpush1.msra.mxu0 0.0
    %711 = vmatprep.subr.mxu0 0.0
    %712 = vmatpush1.msra.mxu0 0.0
    %713 = vmatprep.subr.mxu0 0.0
    %714 = vmatpush1.msra.mxu0 0.0
    %715 = vmatprep.subr.mxu0 0.0
    %716 = vmatpush1.msra.mxu0 0.0
    %717 = vmatprep.subr.mxu0 0.0
    %718 = vmatpush1.msra.mxu0 0.0
    %719 = vmatprep.subr.mxu0 0.0
    %720 = vmatpush1.msra.mxu0 0.0
    %721 = vmatprep.subr.mxu0 0.0
    %722 = vmatpush1.msra.mxu0 0.0
    %723 = vmatprep.subr.mxu0 0.0
    %724 = vmatpush1.msra.mxu0 0.0
    %725 = vmatprep.subr.mxu0 0.0
    %726 = vmatpush1.msra.mxu0 0.0
    %727 = vmatprep.subr.mxu0 0.0
    %728 = vmatpush1.msra.mxu0 0.0
    %729 = vmatprep.subr.mxu0 0.0
    %730 = vmatpush1.msra.mxu0 0.0
    %731 = vmatprep.subr.mxu0 0.0
    %732 = vmatpush1.msra.mxu0 0.0
    %733 = vmatprep.subr.mxu0 0.0
    %734 = vmatpush1.msra.mxu0 0.0
    %735 = vmatprep.subr.mxu0 0.0
    %736 = vmatpush1.msra.mxu0 0.0
    %737 = vmatprep.subr.mxu0 0.0
    %738 = vmatpush1.msra.mxu0 0.0
    %739 = vmatprep.subr.mxu0 0.0
    %740 = vmatpush1.msra.mxu0 0.0
    %741 = vmatprep.subr.mxu0 0.0
    %742 = vmatpush1.msra.mxu0 0.0
    %743 = vmatprep.subr.mxu0 0.0
    %744 = vmatpush1.msra.mxu0 0.0
    %745 = vmatprep.subr.mxu0 0.0
    %746 = vmatpush1.msra.mxu0 0.0
    %747 = vmatprep.subr.mxu0 0.0
    %748 = vmatpush1.msra.mxu0 0.0
    %749 = vmatprep.subr.mxu0 0.0
    %750 = vmatpush1.msra.mxu0 0.0
    %751 = vmatprep.subr.mxu0 0.0
    %752 = vmatpush1.msra.mxu0 0.0
    %753 = vmatprep.subr.mxu0 0.0
    %754 = vmatpush1.msra.mxu0 0.0
    %755 = vmatprep.subr.mxu0 0.0
    %756 = vmatpush1.msra.mxu0 0.0
    %757 = vmatprep.mubr.f32.mxu0 0.0
    %758 = vmatmul.mubr.f32.gmra.mrb[0].mxu0 %v685
    %v759 = vpop.f32.mrb[0].mxu0
    %v760 = vadd.f32 0.0, %v759
    %v761 = vpop.f32.mrb[0].mxu0
    %762 = vmatprep.mubr.f32.mxu0 0.0
    %763 = vmatmul.mubr.f32.gmra.mrb[0].mxu0 %v688
    %v764 = vpop.f32.mrb[0].mxu0
    %v765 = vadd.f32 0.0, %v764
    %v766 = vpop.f32.mrb[0].mxu0
    %767 = vmatprep.mubr.f32.mxu0 0.0
    %768 = vmatmul.mubr.f32.gmra.mrb[0].mxu0 %v691
    %v769 = vpop.f32.mrb[0].mxu0
    %v770 = vadd.f32 0.0, %v769
    %v771 = vpop.f32.mrb[0].mxu0
    %772 = vdwg.mxu0
    %v773 = vadd.f32 %v673, %v760
    %v774 = vadd.f32 %v674, %v765
    %v775 = vadd.f32 %v675, %v770
    %v776 = vld [vmem:[%s1 + $0x6] sm:$0xff]
    %v777 = vld [vmem:[%s1 + $0xe] sm:$0xff]
    %v778 = vld [vmem:[%s1 + $0x16] sm:$0x3]
    %s779 = scalar_lea.vmem [#allocation4], 224
    %v780 = vld [vmem:[%s779] sm:$0xff]
    %v781 = vld [vmem:[%s779 + $0x8] sm:$0xff]
    %v782 = vld [vmem:[%s779 + $0x10] sm:$0xff]
    %v783 = vld [vmem:[%s779 + $0x18] sm:$0xff]
    %v785 = vsel %vm97, %v776, 0
    %v788 = vsel %vm97, %v777, 0
    %v791 = vsel %vm97, %v778, 0
    %793 = vmatprep.subr.mxu0 0.0
    %794 = vmatpush1.msra.mxu0 %v780
    %795 = vmatprep.subr.mxu0 0.0
    %796 = vmatpush1.msra.mxu0 %v781
    %797 = vmatprep.subr.mxu0 0.0
    %798 = vmatpush1.msra.mxu0 %v782
    %799 = vmatprep.subr.mxu0 0.0
    %800 = vmatpush1.msra.mxu0 %v783
    %801 = vmatprep.subr.mxu0 0.0
    %802 = vmatpush1.msra.mxu0 0.0
    %803 = vmatprep.subr.mxu0 0.0
    %804 = vmatpush1.msra.mxu0 0.0
    %805 = vmatprep.subr.mxu0 0.0
    %806 = vmatpush1.msra.mxu0 0.0
    %807 = vmatprep.subr.mxu0 0.0
    %808 = vmatpush1.msra.mxu0 0.0
    %809 = vmatprep.subr.mxu0 0.0
    %810 = vmatpush1.msra.mxu0 0.0
    %811 = vmatprep.subr.mxu0 0.0
    %812 = vmatpush1.msra.mxu0 0.0
    %813 = vmatprep.subr.mxu0 0.0
    %814 = vmatpush1.msra.mxu0 0.0
    %815 = vmatprep.subr.mxu0 0.0
    %816 = vmatpush1.msra.mxu0 0.0
    %817 = vmatprep.subr.mxu0 0.0
    %818 = vmatpush1.msra.mxu0 0.0
    %819 = vmatprep.subr.mxu0 0.0
    %820 = vmatpush1.msra.mxu0 0.0
    %821 = vmatprep.subr.mxu0 0.0
    %822 = vmatpush1.msra.mxu0 0.0
    %823 = vmatprep.subr.mxu0 0.0
    %824 = vmatpush1.msra.mxu0 0.0
    %825 = vmatprep.subr.mxu0 0.0
    %826 = vmatpush1.msra.mxu0 0.0
    %827 = vmatprep.subr.mxu0 0.0
    %828 = vmatpush1.msra.mxu0 0.0
    %829 = vmatprep.subr.mxu0 0.0
    %830 = vmatpush1.msra.mxu0 0.0
    %831 = vmatprep.subr.mxu0 0.0
    %832 = vmatpush1.msra.mxu0 0.0
    %833 = vmatprep.subr.mxu0 0.0
    %834 = vmatpush1.msra.mxu0 0.0
    %835 = vmatprep.subr.mxu0 0.0
    %836 = vmatpush1.msra.mxu0 0.0
    %837 = vmatprep.subr.mxu0 0.0
    %838 = vmatpush1.msra.mxu0 0.0
    %839 = vmatprep.subr.mxu0 0.0
    %840 = vmatpush1.msra.mxu0 0.0
    %841 = vmatprep.subr.mxu0 0.0
    %842 = vmatpush1.msra.mxu0 0.0
    %843 = vmatprep.subr.mxu0 0.0
    %844 = vmatpush1.msra.mxu0 0.0
    %845 = vmatprep.subr.mxu0 0.0
    %846 = vmatpush1.msra.mxu0 0.0
    %847 = vmatprep.subr.mxu0 0.0
    %848 = vmatpush1.msra.mxu0 0.0
    %849 = vmatprep.subr.mxu0 0.0
    %850 = vmatpush1.msra.mxu0 0.0
    %851 = vmatprep.subr.mxu0 0.0
    %852 = vmatpush1.msra.mxu0 0.0
    %853 = vmatprep.subr.mxu0 0.0
    %854 = vmatpush1.msra.mxu0 0.0
    %855 = vmatprep.subr.mxu0 0.0
    %856 = vmatpush1.msra.mxu0 0.0
    %857 = vmatprep.mubr.f32.mxu0 0.0
    %858 = vmatmul.mubr.f32.gmra.mrb[0].mxu0 %v785
    %v859 = vpop.f32.mrb[0].mxu0
    %v860 = vadd.f32 0.0, %v859
    %v861 = vpop.f32.mrb[0].mxu0
    %862 = vmatprep.mubr.f32.mxu0 0.0
    %863 = vmatmul.mubr.f32.gmra.mrb[0].mxu0 %v788
    %v864 = vpop.f32.mrb[0].mxu0
    %v865 = vadd.f32 0.0, %v864
    %v866 = vpop.f32.mrb[0].mxu0
    %867 = vmatprep.mubr.f32.mxu0 0.0
    %868 = vmatmul.mubr.f32.gmra.mrb[0].mxu0 %v791
    %v869 = vpop.f32.mrb[0].mxu0
    %v870 = vadd.f32 0.0, %v869
    %v871 = vpop.f32.mrb[0].mxu0
    %872 = vdwg.mxu0
    %v873 = vadd.f32 %v773, %v860
    %v874 = vadd.f32 %v774, %v865
    %v875 = vadd.f32 %v775, %v870
    %v876 = vld [vmem:[%s0 + $0x8] sm:$0xff]
    %v877 = vld [vmem:[%s0 + $0x10] sm:$0xff]
    %v878 = vld [vmem:[%s0 + $0x18] sm:$0x3]
    %s879 = scalar_lea.vmem [#allocation4], 256
    %v880 = vld [vmem:[%s879] sm:$0xff]
    %v881 = vld [vmem:[%s879 + $0x8] sm:$0xff]
    %v882 = vld [vmem:[%s879 + $0x10] sm:$0xff]
    %v883 = vld [vmem:[%s879 + $0x18] sm:$0xff]
    %v885 = vsel %vm97, %v876, 0
    %v888 = vsel %vm97, %v877, 0
    %v891 = vsel %vm97, %v878, 0
    %893 = vmatprep.subr.mxu0 0.0
    %894 = vmatpush1.msra.mxu0 %v880
    %895 = vmatprep.subr.mxu0 0.0
    %896 = vmatpush1.msra.mxu0 %v881
    %897 = vmatprep.subr.mxu0 0.0
    %898 = vmatpush1.msra.mxu0 %v882
    %899 = vmatprep.subr.mxu0 0.0
    %900 = vmatpush1.msra.mxu0 %v883
    %901 = vmatprep.subr.mxu0 0.0
    %902 = vmatpush1.msra.mxu0 0.0
    %903 = vmatprep.subr.mxu0 0.0
    %904 = vmatpush1.msra.mxu0 0.0
    %905 = vmatprep.subr.mxu0 0.0
    %906 = vmatpush1.msra.mxu0 0.0
    %907 = vmatprep.subr.mxu0 0.0
    %908 = vmatpush1.msra.mxu0 0.0
    %909 = vmatprep.subr.mxu0 0.0
    %910 = vmatpush1.msra.mxu0 0.0
    %911 = vmatprep.subr.mxu0 0.0
    %912 = vmatpush1.msra.mxu0 0.0
    %913 = vmatprep.subr.mxu0 0.0
    %914 = vmatpush1.msra.mxu0 0.0
    %915 = vmatprep.subr.mxu0 0.0
    %916 = vmatpush1.msra.mxu0 0.0
    %917 = vmatprep.subr.mxu0 0.0
    %918 = vmatpush1.msra.mxu0 0.0
    %919 = vmatprep.subr.mxu0 0.0
    %920 = vmatpush1.msra.mxu0 0.0
    %921 = vmatprep.subr.mxu0 0.0
    %922 = vmatpush1.msra.mxu0 0.0
    %923 = vmatprep.subr.mxu0 0.0
    %924 = vmatpush1.msra.mxu0 0.0
    %925 = vmatprep.subr.mxu0 0.0
    %926 = vmatpush1.msra.mxu0 0.0
    %927 = vmatprep.subr.mxu0 0.0
    %928 = vmatpush1.msra.mxu0 0.0
    %929 = vmatprep.subr.mxu0 0.0
    %930 = vmatpush1.msra.mxu0 0.0
    %931 = vmatprep.subr.mxu0 0.0
    %932 = vmatpush1.msra.mxu0 0.0
    %933 = vmatprep.subr.mxu0 0.0
    %934 = vmatpush1.msra.mxu0 0.0
    %935 = vmatprep.subr.mxu0 0.0
    %936 = vmatpush1.msra.mxu0 0.0
    %937 = vmatprep.subr.mxu0 0.0
    %938 = vmatpush1.msra.mxu0 0.0
    %939 = vmatprep.subr.mxu0 0.0
    %940 = vmatpush1.msra.mxu0 0.0
    %941 = vmatprep.subr.mxu0 0.0
    %942 = vmatpush1.msra.mxu0 0.0
    %943 = vmatprep.subr.mxu0 0.0
    %944 = vmatpush1.msra.mxu0 0.0
    %945 = vmatprep.subr.mxu0 0.0
    %946 = vmatpush1.msra.mxu0 0.0
    %947 = vmatprep.subr.mxu0 0.0
    %948 = vmatpush1.msra.mxu0 0.0
    %949 = vmatprep.subr.mxu0 0.0
    %950 = vmatpush1.msra.mxu0 0.0
    %951 = vmatprep.subr.mxu0 0.0
    %952 = vmatpush1.msra.mxu0 0.0
    %953 = vmatprep.subr.mxu0 0.0
    %954 = vmatpush1.msra.mxu0 0.0
    %955 = vmatprep.subr.mxu0 0.0
    %956 = vmatpush1.msra.mxu0 0.0
    %957 = vmatprep.mubr.f32.mxu0 0.0
    %958 = vmatmul.mubr.f32.gmra.mrb[0].mxu0 %v885
    %v959 = vpop.f32.mrb[0].mxu0
    %v960 = vadd.f32 0.0, %v959
    %v961 = vpop.f32.mrb[0].mxu0
    %962 = vmatprep.mubr.f32.mxu0 0.0
    %963 = vmatmul.mubr.f32.gmra.mrb[0].mxu0 %v888
    %v964 = vpop.f32.mrb[0].mxu0
    %v965 = vadd.f32 0.0, %v964
    %v966 = vpop.f32.mrb[0].mxu0
    %967 = vmatprep.mubr.f32.mxu0 0.0
    %968 = vmatmul.mubr.f32.gmra.mrb[0].mxu0 %v891
    %v969 = vpop.f32.mrb[0].mxu0
    %v970 = vadd.f32 0.0, %v969
    %v971 = vpop.f32.mrb[0].mxu0
    %972 = vdwg.mxu0
    %v973 = vadd.f32 %v873, %v960
    %v974 = vadd.f32 %v874, %v965
    %v975 = vadd.f32 %v875, %v970
    %v976 = vld [vmem:[%s1 + $0x8] sm:$0xff]
    %v977 = vld [vmem:[%s1 + $0x10] sm:$0xff]
    %v978 = vld [vmem:[%s1 + $0x18] sm:$0x3]
    %s979 = scalar_lea.vmem [#allocation4], 288
    %v980 = vld [vmem:[%s979] sm:$0xff]
    %v981 = vld [vmem:[%s979 + $0x8] sm:$0xff]
    %v982 = vld [vmem:[%s979 + $0x10] sm:$0xff]
    %v983 = vld [vmem:[%s979 + $0x18] sm:$0xff]
    %v985 = vsel %vm97, %v976, 0
    %v988 = vsel %vm97, %v977, 0
    %v991 = vsel %vm97, %v978, 0
    %993 = vmatprep.subr.mxu0 0.0
    %994 = vmatpush1.msra.mxu0 %v980
    %995 = vmatprep.subr.mxu0 0.0
    %996 = vmatpush1.msra.mxu0 %v981
    %997 = vmatprep.subr.mxu0 0.0
    %998 = vmatpush1.msra.mxu0 %v982
    %999 = vmatprep.subr.mxu0 0.0
    %1000 = vmatpush1.msra.mxu0 %v983
    %1001 = vmatprep.subr.mxu0 0.0
    %1002 = vmatpush1.msra.mxu0 0.0
    %1003 = vmatprep.subr.mxu0 0.0
    %1004 = vmatpush1.msra.mxu0 0.0
    %1005 = vmatprep.subr.mxu0 0.0
    %1006 = vmatpush1.msra.mxu0 0.0
    %1007 = vmatprep.subr.mxu0 0.0
    %1008 = vmatpush1.msra.mxu0 0.0
    %1009 = vmatprep.subr.mxu0 0.0
    %1010 = vmatpush1.msra.mxu0 0.0
    %1011 = vmatprep.subr.mxu0 0.0
    %1012 = vmatpush1.msra.mxu0 0.0
    %1013 = vmatprep.subr.mxu0 0.0
    %1014 = vmatpush1.msra.mxu0 0.0
    %1015 = vmatprep.subr.mxu0 0.0
    %1016 = vmatpush1.msra.mxu0 0.0
    %1017 = vmatprep.subr.mxu0 0.0
    %1018 = vmatpush1.msra.mxu0 0.0
    %1019 = vmatprep.subr.mxu0 0.0
    %1020 = vmatpush1.msra.mxu0 0.0
    %1021 = vmatprep.subr.mxu0 0.0
    %1022 = vmatpush1.msra.mxu0 0.0
    %1023 = vmatprep.subr.mxu0 0.0
    %1024 = vmatpush1.msra.mxu0 0.0
    %1025 = vmatprep.subr.mxu0 0.0
    %1026 = vmatpush1.msra.mxu0 0.0
    %1027 = vmatprep.subr.mxu0 0.0
    %1028 = vmatpush1.msra.mxu0 0.0
    %1029 = vmatprep.subr.mxu0 0.0
    %1030 = vmatpush1.msra.mxu0 0.0
    %1031 = vmatprep.subr.mxu0 0.0
    %1032 = vmatpush1.msra.mxu0 0.0
    %1033 = vmatprep.subr.mxu0 0.0
    %1034 = vmatpush1.msra.mxu0 0.0
    %1035 = vmatprep.subr.mxu0 0.0
    %1036 = vmatpush1.msra.mxu0 0.0
    %1037 = vmatprep.subr.mxu0 0.0
    %1038 = vmatpush1.msra.mxu0 0.0
    %1039 = vmatprep.subr.mxu0 0.0
    %1040 = vmatpush1.msra.mxu0 0.0
    %1041 = vmatprep.subr.mxu0 0.0
    %1042 = vmatpush1.msra.mxu0 0.0
    %1043 = vmatprep.subr.mxu0 0.0
    %1044 = vmatpush1.msra.mxu0 0.0
    %1045 = vmatprep.subr.mxu0 0.0
    %1046 = vmatpush1.msra.mxu0 0.0
    %1047 = vmatprep.subr.mxu0 0.0
    %1048 = vmatpush1.msra.mxu0 0.0
    %1049 = vmatprep.subr.mxu0 0.0
    %1050 = vmatpush1.msra.mxu0 0.0
    %1051 = vmatprep.subr.mxu0 0.0
    %1052 = vmatpush1.msra.mxu0 0.0
    %1053 = vmatprep.subr.mxu0 0.0
    %1054 = vmatpush1.msra.mxu0 0.0
    %1055 = vmatprep.subr.mxu0 0.0
    %1056 = vmatpush1.msra.mxu0 0.0
    %1057 = vmatprep.mubr.f32.mxu0 0.0
    %1058 = vmatmul.mubr.f32.gmra.mrb[0].mxu0 %v985
    %v1059 = vpop.f32.mrb[0].mxu0
    %v1060 = vadd.f32 0.0, %v1059
    %v1061 = vpop.f32.mrb[0].mxu0
    %1062 = vmatprep.mubr.f32.mxu0 0.0
    %1063 = vmatmul.mubr.f32.gmra.mrb[0].mxu0 %v988
    %v1064 = vpop.f32.mrb[0].mxu0
    %v1065 = vadd.f32 0.0, %v1064
    %v1066 = vpop.f32.mrb[0].mxu0
    %1067 = vmatprep.mubr.f32.mxu0 0.0
    %1068 = vmatmul.mubr.f32.gmra.mrb[0].mxu0 %v991
    %v1069 = vpop.f32.mrb[0].mxu0
    %v1070 = vadd.f32 0.0, %v1069
    %v1071 = vpop.f32.mrb[0].mxu0
    %1072 = vdwg.mxu0
    %v1073 = vadd.f32 %v973, %v1060
    %v1074 = vadd.f32 %v974, %v1065
    %v1075 = vadd.f32 %v975, %v1070
    %v1076 = vld [vmem:[%s3] sm:$0x1]
    %v1078 = vlaneseq
    %v1079 = vshrl.u32 %v1078, 7
    %v1080 = vsub.s32 0, %v1079
    %v1081 = vrot.slane %v1076, %v1080
    %v1083 = vadd.f32 %v1073, %v1081
    %v1084 = vadd.f32 %v1074, %v1081
    %v1085 = vadd.f32 %v1075, %v1081
    %v1086 = vld [vmem:[%s4] sm:$0x1]
    %v1087 = vld [vmem:[%s5] sm:$0x1]
    %v1088 = vsel %vm97, %v1083, 0.0
    %1089 = vadd.xlane.f32.xlu0 %v1088
    %v1090 = vpop.xlane.xlu0 %1089
    %v1091 = vsel %vm97, %v1084, 0.0
    %1092 = vadd.xlane.f32.xlu0 %v1091
    %v1093 = vpop.xlane.xlu0 %1092
    %vm1094 = vcmask 254976
    %v1095 = vsel %vm1094, %v1085, 0.0
    %1096 = vadd.xlane.f32.xlu0 %v1095
    %v1097 = vpop.xlane.xlu0 %1096
    %v1098 = vrcp.pop 32.0
    %v1099 = vmul.f32 %v1090, %v1098
    %v1100 = vmul.f32 %v1093, %v1098
    %v1101 = vmul.f32 %v1097, %v1098
    %v1102 = vsub.f32 %v1083, %v1099
    %v1103 = vsub.f32 %v1084, %v1100
    %v1104 = vsub.f32 %v1085, %v1101
    %v1105 = vmul.f32 %v1102, %v1102
    %v1106 = vmul.f32 %v1103, %v1103
    %v1107 = vmul.f32 %v1104, %v1104
    %v1108 = vsel %vm97, %v1105, 0.0
    %1109 = vadd.xlane.f32.xlu0 %v1108
    %v1110 = vpop.xlane.xlu0 %1109
    %v1111 = vsel %vm97, %v1106, 0.0
    %1112 = vadd.xlane.f32.xlu0 %v1111
    %v1113 = vpop.xlane.xlu0 %1112
    %v1114 = vsel %vm1094, %v1107, 0.0
    %1115 = vadd.xlane.f32.xlu0 %v1114
    %v1116 = vpop.xlane.xlu0 %1115
    %v1117 = vmul.f32 %v1110, %v1098
    %v1118 = vmul.f32 %v1113, %v1098
    %v1119 = vmul.f32 %v1116, %v1098
    %v1120 = vadd.f32 %v1117, 1e-05
    %v1121 = vadd.f32 %v1118, 1e-05
    %v1122 = vadd.f32 %v1119, 1e-05
    %v1123 = vrsqrt.pop %v1120
    %v1124 = vrsqrt.pop %v1121
    %v1125 = vrsqrt.pop %v1122
    %v1126 = vmul.f32 %v1102, %v1123
    %v1127 = vmul.f32 %v1103, %v1124
    %v1128 = vmul.f32 %v1104, %v1125
    %v1130 = vlaneseq
    %v1131 = vshrl.u32 %v1130, 7
    %v1132 = vsub.s32 0, %v1131
    %v1133 = vrot.slane %v1086, %v1132
    %v1135 = vmul.f32 %v1126, %v1133
    %v1136 = vmul.f32 %v1127, %v1133
    %v1137 = vmul.f32 %v1128, %v1133
    %v1139 = vlaneseq
    %v1140 = vshrl.u32 %v1139, 7
    %v1141 = vsub.s32 0, %v1140
    %v1142 = vrot.slane %v1087, %v1141
    %v1144 = vadd.f32 %v1135, %v1142
    %v1145 = vadd.f32 %v1136, %v1142
    %v1146 = vadd.f32 %v1137, %v1142
    %v1147 = vmax.f32 %v1144, 0.0
    %v1148 = vmax.f32 %v1145, 0.0
    %v1149 = vmax.f32 %v1146, 0.0
    %v1150 = vld [vmem:[%s6] sm:$0xff]
    %v1151 = vld [vmem:[%s6 + $0x8] sm:$0xff]
    %v1152 = vld [vmem:[%s6 + $0x10] sm:$0xff]
    %v1153 = vld [vmem:[%s6 + $0x18] sm:$0xff]
    %v1154 = vld [vmem:[%s7] sm:$0x1]
    %v1156 = vlaneseq
    %v1157 = vshrl.u32 %v1156, 7
    %v1158 = vsub.s32 0, %v1157
    %v1159 = vrot.slane %v1154, %v1158
    %v1162 = vsel %vm97, %v1147, 0
    %v1165 = vsel %vm97, %v1148, 0
    %v1168 = vsel %vm97, %v1149, 0
    %1170 = vmatprep.subr.mxu0 0.0
    %1171 = vmatpush1.msra.mxu0 %v1150
    %1172 = vmatprep.subr.mxu0 0.0
    %1173 = vmatpush1.msra.mxu0 %v1151
    %1174 = vmatprep.subr.mxu0 0.0
    %1175 = vmatpush1.msra.mxu0 %v1152
    %1176 = vmatprep.subr.mxu0 0.0
    %1177 = vmatpush1.msra.mxu0 %v1153
    %1178 = vmatprep.subr.mxu0 0.0
    %1179 = vmatpush1.msra.mxu0 0.0
    %1180 = vmatprep.subr.mxu0 0.0
    %1181 = vmatpush1.msra.mxu0 0.0
    %1182 = vmatprep.subr.mxu0 0.0
    %1183 = vmatpush1.msra.mxu0 0.0
    %1184 = vmatprep.subr.mxu0 0.0
    %1185 = vmatpush1.msra.mxu0 0.0
    %1186 = vmatprep.subr.mxu0 0.0
    %1187 = vmatpush1.msra.mxu0 0.0
    %1188 = vmatprep.subr.mxu0 0.0
    %1189 = vmatpush1.msra.mxu0 0.0
    %1190 = vmatprep.subr.mxu0 0.0
    %1191 = vmatpush1.msra.mxu0 0.0
    %1192 = vmatprep.subr.mxu0 0.0
    %1193 = vmatpush1.msra.mxu0 0.0
    %1194 = vmatprep.subr.mxu0 0.0
    %1195 = vmatpush1.msra.mxu0 0.0
    %1196 = vmatprep.subr.mxu0 0.0
    %1197 = vmatpush1.msra.mxu0 0.0
    %1198 = vmatprep.subr.mxu0 0.0
    %1199 = vmatpush1.msra.mxu0 0.0
    %1200 = vmatprep.subr.mxu0 0.0
    %1201 = vmatpush1.msra.mxu0 0.0
    %1202 = vmatprep.subr.mxu0 0.0
    %1203 = vmatpush1.msra.mxu0 0.0
    %1204 = vmatprep.subr.mxu0 0.0
    %1205 = vmatpush1.msra.mxu0 0.0
    %1206 = vmatprep.subr.mxu0 0.0
    %1207 = vmatpush1.msra.mxu0 0.0
    %1208 = vmatprep.subr.mxu0 0.0
    %1209 = vmatpush1.msra.mxu0 0.0
    %1210 = vmatprep.subr.mxu0 0.0
    %1211 = vmatpush1.msra.mxu0 0.0
    %1212 = vmatprep.subr.mxu0 0.0
    %1213 = vmatpush1.msra.mxu0 0.0
    %1214 = vmatprep.subr.mxu0 0.0
    %1215 = vmatpush1.msra.mxu0 0.0
    %1216 = vmatprep.subr.mxu0 0.0
    %1217 = vmatpush1.msra.mxu0 0.0
    %1218 = vmatprep.subr.mxu0 0.0
    %1219 = vmatpush1.msra.mxu0 0.0
    %1220 = vmatprep.subr.mxu0 0.0
    %1221 = vmatpush1.msra.mxu0 0.0
    %1222 = vmatprep.subr.mxu0 0.0
    %1223 = vmatpush1.msra.mxu0 0.0
    %1224 = vmatprep.subr.mxu0 0.0
    %1225 = vmatpush1.msra.mxu0 0.0
    %1226 = vmatprep.subr.mxu0 0.0
    %1227 = vmatpush1.msra.mxu0 0.0
    %1228 = vmatprep.subr.mxu0 0.0
    %1229 = vmatpush1.msra.mxu0 0.0
    %1230 = vmatprep.subr.mxu0 0.0
    %1231 = vmatpush1.msra.mxu0 0.0
    %1232 = vmatprep.subr.mxu0 0.0
    %1233 = vmatpush1.msra.mxu0 0.0
    %1234 = vmatprep.mubr.f32.mxu0 0.0
    %1235 = vmatmul.mubr.f32.gmra.mrb[0].mxu0 %v1162
    %v1236 = vpop.f32.mrb[0].mxu0
    %v1237 = vadd.f32 %v1159, %v1236
    %v1238 = vpop.f32.mrb[0].mxu0
    %1239 = vmatprep.mubr.f32.mxu0 0.0
    %1240 = vmatmul.mubr.f32.gmra.mrb[0].mxu0 %v1165
    %v1241 = vpop.f32.mrb[0].mxu0
    %v1242 = vadd.f32 %v1159, %v1241
    %v1243 = vpop.f32.mrb[0].mxu0
    %1244 = vmatprep.mubr.f32.mxu0 0.0
    %1245 = vmatmul.mubr.f32.gmra.mrb[0].mxu0 %v1168
    %v1246 = vpop.f32.mrb[0].mxu0
    %v1247 = vadd.f32 %v1159, %v1246
    %v1248 = vpop.f32.mrb[0].mxu0
    %1249 = vdwg.mxu0
    %v1250 = vld [vmem:[%s8] sm:$0x1]
    %v1251 = vld [vmem:[%s9] sm:$0x1]
    %v1252 = vsel %vm97, %v1237, 0.0
    %1253 = vadd.xlane.f32.xlu0 %v1252
    %v1254 = vpop.xlane.xlu0 %1253
    %v1255 = vsel %vm97, %v1242, 0.0
    %1256 = vadd.xlane.f32.xlu0 %v1255
    %v1257 = vpop.xlane.xlu0 %1256
    %v1258 = vsel %vm1094, %v1247, 0.0
    %1259 = vadd.xlane.f32.xlu0 %v1258
    %v1260 = vpop.xlane.xlu0 %1259
    %v1261 = vmul.f32 %v1254, %v1098
    %v1262 = vmul.f32 %v1257, %v1098
    %v1263 = vmul.f32 %v1260, %v1098
    %v1264 = vsub.f32 %v1237, %v1261
    %v1265 = vsub.f32 %v1242, %v1262
    %v1266 = vsub.f32 %v1247, %v1263
    %v1267 = vmul.f32 %v1264, %v1264
    %v1268 = vmul.f32 %v1265, %v1265
    %v1269 = vmul.f32 %v1266, %v1266
    %v1270 = vsel %vm97, %v1267, 0.0
    %1271 = vadd.xlane.f32.xlu0 %v1270
    %v1272 = vpop.xlane.xlu0 %1271
    %v1273 = vsel %vm97, %v1268, 0.0
    %1274 = vadd.xlane.f32.xlu0 %v1273
    %v1275 = vpop.xlane.xlu0 %1274
    %v1276 = vsel %vm1094, %v1269, 0.0
    %1277 = vadd.xlane.f32.xlu0 %v1276
    %v1278 = vpop.xlane.xlu0 %1277
    %v1279 = vmul.f32 %v1272, %v1098
    %v1280 = vmul.f32 %v1275, %v1098
    %v1281 = vmul.f32 %v1278, %v1098
    %v1282 = vadd.f32 %v1279, 1e-05
    %v1283 = vadd.f32 %v1280, 1e-05
    %v1284 = vadd.f32 %v1281, 1e-05
    %v1285 = vrsqrt.pop %v1282
    %v1286 = vrsqrt.pop %v1283
    %v1287 = vrsqrt.pop %v1284
    %v1288 = vmul.f32 %v1264, %v1285
    %v1289 = vmul.f32 %v1265, %v1286
    %v1290 = vmul.f32 %v1266, %v1287
    %v1292 = vlaneseq
    %v1293 = vshrl.u32 %v1292, 7
    %v1294 = vsub.s32 0, %v1293
    %v1295 = vrot.slane %v1250, %v1294
    %v1297 = vmul.f32 %v1288, %v1295
    %v1298 = vmul.f32 %v1289, %v1295
    %v1299 = vmul.f32 %v1290, %v1295
    %v1301 = vlaneseq
    %v1302 = vshrl.u32 %v1301, 7
    %v1303 = vsub.s32 0, %v1302
    %v1304 = vrot.slane %v1251, %v1303
    %v1306 = vadd.f32 %v1297, %v1304
    %v1307 = vadd.f32 %v1298, %v1304
    %v1308 = vadd.f32 %v1299, %v1304
    %v1309 = vmax.f32 %v1306, 0.0
    %v1310 = vmax.f32 %v1307, 0.0
    %v1311 = vmax.f32 %v1308, 0.0
    %v1312 = vld [vmem:[%s10] sm:$0xff]
    %v1313 = vld [vmem:[%s10 + $0x8] sm:$0xff]
    %v1314 = vld [vmem:[%s10 + $0x10] sm:$0xff]
    %v1315 = vld [vmem:[%s10 + $0x18] sm:$0xff]
    %v1316 = vld [vmem:[%s11] sm:$0x1]
    %v1318 = vlaneseq
    %v1319 = vshrl.u32 %v1318, 7
    %v1320 = vsub.s32 0, %v1319
    %v1321 = vrot.slane %v1316, %v1320
    %v1324 = vsel %vm97, %v1309, 0
    %v1327 = vsel %vm97, %v1310, 0
    %v1330 = vsel %vm97, %v1311, 0
    %1332 = vmatprep.subr.mxu0 0.0
    %1333 = vmatpush1.msra.mxu0 %v1312
    %1334 = vmatprep.subr.mxu0 0.0
    %1335 = vmatpush1.msra.mxu0 %v1313
    %1336 = vmatprep.subr.mxu0 0.0
    %1337 = vmatpush1.msra.mxu0 %v1314
    %1338 = vmatprep.subr.mxu0 0.0
    %1339 = vmatpush1.msra.mxu0 %v1315
    %1340 = vmatprep.subr.mxu0 0.0
    %1341 = vmatpush1.msra.mxu0 0.0
    %1342 = vmatprep.subr.mxu0 0.0
    %1343 = vmatpush1.msra.mxu0 0.0
    %1344 = vmatprep.subr.mxu0 0.0
    %1345 = vmatpush1.msra.mxu0 0.0
    %1346 = vmatprep.subr.mxu0 0.0
    %1347 = vmatpush1.msra.mxu0 0.0
    %1348 = vmatprep.subr.mxu0 0.0
    %1349 = vmatpush1.msra.mxu0 0.0
    %1350 = vmatprep.subr.mxu0 0.0
    %1351 = vmatpush1.msra.mxu0 0.0
    %1352 = vmatprep.subr.mxu0 0.0
    %1353 = vmatpush1.msra.mxu0 0.0
    %1354 = vmatprep.subr.mxu0 0.0
    %1355 = vmatpush1.msra.mxu0 0.0
    %1356 = vmatprep.subr.mxu0 0.0
    %1357 = vmatpush1.msra.mxu0 0.0
    %1358 = vmatprep.subr.mxu0 0.0
    %1359 = vmatpush1.msra.mxu0 0.0
    %1360 = vmatprep.subr.mxu0 0.0
    %1361 = vmatpush1.msra.mxu0 0.0
    %1362 = vmatprep.subr.mxu0 0.0
    %1363 = vmatpush1.msra.mxu0 0.0
    %1364 = vmatprep.subr.mxu0 0.0
    %1365 = vmatpush1.msra.mxu0 0.0
    %1366 = vmatprep.subr.mxu0 0.0
    %1367 = vmatpush1.msra.mxu0 0.0
    %1368 = vmatprep.subr.mxu0 0.0
    %1369 = vmatpush1.msra.mxu0 0.0
    %1370 = vmatprep.subr.mxu0 0.0
    %1371 = vmatpush1.msra.mxu0 0.0
    %1372 = vmatprep.subr.mxu0 0.0
    %1373 = vmatpush1.msra.mxu0 0.0
    %1374 = vmatprep.subr.mxu0 0.0
    %1375 = vmatpush1.msra.mxu0 0.0
    %1376 = vmatprep.subr.mxu0 0.0
    %1377 = vmatpush1.msra.mxu0 0.0
    %1378 = vmatprep.subr.mxu0 0.0
    %1379 = vmatpush1.msra.mxu0 0.0
    %1380 = vmatprep.subr.mxu0 0.0
    %1381 = vmatpush1.msra.mxu0 0.0
    %1382 = vmatprep.subr.mxu0 0.0
    %1383 = vmatpush1.msra.mxu0 0.0
    %1384 = vmatprep.subr.mxu0 0.0
    %1385 = vmatpush1.msra.mxu0 0.0
    %1386 = vmatprep.subr.mxu0 0.0
    %1387 = vmatpush1.msra.mxu0 0.0
    %1388 = vmatprep.subr.mxu0 0.0
    %1389 = vmatpush1.msra.mxu0 0.0
    %1390 = vmatprep.subr.mxu0 0.0
    %1391 = vmatpush1.msra.mxu0 0.0
    %1392 = vmatprep.subr.mxu0 0.0
    %1393 = vmatpush1.msra.mxu0 0.0
    %1394 = vmatprep.subr.mxu0 0.0
    %1395 = vmatpush1.msra.mxu0 0.0
    %1396 = vmatprep.mubr.f32.mxu0 0.0
    %1397 = vmatmul.mubr.f32.gmra.mrb[0].mxu0 %v1324
    %v1398 = vpop.f32.mrb[0].mxu0
    %v1399 = vadd.f32 %v1321, %v1398
    %v1400 = vpop.f32.mrb[0].mxu0
    %1401 = vmatprep.mubr.f32.mxu0 0.0
    %1402 = vmatmul.mubr.f32.gmra.mrb[0].mxu0 %v1327
    %v1403 = vpop.f32.mrb[0].mxu0
    %v1404 = vadd.f32 %v1321, %v1403
    %v1405 = vpop.f32.mrb[0].mxu0
    %1406 = vmatprep.mubr.f32.mxu0 0.0
    %1407 = vmatmul.mubr.f32.gmra.mrb[0].mxu0 %v1330
    %v1408 = vpop.f32.mrb[0].mxu0
    %v1409 = vadd.f32 %v1321, %v1408
    %v1410 = vpop.f32.mrb[0].mxu0
    %1411 = vdwg.mxu0
    %v1412 = vld [vmem:[%s12] sm:$0x1]
    %v1413 = vld [vmem:[%s13] sm:$0x1]
    %v1414 = vsel %vm97, %v1399, 0.0
    %1415 = vadd.xlane.f32.xlu0 %v1414
    %v1416 = vpop.xlane.xlu0 %1415
    %v1417 = vsel %vm97, %v1404, 0.0
    %1418 = vadd.xlane.f32.xlu0 %v1417
    %v1419 = vpop.xlane.xlu0 %1418
    %v1420 = vsel %vm1094, %v1409, 0.0
    %1421 = vadd.xlane.f32.xlu0 %v1420
    %v1422 = vpop.xlane.xlu0 %1421
    %v1423 = vmul.f32 %v1416, %v1098
    %v1424 = vmul.f32 %v1419, %v1098
    %v1425 = vmul.f32 %v1422, %v1098
    %v1426 = vsub.f32 %v1399, %v1423
    %v1427 = vsub.f32 %v1404, %v1424
    %v1428 = vsub.f32 %v1409, %v1425
    %v1429 = vmul.f32 %v1426, %v1426
    %v1430 = vmul.f32 %v1427, %v1427
    %v1431 = vmul.f32 %v1428, %v1428
    %v1432 = vsel %vm97, %v1429, 0.0
    %1433 = vadd.xlane.f32.xlu0 %v1432
    %v1434 = vpop.xlane.xlu0 %1433
    %v1435 = vsel %vm97, %v1430, 0.0
    %1436 = vadd.xlane.f32.xlu0 %v1435
    %v1437 = vpop.xlane.xlu0 %1436
    %v1438 = vsel %vm1094, %v1431, 0.0
    %1439 = vadd.xlane.f32.xlu0 %v1438
    %v1440 = vpop.xlane.xlu0 %1439
    %v1441 = vmul.f32 %v1434, %v1098
    %v1442 = vmul.f32 %v1437, %v1098
    %v1443 = vmul.f32 %v1440, %v1098
    %v1444 = vadd.f32 %v1441, 1e-05
    %v1445 = vadd.f32 %v1442, 1e-05
    %v1446 = vadd.f32 %v1443, 1e-05
    %v1447 = vrsqrt.pop %v1444
    %v1448 = vrsqrt.pop %v1445
    %v1449 = vrsqrt.pop %v1446
    %v1450 = vmul.f32 %v1426, %v1447
    %v1451 = vmul.f32 %v1427, %v1448
    %v1452 = vmul.f32 %v1428, %v1449
    %v1454 = vlaneseq
    %v1455 = vshrl.u32 %v1454, 7
    %v1456 = vsub.s32 0, %v1455
    %v1457 = vrot.slane %v1412, %v1456
    %v1459 = vmul.f32 %v1450, %v1457
    %v1460 = vmul.f32 %v1451, %v1457
    %v1461 = vmul.f32 %v1452, %v1457
    %v1463 = vlaneseq
    %v1464 = vshrl.u32 %v1463, 7
    %v1465 = vsub.s32 0, %v1464
    %v1466 = vrot.slane %v1413, %v1465
    %v1468 = vadd.f32 %v1459, %v1466
    %v1469 = vadd.f32 %v1460, %v1466
    %v1470 = vadd.f32 %v1461, %v1466
    %v1471 = vmax.f32 %v1468, 0.0
    %v1472 = vmax.f32 %v1469, 0.0
    %v1473 = vmax.f32 %v1470, 0.0
    %v1474 = vld [vmem:[%s14] sm:$0xff]
    %v1475 = vld [vmem:[%s14 + $0x8] sm:$0xff]
    %v1476 = vld [vmem:[%s14 + $0x10] sm:$0xff]
    %v1477 = vld [vmem:[%s14 + $0x18] sm:$0xff]
    %v1478 = vld [vmem:[%s15] sm:$0x1]
    %v1480 = vlaneseq
    %v1481 = vshrl.u32 %v1480, 7
    %v1482 = vsub.s32 0, %v1481
    %v1483 = vrot.slane %v1478, %v1482
    %v1486 = vsel %vm97, %v1471, 0
    %v1489 = vsel %vm97, %v1472, 0
    %v1492 = vsel %vm97, %v1473, 0
    %1494 = vmatprep.subr.mxu0 0.0
    %1495 = vmatpush1.msra.mxu0 %v1474
    %1496 = vmatprep.subr.mxu0 0.0
    %1497 = vmatpush1.msra.mxu0 %v1475
    %1498 = vmatprep.subr.mxu0 0.0
    %1499 = vmatpush1.msra.mxu0 %v1476
    %1500 = vmatprep.subr.mxu0 0.0
    %1501 = vmatpush1.msra.mxu0 %v1477
    %1502 = vmatprep.subr.mxu0 0.0
    %1503 = vmatpush1.msra.mxu0 0.0
    %1504 = vmatprep.subr.mxu0 0.0
    %1505 = vmatpush1.msra.mxu0 0.0
    %1506 = vmatprep.subr.mxu0 0.0
    %1507 = vmatpush1.msra.mxu0 0.0
    %1508 = vmatprep.subr.mxu0 0.0
    %1509 = vmatpush1.msra.mxu0 0.0
    %1510 = vmatprep.subr.mxu0 0.0
    %1511 = vmatpush1.msra.mxu0 0.0
    %1512 = vmatprep.subr.mxu0 0.0
    %1513 = vmatpush1.msra.mxu0 0.0
    %1514 = vmatprep.subr.mxu0 0.0
    %1515 = vmatpush1.msra.mxu0 0.0
    %1516 = vmatprep.subr.mxu0 0.0
    %1517 = vmatpush1.msra.mxu0 0.0
    %1518 = vmatprep.subr.mxu0 0.0
    %1519 = vmatpush1.msra.mxu0 0.0
    %1520 = vmatprep.subr.mxu0 0.0
    %1521 = vmatpush1.msra.mxu0 0.0
    %1522 = vmatprep.subr.mxu0 0.0
    %1523 = vmatpush1.msra.mxu0 0.0
    %1524 = vmatprep.subr.mxu0 0.0
    %1525 = vmatpush1.msra.mxu0 0.0
    %1526 = vmatprep.subr.mxu0 0.0
    %1527 = vmatpush1.msra.mxu0 0.0
    %1528 = vmatprep.subr.mxu0 0.0
    %1529 = vmatpush1.msra.mxu0 0.0
    %1530 = vmatprep.subr.mxu0 0.0
    %1531 = vmatpush1.msra.mxu0 0.0
    %1532 = vmatprep.subr.mxu0 0.0
    %1533 = vmatpush1.msra.mxu0 0.0
    %1534 = vmatprep.subr.mxu0 0.0
    %1535 = vmatpush1.msra.mxu0 0.0
    %1536 = vmatprep.subr.mxu0 0.0
    %1537 = vmatpush1.msra.mxu0 0.0
    %1538 = vmatprep.subr.mxu0 0.0
    %1539 = vmatpush1.msra.mxu0 0.0
    %1540 = vmatprep.subr.mxu0 0.0
    %1541 = vmatpush1.msra.mxu0 0.0
    %1542 = vmatprep.subr.mxu0 0.0
    %1543 = vmatpush1.msra.mxu0 0.0
    %1544 = vmatprep.subr.mxu0 0.0
    %1545 = vmatpush1.msra.mxu0 0.0
    %1546 = vmatprep.subr.mxu0 0.0
    %1547 = vmatpush1.msra.mxu0 0.0
    %1548 = vmatprep.subr.mxu0 0.0
    %1549 = vmatpush1.msra.mxu0 0.0
    %1550 = vmatprep.subr.mxu0 0.0
    %1551 = vmatpush1.msra.mxu0 0.0
    %1552 = vmatprep.subr.mxu0 0.0
    %1553 = vmatpush1.msra.mxu0 0.0
    %1554 = vmatprep.subr.mxu0 0.0
    %1555 = vmatpush1.msra.mxu0 0.0
    %1556 = vmatprep.subr.mxu0 0.0
    %1557 = vmatpush1.msra.mxu0 0.0
    %1558 = vmatprep.mubr.f32.mxu0 0.0
    %1559 = vmatmul.mubr.f32.gmra.mrb[0].mxu0 %v1486
    %v1560 = vpop.f32.mrb[0].mxu0
    %v1561 = vadd.f32 %v1483, %v1560
    %v1562 = vpop.f32.mrb[0].mxu0
    %1563 = vmatprep.mubr.f32.mxu0 0.0
    %1564 = vmatmul.mubr.f32.gmra.mrb[0].mxu0 %v1489
    %v1565 = vpop.f32.mrb[0].mxu0
    %v1566 = vadd.f32 %v1483, %v1565
    %v1567 = vpop.f32.mrb[0].mxu0
    %1568 = vmatprep.mubr.f32.mxu0 0.0
    %1569 = vmatmul.mubr.f32.gmra.mrb[0].mxu0 %v1492
    %v1570 = vpop.f32.mrb[0].mxu0
    %v1571 = vadd.f32 %v1483, %v1570
    %v1572 = vpop.f32.mrb[0].mxu0
    %1573 = vdwg.mxu0
    %1574 = vst [vmem:[#allocation2] sm:$0xff] %v1561
    %1575 = vst [vmem:[#allocation2 + $0x8] sm:$0xff] %v1566
    %1576 = vst [vmem:[#allocation2 + $0x10] sm:$0x3] %v1571
    %v1577 = vld [vmem:[%s16] sm:$0xff]
    %v1578 = vld [vmem:[%s16 + $0x8] sm:$0xff]
    %v1579 = vld [vmem:[%s16 + $0x10] sm:$0xff]
    %v1580 = vld [vmem:[%s16 + $0x18] sm:$0xff]
    %v1581 = vld [vmem:[#allocation2] sm:$0x3]
    %v1583 = vsel %vm97, 0.0, 0
    %1585 = vmatprep.subr.mxu0 0.0
    %1586 = vmatpush1.msra.mxu0 %v1577
    %1587 = vmatprep.subr.mxu0 0.0
    %1588 = vmatpush1.msra.mxu0 %v1578
    %1589 = vmatprep.subr.mxu0 0.0
    %1590 = vmatpush1.msra.mxu0 %v1579
    %1591 = vmatprep.subr.mxu0 0.0
    %1592 = vmatpush1.msra.mxu0 %v1580
    %1593 = vmatprep.subr.mxu0 0.0
    %1594 = vmatpush1.msra.mxu0 0.0
    %1595 = vmatprep.subr.mxu0 0.0
    %1596 = vmatpush1.msra.mxu0 0.0
    %1597 = vmatprep.subr.mxu0 0.0
    %1598 = vmatpush1.msra.mxu0 0.0
    %1599 = vmatprep.subr.mxu0 0.0
    %1600 = vmatpush1.msra.mxu0 0.0
    %1601 = vmatprep.subr.mxu0 0.0
    %1602 = vmatpush1.msra.mxu0 0.0
    %1603 = vmatprep.subr.mxu0 0.0
    %1604 = vmatpush1.msra.mxu0 0.0
    %1605 = vmatprep.subr.mxu0 0.0
    %1606 = vmatpush1.msra.mxu0 0.0
    %1607 = vmatprep.subr.mxu0 0.0
    %1608 = vmatpush1.msra.mxu0 0.0
    %1609 = vmatprep.subr.mxu0 0.0
    %1610 = vmatpush1.msra.mxu0 0.0
    %1611 = vmatprep.subr.mxu0 0.0
    %1612 = vmatpush1.msra.mxu0 0.0
    %1613 = vmatprep.subr.mxu0 0.0
    %1614 = vmatpush1.msra.mxu0 0.0
    %1615 = vmatprep.subr.mxu0 0.0
    %1616 = vmatpush1.msra.mxu0 0.0
    %1617 = vmatprep.subr.mxu0 0.0
    %1618 = vmatpush1.msra.mxu0 0.0
    %1619 = vmatprep.subr.mxu0 0.0
    %1620 = vmatpush1.msra.mxu0 0.0
    %1621 = vmatprep.subr.mxu0 0.0
    %1622 = vmatpush1.msra.mxu0 0.0
    %1623 = vmatprep.subr.mxu0 0.0
    %1624 = vmatpush1.msra.mxu0 0.0
    %1625 = vmatprep.subr.mxu0 0.0
    %1626 = vmatpush1.msra.mxu0 0.0
    %1627 = vmatprep.subr.mxu0 0.0
    %1628 = vmatpush1.msra.mxu0 0.0
    %1629 = vmatprep.subr.mxu0 0.0
    %1630 = vmatpush1.msra.mxu0 0.0
    %1631 = vmatprep.subr.mxu0 0.0
    %1632 = vmatpush1.msra.mxu0 0.0
    %1633 = vmatprep.subr.mxu0 0.0
    %1634 = vmatpush1.msra.mxu0 0.0
    %1635 = vmatprep.subr.mxu0 0.0
    %1636 = vmatpush1.msra.mxu0 0.0
    %1637 = vmatprep.subr.mxu0 0.0
    %1638 = vmatpush1.msra.mxu0 0.0
    %1639 = vmatprep.subr.mxu0 0.0
    %1640 = vmatpush1.msra.mxu0 0.0
    %1641 = vmatprep.subr.mxu0 0.0
    %1642 = vmatpush1.msra.mxu0 0.0
    %1643 = vmatprep.subr.mxu0 0.0
    %1644 = vmatpush1.msra.mxu0 0.0
    %1645 = vmatprep.subr.mxu0 0.0
    %1646 = vmatpush1.msra.mxu0 0.0
    %1647 = vmatprep.subr.mxu0 0.0
    %1648 = vmatpush1.msra.mxu0 0.0
    %1649 = vmatprep.mubr.f32.mxu0 0.0
    %1650 = vmatmul.mubr.f32.gmra.mrb[0].mxu0 %v1583
    %v1651 = vpop.f32.mrb[0].mxu0
    %v1652 = vadd.f32 0.0, %v1651
    %v1653 = vpop.f32.mrb[0].mxu0
    %1654 = vdwg.mxu0
    %v1655 = vadd.f32 %v1581, %v1652
    %v1656 = vxor.u32 %v1655, 2147483648
    %v1657 = vmul.f32 %v1656, 1.442695
    %v1658 = vpow.pop %v1657
    %v1659 = vadd.f32 %v1658, 1.0
    %v1660 = vrcp.pop %v1659
    %v1661 = vmul.f32 1.0, %v1660
    %v1662 = vtanh.pop %v1655
    %v1663 = vmul.f32 %v1661, 0.0
    %1665 = vrot.lane.b32.xlu0 %v1662, 64
    %v1666 = vpop.permute.xlu0 %1665
    %v1668 = vmul.f32 %v1661, %v1666
    %1670 = vrot.lane.b32.xlu0 %v1668, 32
    %v1671 = vpop.permute.xlu0 %1670
    %v1673 = vadd.f32 %v1663, %v1671
    %v1674 = vtanh.pop %v1673
    %1676 = vrot.lane.b32.xlu0 %v1674, 64
    %v1677 = vpop.permute.xlu0 %1676
    %v1679 = vmul.f32 %v1661, %v1677
    %1681 = vrot.lane.b32.xlu0 %v1679, 32
    %v1682 = vpop.permute.xlu0 %1681
    %1684 = vst.msk [vmem:[#allocation3] sm:$0x3] %vm1094, %v1682
    %v1685 = vld [vmem:[#allocation2 + $0x2] sm:$0x3]
    %v1686 = vsel %vm97, %v1682, 0
    %1688 = vmatprep.subr.mxu0 0.0
    %1689 = vmatpush1.msra.mxu0 %v1577
    %1690 = vmatprep.subr.mxu0 0.0
    %1691 = vmatpush1.msra.mxu0 %v1578
    %1692 = vmatprep.subr.mxu0 0.0
    %1693 = vmatpush1.msra.mxu0 %v1579
    %1694 = vmatprep.subr.mxu0 0.0
    %1695 = vmatpush1.msra.mxu0 %v1580
    %1696 = vmatprep.subr.mxu0 0.0
    %1697 = vmatpush1.msra.mxu0 0.0
    %1698 = vmatprep.subr.mxu0 0.0
    %1699 = vmatpush1.msra.mxu0 0.0
    %1700 = vmatprep.subr.mxu0 0.0
    %1701 = vmatpush1.msra.mxu0 0.0
    %1702 = vmatprep.subr.mxu0 0.0
    %1703 = vmatpush1.msra.mxu0 0.0
    %1704 = vmatprep.subr.mxu0 0.0
    %1705 = vmatpush1.msra.mxu0 0.0
    %1706 = vmatprep.subr.mxu0 0.0
    %1707 = vmatpush1.msra.mxu0 0.0
    %1708 = vmatprep.subr.mxu0 0.0
    %1709 = vmatpush1.msra.mxu0 0.0
    %1710 = vmatprep.subr.mxu0 0.0
    %1711 = vmatpush1.msra.mxu0 0.0
    %1712 = vmatprep.subr.mxu0 0.0
    %1713 = vmatpush1.msra.mxu0 0.0
    %1714 = vmatprep.subr.mxu0 0.0
    %1715 = vmatpush1.msra.mxu0 0.0
    %1716 = vmatprep.subr.mxu0 0.0
    %1717 = vmatpush1.msra.mxu0 0.0
    %1718 = vmatprep.subr.mxu0 0.0
    %1719 = vmatpush1.msra.mxu0 0.0
    %1720 = vmatprep.subr.mxu0 0.0
    %1721 = vmatpush1.msra.mxu0 0.0
    %1722 = vmatprep.subr.mxu0 0.0
    %1723 = vmatpush1.msra.mxu0 0.0
    %1724 = vmatprep.subr.mxu0 0.0
    %1725 = vmatpush1.msra.mxu0 0.0
    %1726 = vmatprep.subr.mxu0 0.0
    %1727 = vmatpush1.msra.mxu0 0.0
    %1728 = vmatprep.subr.mxu0 0.0
    %1729 = vmatpush1.msra.mxu0 0.0
    %1730 = vmatprep.subr.mxu0 0.0
    %1731 = vmatpush1.msra.mxu0 0.0
    %1732 = vmatprep.subr.mxu0 0.0
    %1733 = vmatpush1.msra.mxu0 0.0
    %1734 = vmatprep.subr.mxu0 0.0
    %1735 = vmatpush1.msra.mxu0 0.0
    %1736 = vmatprep.subr.mxu0 0.0
    %1737 = vmatpush1.msra.mxu0 0.0
    %1738 = vmatprep.subr.mxu0 0.0
    %1739 = vmatpush1.msra.mxu0 0.0
    %1740 = vmatprep.subr.mxu0 0.0
    %1741 = vmatpush1.msra.mxu0 0.0
    %1742 = vmatprep.subr.mxu0 0.0
    %1743 = vmatpush1.msra.mxu0 0.0
    %1744 = vmatprep.subr.mxu0 0.0
    %1745 = vmatpush1.msra.mxu0 0.0
    %1746 = vmatprep.subr.mxu0 0.0
    %1747 = vmatpush1.msra.mxu0 0.0
    %1748 = vmatprep.subr.mxu0 0.0
    %1749 = vmatpush1.msra.mxu0 0.0
    %1750 = vmatprep.subr.mxu0 0.0
    %1751 = vmatpush1.msra.mxu0 0.0
    %1752 = vmatprep.mubr.f32.mxu0 0.0
    %1753 = vmatmul.mubr.f32.gmra.mrb[0].mxu0 %v1686
    %v1754 = vpop.f32.mrb[0].mxu0
    %v1755 = vadd.f32 0.0, %v1754
    %v1756 = vpop.f32.mrb[0].mxu0
    %1757 = vdwg.mxu0
    %v1758 = vadd.f32 %v1685, %v1755
    %v1759 = vxor.u32 %v1758, 2147483648
    %v1760 = vmul.f32 %v1759, 1.442695
    %v1761 = vpow.pop %v1760
    %v1762 = vadd.f32 %v1761, 1.0
    %v1763 = vrcp.pop %v1762
    %v1764 = vmul.f32 1.0, %v1763
    %v1765 = vtanh.pop %v1758
    %v1766 = vmul.f32 %v1764, %v1673
    %1768 = vrot.lane.b32.xlu0 %v1765, 64
    %v1769 = vpop.permute.xlu0 %1768
    %v1771 = vmul.f32 %v1764, %v1769
    %1773 = vrot.lane.b32.xlu0 %v1771, 32
    %v1774 = vpop.permute.xlu0 %1773
    %v1776 = vadd.f32 %v1766, %v1774
    %v1777 = vtanh.pop %v1776
    %1779 = vrot.lane.b32.xlu0 %v1777, 64
    %v1780 = vpop.permute.xlu0 %1779
    %v1782 = vmul.f32 %v1764, %v1780
    %1784 = vrot.lane.b32.xlu0 %v1782, 32
    %v1785 = vpop.permute.xlu0 %1784
    %1787 = vst.msk [vmem:[#allocation3 + $0x2] sm:$0x3] %vm1094, %v1785
    %v1788 = vld [vmem:[#allocation2 + $0x4] sm:$0x3]
    %v1789 = vsel %vm97, %v1785, 0
    %1791 = vmatprep.subr.mxu0 0.0
    %1792 = vmatpush1.msra.mxu0 %v1577
    %1793 = vmatprep.subr.mxu0 0.0
    %1794 = vmatpush1.msra.mxu0 %v1578
    %1795 = vmatprep.subr.mxu0 0.0
    %1796 = vmatpush1.msra.mxu0 %v1579
    %1797 = vmatprep.subr.mxu0 0.0
    %1798 = vmatpush1.msra.mxu0 %v1580
    %1799 = vmatprep.subr.mxu0 0.0
    %1800 = vmatpush1.msra.mxu0 0.0
    %1801 = vmatprep.subr.mxu0 0.0
    %1802 = vmatpush1.msra.mxu0 0.0
    %1803 = vmatprep.subr.mxu0 0.0
    %1804 = vmatpush1.msra.mxu0 0.0
    %1805 = vmatprep.subr.mxu0 0.0
    %1806 = vmatpush1.msra.mxu0 0.0
    %1807 = vmatprep.subr.mxu0 0.0
    %1808 = vmatpush1.msra.mxu0 0.0
    %1809 = vmatprep.subr.mxu0 0.0
    %1810 = vmatpush1.msra.mxu0 0.0
    %1811 = vmatprep.subr.mxu0 0.0
    %1812 = vmatpush1.msra.mxu0 0.0
    %1813 = vmatprep.subr.mxu0 0.0
    %1814 = vmatpush1.msra.mxu0 0.0
    %1815 = vmatprep.subr.mxu0 0.0
    %1816 = vmatpush1.msra.mxu0 0.0
    %1817 = vmatprep.subr.mxu0 0.0
    %1818 = vmatpush1.msra.mxu0 0.0
    %1819 = vmatprep.subr.mxu0 0.0
    %1820 = vmatpush1.msra.mxu0 0.0
    %1821 = vmatprep.subr.mxu0 0.0
    %1822 = vmatpush1.msra.mxu0 0.0
    %1823 = vmatprep.subr.mxu0 0.0
    %1824 = vmatpush1.msra.mxu0 0.0
    %1825 = vmatprep.subr.mxu0 0.0
    %1826 = vmatpush1.msra.mxu0 0.0
    %1827 = vmatprep.subr.mxu0 0.0
    %1828 = vmatpush1.msra.mxu0 0.0
    %1829 = vmatprep.subr.mxu0 0.0
    %1830 = vmatpush1.msra.mxu0 0.0
    %1831 = vmatprep.subr.mxu0 0.0
    %1832 = vmatpush1.msra.mxu0 0.0
    %1833 = vmatprep.subr.mxu0 0.0
    %1834 = vmatpush1.msra.mxu0 0.0
    %1835 = vmatprep.subr.mxu0 0.0
    %1836 = vmatpush1.msra.mxu0 0.0
    %1837 = vmatprep.subr.mxu0 0.0
    %1838 = vmatpush1.msra.mxu0 0.0
    %1839 = vmatprep.subr.mxu0 0.0
    %1840 = vmatpush1.msra.mxu0 0.0
    %1841 = vmatprep.subr.mxu0 0.0
    %1842 = vmatpush1.msra.mxu0 0.0
    %1843 = vmatprep.subr.mxu0 0.0
    %1844 = vmatpush1.msra.mxu0 0.0
    %1845 = vmatprep.subr.mxu0 0.0
    %1846 = vmatpush1.msra.mxu0 0.0
    %1847 = vmatprep.subr.mxu0 0.0
    %1848 = vmatpush1.msra.mxu0 0.0
    %1849 = vmatprep.subr.mxu0 0.0
    %1850 = vmatpush1.msra.mxu0 0.0
    %1851 = vmatprep.subr.mxu0 0.0
    %1852 = vmatpush1.msra.mxu0 0.0
    %1853 = vmatprep.subr.mxu0 0.0
    %1854 = vmatpush1.msra.mxu0 0.0
    %1855 = vmatprep.mubr.f32.mxu0 0.0
    %1856 = vmatmul.mubr.f32.gmra.mrb[0].mxu0 %v1789
    %v1857 = vpop.f32.mrb[0].mxu0
    %v1858 = vadd.f32 0.0, %v1857
    %v1859 = vpop.f32.mrb[0].mxu0
    %1860 = vdwg.mxu0
    %v1861 = vadd.f32 %v1788, %v1858
    %v1862 = vxor.u32 %v1861, 2147483648
    %v1863 = vmul.f32 %v1862, 1.442695
    %v1864 = vpow.pop %v1863
    %v1865 = vadd.f32 %v1864, 1.0
    %v1866 = vrcp.pop %v1865
    %v1867 = vmul.f32 1.0, %v1866
    %v1868 = vtanh.pop %v1861
    %v1869 = vmul.f32 %v1867, %v1776
    %1871 = vrot.lane.b32.xlu0 %v1868, 64
    %v1872 = vpop.permute.xlu0 %1871
    %v1874 = vmul.f32 %v1867, %v1872
    %1876 = vrot.lane.b32.xlu0 %v1874, 32
    %v1877 = vpop.permute.xlu0 %1876
    %v1879 = vadd.f32 %v1869, %v1877
    %v1880 = vtanh.pop %v1879
    %1882 = vrot.lane.b32.xlu0 %v1880, 64
    %v1883 = vpop.permute.xlu0 %1882
    %v1885 = vmul.f32 %v1867, %v1883
    %1887 = vrot.lane.b32.xlu0 %v1885, 32
    %v1888 = vpop.permute.xlu0 %1887
    %1890 = vst.msk [vmem:[#allocation3 + $0x4] sm:$0x3] %vm1094, %v1888
    %v1891 = vld [vmem:[#allocation2 + $0x6] sm:$0x3]
    %v1892 = vsel %vm97, %v1888, 0
    %1894 = vmatprep.subr.mxu0 0.0
    %1895 = vmatpush1.msra.mxu0 %v1577
    %1896 = vmatprep.subr.mxu0 0.0
    %1897 = vmatpush1.msra.mxu0 %v1578
    %1898 = vmatprep.subr.mxu0 0.0
    %1899 = vmatpush1.msra.mxu0 %v1579
    %1900 = vmatprep.subr.mxu0 0.0
    %1901 = vmatpush1.msra.mxu0 %v1580
    %1902 = vmatprep.subr.mxu0 0.0
    %1903 = vmatpush1.msra.mxu0 0.0
    %1904 = vmatprep.subr.mxu0 0.0
    %1905 = vmatpush1.msra.mxu0 0.0
    %1906 = vmatprep.subr.mxu0 0.0
    %1907 = vmatpush1.msra.mxu0 0.0
    %1908 = vmatprep.subr.mxu0 0.0
    %1909 = vmatpush1.msra.mxu0 0.0
    %1910 = vmatprep.subr.mxu0 0.0
    %1911 = vmatpush1.msra.mxu0 0.0
    %1912 = vmatprep.subr.mxu0 0.0
    %1913 = vmatpush1.msra.mxu0 0.0
    %1914 = vmatprep.subr.mxu0 0.0
    %1915 = vmatpush1.msra.mxu0 0.0
    %1916 = vmatprep.subr.mxu0 0.0
    %1917 = vmatpush1.msra.mxu0 0.0
    %1918 = vmatprep.subr.mxu0 0.0
    %1919 = vmatpush1.msra.mxu0 0.0
    %1920 = vmatprep.subr.mxu0 0.0
    %1921 = vmatpush1.msra.mxu0 0.0
    %1922 = vmatprep.subr.mxu0 0.0
    %1923 = vmatpush1.msra.mxu0 0.0
    %1924 = vmatprep.subr.mxu0 0.0
    %1925 = vmatpush1.msra.mxu0 0.0
    %1926 = vmatprep.subr.mxu0 0.0
    %1927 = vmatpush1.msra.mxu0 0.0
    %1928 = vmatprep.subr.mxu0 0.0
    %1929 = vmatpush1.msra.mxu0 0.0
    %1930 = vmatprep.subr.mxu0 0.0
    %1931 = vmatpush1.msra.mxu0 0.0
    %1932 = vmatprep.subr.mxu0 0.0
    %1933 = vmatpush1.msra.mxu0 0.0
    %1934 = vmatprep.subr.mxu0 0.0
    %1935 = vmatpush1.msra.mxu0 0.0
    %1936 = vmatprep.subr.mxu0 0.0
    %1937 = vmatpush1.msra.mxu0 0.0
    %1938 = vmatprep.subr.mxu0 0.0
    %1939 = vmatpush1.msra.mxu0 0.0
    %1940 = vmatprep.subr.mxu0 0.0
    %1941 = vmatpush1.msra.mxu0 0.0
    %1942 = vmatprep.subr.mxu0 0.0
    %1943 = vmatpush1.msra.mxu0 0.0
    %1944 = vmatprep.subr.mxu0 0.0
    %1945 = vmatpush1.msra.mxu0 0.0
    %1946 = vmatprep.subr.mxu0 0.0
    %1947 = vmatpush1.msra.mxu0 0.0
    %1948 = vmatprep.subr.mxu0 0.0
    %1949 = vmatpush1.msra.mxu0 0.0
    %1950 = vmatprep.subr.mxu0 0.0
    %1951 = vmatpush1.msra.mxu0 0.0
    %1952 = vmatprep.subr.mxu0 0.0
    %1953 = vmatpush1.msra.mxu0 0.0
    %1954 = vmatprep.subr.mxu0 0.0
    %1955 = vmatpush1.msra.mxu0 0.0
    %1956 = vmatprep.subr.mxu0 0.0
    %1957 = vmatpush1.msra.mxu0 0.0
    %1958 = vmatprep.mubr.f32.mxu0 0.0
    %1959 = vmatmul.mubr.f32.gmra.mrb[0].mxu0 %v1892
    %v1960 = vpop.f32.mrb[0].mxu0
    %v1961 = vadd.f32 0.0, %v1960
    %v1962 = vpop.f32.mrb[0].mxu0
    %1963 = vdwg.mxu0
    %v1964 = vadd.f32 %v1891, %v1961
    %v1965 = vxor.u32 %v1964, 2147483648
    %v1966 = vmul.f32 %v1965, 1.442695
    %v1967 = vpow.pop %v1966
    %v1968 = vadd.f32 %v1967, 1.0
    %v1969 = vrcp.pop %v1968
    %v1970 = vmul.f32 1.0, %v1969
    %v1971 = vtanh.pop %v1964
    %v1972 = vmul.f32 %v1970, %v1879
    %1974 = vrot.lane.b32.xlu0 %v1971, 64
    %v1975 = vpop.permute.xlu0 %1974
    %v1977 = vmul.f32 %v1970, %v1975
    %1979 = vrot.lane.b32.xlu0 %v1977, 32
    %v1980 = vpop.permute.xlu0 %1979
    %v1982 = vadd.f32 %v1972, %v1980
    %v1983 = vtanh.pop %v1982
    %1985 = vrot.lane.b32.xlu0 %v1983, 64
    %v1986 = vpop.permute.xlu0 %1985
    %v1988 = vmul.f32 %v1970, %v1986
    %1990 = vrot.lane.b32.xlu0 %v1988, 32
    %v1991 = vpop.permute.xlu0 %1990
    %1993 = vst.msk [vmem:[#allocation3 + $0x6] sm:$0x3] %vm1094, %v1991
    %v1994 = vld [vmem:[#allocation2 + $0x8] sm:$0x3]
    %v1995 = vsel %vm97, %v1991, 0
    %1997 = vmatprep.subr.mxu0 0.0
    %1998 = vmatpush1.msra.mxu0 %v1577
    %1999 = vmatprep.subr.mxu0 0.0
    %2000 = vmatpush1.msra.mxu0 %v1578
    %2001 = vmatprep.subr.mxu0 0.0
    %2002 = vmatpush1.msra.mxu0 %v1579
    %2003 = vmatprep.subr.mxu0 0.0
    %2004 = vmatpush1.msra.mxu0 %v1580
    %2005 = vmatprep.subr.mxu0 0.0
    %2006 = vmatpush1.msra.mxu0 0.0
    %2007 = vmatprep.subr.mxu0 0.0
    %2008 = vmatpush1.msra.mxu0 0.0
    %2009 = vmatprep.subr.mxu0 0.0
    %2010 = vmatpush1.msra.mxu0 0.0
    %2011 = vmatprep.subr.mxu0 0.0
    %2012 = vmatpush1.msra.mxu0 0.0
    %2013 = vmatprep.subr.mxu0 0.0
    %2014 = vmatpush1.msra.mxu0 0.0
    %2015 = vmatprep.subr.mxu0 0.0
    %2016 = vmatpush1.msra.mxu0 0.0
    %2017 = vmatprep.subr.mxu0 0.0
    %2018 = vmatpush1.msra.mxu0 0.0
    %2019 = vmatprep.subr.mxu0 0.0
    %2020 = vmatpush1.msra.mxu0 0.0
    %2021 = vmatprep.subr.mxu0 0.0
    %2022 = vmatpush1.msra.mxu0 0.0
    %2023 = vmatprep.subr.mxu0 0.0
    %2024 = vmatpush1.msra.mxu0 0.0
    %2025 = vmatprep.subr.mxu0 0.0
    %2026 = vmatpush1.msra.mxu0 0.0
    %2027 = vmatprep.subr.mxu0 0.0
    %2028 = vmatpush1.msra.mxu0 0.0
    %2029 = vmatprep.subr.mxu0 0.0
    %2030 = vmatpush1.msra.mxu0 0.0
    %2031 = vmatprep.subr.mxu0 0.0
    %2032 = vmatpush1.msra.mxu0 0.0
    %2033 = vmatprep.subr.mxu0 0.0
    %2034 = vmatpush1.msra.mxu0 0.0
    %2035 = vmatprep.subr.mxu0 0.0
    %2036 = vmatpush1.msra.mxu0 0.0
    %2037 = vmatprep.subr.mxu0 0.0
    %2038 = vmatpush1.msra.mxu0 0.0
    %2039 = vmatprep.subr.mxu0 0.0
    %2040 = vmatpush1.msra.mxu0 0.0
    %2041 = vmatprep.subr.mxu0 0.0
    %2042 = vmatpush1.msra.mxu0 0.0
    %2043 = vmatprep.subr.mxu0 0.0
    %2044 = vmatpush1.msra.mxu0 0.0
    %2045 = vmatprep.subr.mxu0 0.0
    %2046 = vmatpush1.msra.mxu0 0.0
    %2047 = vmatprep.subr.mxu0 0.0
    %2048 = vmatpush1.msra.mxu0 0.0
    %2049 = vmatprep.subr.mxu0 0.0
    %2050 = vmatpush1.msra.mxu0 0.0
    %2051 = vmatprep.subr.mxu0 0.0
    %2052 = vmatpush1.msra.mxu0 0.0
    %2053 = vmatprep.subr.mxu0 0.0
    %2054 = vmatpush1.msra.mxu0 0.0
    %2055 = vmatprep.subr.mxu0 0.0
    %2056 = vmatpush1.msra.mxu0 0.0
    %2057 = vmatprep.subr.mxu0 0.0
    %2058 = vmatpush1.msra.mxu0 0.0
    %2059 = vmatprep.subr.mxu0 0.0
    %2060 = vmatpush1.msra.mxu0 0.0
    %2061 = vmatprep.mubr.f32.mxu0 0.0
    %2062 = vmatmul.mubr.f32.gmra.mrb[0].mxu0 %v1995
    %v2063 = vpop.f32.mrb[0].mxu0
    %v2064 = vadd.f32 0.0, %v2063
    %v2065 = vpop.f32.mrb[0].mxu0
    %2066 = vdwg.mxu0
    %v2067 = vadd.f32 %v1994, %v2064
    %v2068 = vxor.u32 %v2067, 2147483648
    %v2069 = vmul.f32 %v2068, 1.442695
    %v2070 = vpow.pop %v2069
    %v2071 = vadd.f32 %v2070, 1.0
    %v2072 = vrcp.pop %v2071
    %v2073 = vmul.f32 1.0, %v2072
    %v2074 = vtanh.pop %v2067
    %v2075 = vmul.f32 %v2073, %v1982
    %2077 = vrot.lane.b32.xlu0 %v2074, 64
    %v2078 = vpop.permute.xlu0 %2077
    %v2080 = vmul.f32 %v2073, %v2078
    %2082 = vrot.lane.b32.xlu0 %v2080, 32
    %v2083 = vpop.permute.xlu0 %2082
    %v2085 = vadd.f32 %v2075, %v2083
    %v2086 = vtanh.pop %v2085
    %2088 = vrot.lane.b32.xlu0 %v2086, 64
    %v2089 = vpop.permute.xlu0 %2088
    %v2091 = vmul.f32 %v2073, %v2089
    %2093 = vrot.lane.b32.xlu0 %v2091, 32
    %v2094 = vpop.permute.xlu0 %2093
    %2096 = vst.msk [vmem:[#allocation3 + $0x8] sm:$0x3] %vm1094, %v2094
    %v2097 = vld [vmem:[#allocation2 + $0xa] sm:$0x3]
    %v2098 = vsel %vm97, %v2094, 0
    %2100 = vmatprep.subr.mxu0 0.0
    %2101 = vmatpush1.msra.mxu0 %v1577
    %2102 = vmatprep.subr.mxu0 0.0
    %2103 = vmatpush1.msra.mxu0 %v1578
    %2104 = vmatprep.subr.mxu0 0.0
    %2105 = vmatpush1.msra.mxu0 %v1579
    %2106 = vmatprep.subr.mxu0 0.0
    %2107 = vmatpush1.msra.mxu0 %v1580
    %2108 = vmatprep.subr.mxu0 0.0
    %2109 = vmatpush1.msra.mxu0 0.0
    %2110 = vmatprep.subr.mxu0 0.0
    %2111 = vmatpush1.msra.mxu0 0.0
    %2112 = vmatprep.subr.mxu0 0.0
    %2113 = vmatpush1.msra.mxu0 0.0
    %2114 = vmatprep.subr.mxu0 0.0
    %2115 = vmatpush1.msra.mxu0 0.0
    %2116 = vmatprep.subr.mxu0 0.0
    %2117 = vmatpush1.msra.mxu0 0.0
    %2118 = vmatprep.subr.mxu0 0.0
    %2119 = vmatpush1.msra.mxu0 0.0
    %2120 = vmatprep.subr.mxu0 0.0
    %2121 = vmatpush1.msra.mxu0 0.0
    %2122 = vmatprep.subr.mxu0 0.0
    %2123 = vmatpush1.msra.mxu0 0.0
    %2124 = vmatprep.subr.mxu0 0.0
    %2125 = vmatpush1.msra.mxu0 0.0
    %2126 = vmatprep.subr.mxu0 0.0
    %2127 = vmatpush1.msra.mxu0 0.0
    %2128 = vmatprep.subr.mxu0 0.0
    %2129 = vmatpush1.msra.mxu0 0.0
    %2130 = vmatprep.subr.mxu0 0.0
    %2131 = vmatpush1.msra.mxu0 0.0
    %2132 = vmatprep.subr.mxu0 0.0
    %2133 = vmatpush1.msra.mxu0 0.0
    %2134 = vmatprep.subr.mxu0 0.0
    %2135 = vmatpush1.msra.mxu0 0.0
    %2136 = vmatprep.subr.mxu0 0.0
    %2137 = vmatpush1.msra.mxu0 0.0
    %2138 = vmatprep.subr.mxu0 0.0
    %2139 = vmatpush1.msra.mxu0 0.0
    %2140 = vmatprep.subr.mxu0 0.0
    %2141 = vmatpush1.msra.mxu0 0.0
    %2142 = vmatprep.subr.mxu0 0.0
    %2143 = vmatpush1.msra.mxu0 0.0
    %2144 = vmatprep.subr.mxu0 0.0
    %2145 = vmatpush1.msra.mxu0 0.0
    %2146 = vmatprep.subr.mxu0 0.0
    %2147 = vmatpush1.msra.mxu0 0.0
    %2148 = vmatprep.subr.mxu0 0.0
    %2149 = vmatpush1.msra.mxu0 0.0
    %2150 = vmatprep.subr.mxu0 0.0
    %2151 = vmatpush1.msra.mxu0 0.0
    %2152 = vmatprep.subr.mxu0 0.0
    %2153 = vmatpush1.msra.mxu0 0.0
    %2154 = vmatprep.subr.mxu0 0.0
    %2155 = vmatpush1.msra.mxu0 0.0
    %2156 = vmatprep.subr.mxu0 0.0
    %2157 = vmatpush1.msra.mxu0 0.0
    %2158 = vmatprep.subr.mxu0 0.0
    %2159 = vmatpush1.msra.mxu0 0.0
    %2160 = vmatprep.subr.mxu0 0.0
    %2161 = vmatpush1.msra.mxu0 0.0
    %2162 = vmatprep.subr.mxu0 0.0
    %2163 = vmatpush1.msra.mxu0 0.0
    %2164 = vmatprep.mubr.f32.mxu0 0.0
    %2165 = vmatmul.mubr.f32.gmra.mrb[0].mxu0 %v2098
    %v2166 = vpop.f32.mrb[0].mxu0
    %v2167 = vadd.f32 0.0, %v2166
    %v2168 = vpop.f32.mrb[0].mxu0
    %2169 = vdwg.mxu0
    %v2170 = vadd.f32 %v2097, %v2167
    %v2171 = vxor.u32 %v2170, 2147483648
    %v2172 = vmul.f32 %v2171, 1.442695
    %v2173 = vpow.pop %v2172
    %v2174 = vadd.f32 %v2173, 1.0
    %v2175 = vrcp.pop %v2174
    %v2176 = vmul.f32 1.0, %v2175
    %v2177 = vtanh.pop %v2170
    %v2178 = vmul.f32 %v2176, %v2085
    %2180 = vrot.lane.b32.xlu0 %v2177, 64
    %v2181 = vpop.permute.xlu0 %2180
    %v2183 = vmul.f32 %v2176, %v2181
    %2185 = vrot.lane.b32.xlu0 %v2183, 32
    %v2186 = vpop.permute.xlu0 %2185
    %v2188 = vadd.f32 %v2178, %v2186
    %v2189 = vtanh.pop %v2188
    %2191 = vrot.lane.b32.xlu0 %v2189, 64
    %v2192 = vpop.permute.xlu0 %2191
    %v2194 = vmul.f32 %v2176, %v2192
    %2196 = vrot.lane.b32.xlu0 %v2194, 32
    %v2197 = vpop.permute.xlu0 %2196
    %2199 = vst.msk [vmem:[#allocation3 + $0xa] sm:$0x3] %vm1094, %v2197
    %v2200 = vld [vmem:[#allocation2 + $0xc] sm:$0x3]
    %v2201 = vsel %vm97, %v2197, 0
    %2203 = vmatprep.subr.mxu0 0.0
    %2204 = vmatpush1.msra.mxu0 %v1577
    %2205 = vmatprep.subr.mxu0 0.0
    %2206 = vmatpush1.msra.mxu0 %v1578
    %2207 = vmatprep.subr.mxu0 0.0
    %2208 = vmatpush1.msra.mxu0 %v1579
    %2209 = vmatprep.subr.mxu0 0.0
    %2210 = vmatpush1.msra.mxu0 %v1580
    %2211 = vmatprep.subr.mxu0 0.0
    %2212 = vmatpush1.msra.mxu0 0.0
    %2213 = vmatprep.subr.mxu0 0.0
    %2214 = vmatpush1.msra.mxu0 0.0
    %2215 = vmatprep.subr.mxu0 0.0
    %2216 = vmatpush1.msra.mxu0 0.0
    %2217 = vmatprep.subr.mxu0 0.0
    %2218 = vmatpush1.msra.mxu0 0.0
    %2219 = vmatprep.subr.mxu0 0.0
    %2220 = vmatpush1.msra.mxu0 0.0
    %2221 = vmatprep.subr.mxu0 0.0
    %2222 = vmatpush1.msra.mxu0 0.0
    %2223 = vmatprep.subr.mxu0 0.0
    %2224 = vmatpush1.msra.mxu0 0.0
    %2225 = vmatprep.subr.mxu0 0.0
    %2226 = vmatpush1.msra.mxu0 0.0
    %2227 = vmatprep.subr.mxu0 0.0
    %2228 = vmatpush1.msra.mxu0 0.0
    %2229 = vmatprep.subr.mxu0 0.0
    %2230 = vmatpush1.msra.mxu0 0.0
    %2231 = vmatprep.subr.mxu0 0.0
    %2232 = vmatpush1.msra.mxu0 0.0
    %2233 = vmatprep.subr.mxu0 0.0
    %2234 = vmatpush1.msra.mxu0 0.0
    %2235 = vmatprep.subr.mxu0 0.0
    %2236 = vmatpush1.msra.mxu0 0.0
    %2237 = vmatprep.subr.mxu0 0.0
    %2238 = vmatpush1.msra.mxu0 0.0
    %2239 = vmatprep.subr.mxu0 0.0
    %2240 = vmatpush1.msra.mxu0 0.0
    %2241 = vmatprep.subr.mxu0 0.0
    %2242 = vmatpush1.msra.mxu0 0.0
    %2243 = vmatprep.subr.mxu0 0.0
    %2244 = vmatpush1.msra.mxu0 0.0
    %2245 = vmatprep.subr.mxu0 0.0
    %2246 = vmatpush1.msra.mxu0 0.0
    %2247 = vmatprep.subr.mxu0 0.0
    %2248 = vmatpush1.msra.mxu0 0.0
    %2249 = vmatprep.subr.mxu0 0.0
    %2250 = vmatpush1.msra.mxu0 0.0
    %2251 = vmatprep.subr.mxu0 0.0
    %2252 = vmatpush1.msra.mxu0 0.0
    %2253 = vmatprep.subr.mxu0 0.0
    %2254 = vmatpush1.msra.mxu0 0.0
    %2255 = vmatprep.subr.mxu0 0.0
    %2256 = vmatpush1.msra.mxu0 0.0
    %2257 = vmatprep.subr.mxu0 0.0
    %2258 = vmatpush1.msra.mxu0 0.0
    %2259 = vmatprep.subr.mxu0 0.0
    %2260 = vmatpush1.msra.mxu0 0.0
    %2261 = vmatprep.subr.mxu0 0.0
    %2262 = vmatpush1.msra.mxu0 0.0
    %2263 = vmatprep.subr.mxu0 0.0
    %2264 = vmatpush1.msra.mxu0 0.0
    %2265 = vmatprep.subr.mxu0 0.0
    %2266 = vmatpush1.msra.mxu0 0.0
    %2267 = vmatprep.mubr.f32.mxu0 0.0
    %2268 = vmatmul.mubr.f32.gmra.mrb[0].mxu0 %v2201
    %v2269 = vpop.f32.mrb[0].mxu0
    %v2270 = vadd.f32 0.0, %v2269
    %v2271 = vpop.f32.mrb[0].mxu0
    %2272 = vdwg.mxu0
    %v2273 = vadd.f32 %v2200, %v2270
    %v2274 = vxor.u32 %v2273, 2147483648
    %v2275 = vmul.f32 %v2274, 1.442695
    %v2276 = vpow.pop %v2275
    %v2277 = vadd.f32 %v2276, 1.0
    %v2278 = vrcp.pop %v2277
    %v2279 = vmul.f32 1.0, %v2278
    %v2280 = vtanh.pop %v2273
    %v2281 = vmul.f32 %v2279, %v2188
    %2283 = vrot.lane.b32.xlu0 %v2280, 64
    %v2284 = vpop.permute.xlu0 %2283
    %v2286 = vmul.f32 %v2279, %v2284
    %2288 = vrot.lane.b32.xlu0 %v2286, 32
    %v2289 = vpop.permute.xlu0 %2288
    %v2291 = vadd.f32 %v2281, %v2289
    %v2292 = vtanh.pop %v2291
    %2294 = vrot.lane.b32.xlu0 %v2292, 64
    %v2295 = vpop.permute.xlu0 %2294
    %v2297 = vmul.f32 %v2279, %v2295
    %2299 = vrot.lane.b32.xlu0 %v2297, 32
    %v2300 = vpop.permute.xlu0 %2299
    %2302 = vst.msk [vmem:[#allocation3 + $0xc] sm:$0x3] %vm1094, %v2300
    %v2303 = vld [vmem:[#allocation2 + $0xe] sm:$0x3]
    %v2304 = vsel %vm97, %v2300, 0
    %2306 = vmatprep.subr.mxu0 0.0
    %2307 = vmatpush1.msra.mxu0 %v1577
    %2308 = vmatprep.subr.mxu0 0.0
    %2309 = vmatpush1.msra.mxu0 %v1578
    %2310 = vmatprep.subr.mxu0 0.0
    %2311 = vmatpush1.msra.mxu0 %v1579
    %2312 = vmatprep.subr.mxu0 0.0
    %2313 = vmatpush1.msra.mxu0 %v1580
    %2314 = vmatprep.subr.mxu0 0.0
    %2315 = vmatpush1.msra.mxu0 0.0
    %2316 = vmatprep.subr.mxu0 0.0
    %2317 = vmatpush1.msra.mxu0 0.0
    %2318 = vmatprep.subr.mxu0 0.0
    %2319 = vmatpush1.msra.mxu0 0.0
    %2320 = vmatprep.subr.mxu0 0.0
    %2321 = vmatpush1.msra.mxu0 0.0
    %2322 = vmatprep.subr.mxu0 0.0
    %2323 = vmatpush1.msra.mxu0 0.0
    %2324 = vmatprep.subr.mxu0 0.0
    %2325 = vmatpush1.msra.mxu0 0.0
    %2326 = vmatprep.subr.mxu0 0.0
    %2327 = vmatpush1.msra.mxu0 0.0
    %2328 = vmatprep.subr.mxu0 0.0
    %2329 = vmatpush1.msra.mxu0 0.0
    %2330 = vmatprep.subr.mxu0 0.0
    %2331 = vmatpush1.msra.mxu0 0.0
    %2332 = vmatprep.subr.mxu0 0.0
    %2333 = vmatpush1.msra.mxu0 0.0
    %2334 = vmatprep.subr.mxu0 0.0
    %2335 = vmatpush1.msra.mxu0 0.0
    %2336 = vmatprep.subr.mxu0 0.0
    %2337 = vmatpush1.msra.mxu0 0.0
    %2338 = vmatprep.subr.mxu0 0.0
    %2339 = vmatpush1.msra.mxu0 0.0
    %2340 = vmatprep.subr.mxu0 0.0
    %2341 = vmatpush1.msra.mxu0 0.0
    %2342 = vmatprep.subr.mxu0 0.0
    %2343 = vmatpush1.msra.mxu0 0.0
    %2344 = vmatprep.subr.mxu0 0.0
    %2345 = vmatpush1.msra.mxu0 0.0
    %2346 = vmatprep.subr.mxu0 0.0
    %2347 = vmatpush1.msra.mxu0 0.0
    %2348 = vmatprep.subr.mxu0 0.0
    %2349 = vmatpush1.msra.mxu0 0.0
    %2350 = vmatprep.subr.mxu0 0.0
    %2351 = vmatpush1.msra.mxu0 0.0
    %2352 = vmatprep.subr.mxu0 0.0
    %2353 = vmatpush1.msra.mxu0 0.0
    %2354 = vmatprep.subr.mxu0 0.0
    %2355 = vmatpush1.msra.mxu0 0.0
    %2356 = vmatprep.subr.mxu0 0.0
    %2357 = vmatpush1.msra.mxu0 0.0
    %2358 = vmatprep.subr.mxu0 0.0
    %2359 = vmatpush1.msra.mxu0 0.0
    %2360 = vmatprep.subr.mxu0 0.0
    %2361 = vmatpush1.msra.mxu0 0.0
    %2362 = vmatprep.subr.mxu0 0.0
    %2363 = vmatpush1.msra.mxu0 0.0
    %2364 = vmatprep.subr.mxu0 0.0
    %2365 = vmatpush1.msra.mxu0 0.0
    %2366 = vmatprep.subr.mxu0 0.0
    %2367 = vmatpush1.msra.mxu0 0.0
    %2368 = vmatprep.subr.mxu0 0.0
    %2369 = vmatpush1.msra.mxu0 0.0
    %2370 = vmatprep.mubr.f32.mxu0 0.0
    %2371 = vmatmul.mubr.f32.gmra.mrb[0].mxu0 %v2304
    %v2372 = vpop.f32.mrb[0].mxu0
    %v2373 = vadd.f32 0.0, %v2372
    %v2374 = vpop.f32.mrb[0].mxu0
    %2375 = vdwg.mxu0
    %v2376 = vadd.f32 %v2303, %v2373
    %v2377 = vxor.u32 %v2376, 2147483648
    %v2378 = vmul.f32 %v2377, 1.442695
    %v2379 = vpow.pop %v2378
    %v2380 = vadd.f32 %v2379, 1.0
    %v2381 = vrcp.pop %v2380
    %v2382 = vmul.f32 1.0, %v2381
    %v2383 = vtanh.pop %v2376
    %v2384 = vmul.f32 %v2382, %v2291
    %2386 = vrot.lane.b32.xlu0 %v2383, 64
    %v2387 = vpop.permute.xlu0 %2386
    %v2389 = vmul.f32 %v2382, %v2387
    %2391 = vrot.lane.b32.xlu0 %v2389, 32
    %v2392 = vpop.permute.xlu0 %2391
    %v2394 = vadd.f32 %v2384, %v2392
    %v2395 = vtanh.pop %v2394
    %2397 = vrot.lane.b32.xlu0 %v2395, 64
    %v2398 = vpop.permute.xlu0 %2397
    %v2400 = vmul.f32 %v2382, %v2398
    %2402 = vrot.lane.b32.xlu0 %v2400, 32
    %v2403 = vpop.permute.xlu0 %2402
    %2405 = vst.msk [vmem:[#allocation3 + $0xe] sm:$0x3] %vm1094, %v2403
    %v2406 = vld [vmem:[#allocation2 + $0x10] sm:$0x3]
    %v2407 = vsel %vm97, %v2403, 0
    %2409 = vmatprep.subr.mxu0 0.0
    %2410 = vmatpush1.msra.mxu0 %v1577
    %2411 = vmatprep.subr.mxu0 0.0
    %2412 = vmatpush1.msra.mxu0 %v1578
    %2413 = vmatprep.subr.mxu0 0.0
    %2414 = vmatpush1.msra.mxu0 %v1579
    %2415 = vmatprep.subr.mxu0 0.0
    %2416 = vmatpush1.msra.mxu0 %v1580
    %2417 = vmatprep.subr.mxu0 0.0
    %2418 = vmatpush1.msra.mxu0 0.0
    %2419 = vmatprep.subr.mxu0 0.0
    %2420 = vmatpush1.msra.mxu0 0.0
    %2421 = vmatprep.subr.mxu0 0.0
    %2422 = vmatpush1.msra.mxu0 0.0
    %2423 = vmatprep.subr.mxu0 0.0
    %2424 = vmatpush1.msra.mxu0 0.0
    %2425 = vmatprep.subr.mxu0 0.0
    %2426 = vmatpush1.msra.mxu0 0.0
    %2427 = vmatprep.subr.mxu0 0.0
    %2428 = vmatpush1.msra.mxu0 0.0
    %2429 = vmatprep.subr.mxu0 0.0
    %2430 = vmatpush1.msra.mxu0 0.0
    %2431 = vmatprep.subr.mxu0 0.0
    %2432 = vmatpush1.msra.mxu0 0.0
    %2433 = vmatprep.subr.mxu0 0.0
    %2434 = vmatpush1.msra.mxu0 0.0
    %2435 = vmatprep.subr.mxu0 0.0
    %2436 = vmatpush1.msra.mxu0 0.0
    %2437 = vmatprep.subr.mxu0 0.0
    %2438 = vmatpush1.msra.mxu0 0.0
    %2439 = vmatprep.subr.mxu0 0.0
    %2440 = vmatpush1.msra.mxu0 0.0
    %2441 = vmatprep.subr.mxu0 0.0
    %2442 = vmatpush1.msra.mxu0 0.0
    %2443 = vmatprep.subr.mxu0 0.0
    %2444 = vmatpush1.msra.mxu0 0.0
    %2445 = vmatprep.subr.mxu0 0.0
    %2446 = vmatpush1.msra.mxu0 0.0
    %2447 = vmatprep.subr.mxu0 0.0
    %2448 = vmatpush1.msra.mxu0 0.0
    %2449 = vmatprep.subr.mxu0 0.0
    %2450 = vmatpush1.msra.mxu0 0.0
    %2451 = vmatprep.subr.mxu0 0.0
    %2452 = vmatpush1.msra.mxu0 0.0
    %2453 = vmatprep.subr.mxu0 0.0
    %2454 = vmatpush1.msra.mxu0 0.0
    %2455 = vmatprep.subr.mxu0 0.0
    %2456 = vmatpush1.msra.mxu0 0.0
    %2457 = vmatprep.subr.mxu0 0.0
    %2458 = vmatpush1.msra.mxu0 0.0
    %2459 = vmatprep.subr.mxu0 0.0
    %2460 = vmatpush1.msra.mxu0 0.0
    %2461 = vmatprep.subr.mxu0 0.0
    %2462 = vmatpush1.msra.mxu0 0.0
    %2463 = vmatprep.subr.mxu0 0.0
    %2464 = vmatpush1.msra.mxu0 0.0
    %2465 = vmatprep.subr.mxu0 0.0
    %2466 = vmatpush1.msra.mxu0 0.0
    %2467 = vmatprep.subr.mxu0 0.0
    %2468 = vmatpush1.msra.mxu0 0.0
    %2469 = vmatprep.subr.mxu0 0.0
    %2470 = vmatpush1.msra.mxu0 0.0
    %2471 = vmatprep.subr.mxu0 0.0
    %2472 = vmatpush1.msra.mxu0 0.0
    %2473 = vmatprep.mubr.f32.mxu0 0.0
    %2474 = vmatmul.mubr.f32.gmra.mrb[0].mxu0 %v2407
    %v2475 = vpop.f32.mrb[0].mxu0
    %v2476 = vadd.f32 0.0, %v2475
    %v2477 = vpop.f32.mrb[0].mxu0
    %2478 = vdwg.mxu0
    %v2479 = vadd.f32 %v2406, %v2476
    %v2480 = vxor.u32 %v2479, 2147483648
    %v2481 = vmul.f32 %v2480, 1.442695
    %v2482 = vpow.pop %v2481
    %v2483 = vadd.f32 %v2482, 1.0
    %v2484 = vrcp.pop %v2483
    %v2485 = vmul.f32 1.0, %v2484
    %v2486 = vtanh.pop %v2479
    %v2487 = vmul.f32 %v2485, %v2394
    %2489 = vrot.lane.b32.xlu0 %v2486, 64
    %v2490 = vpop.permute.xlu0 %2489
    %v2492 = vmul.f32 %v2485, %v2490
    %2494 = vrot.lane.b32.xlu0 %v2492, 32
    %v2495 = vpop.permute.xlu0 %2494
    %v2497 = vadd.f32 %v2487, %v2495
    %v2498 = vtanh.pop %v2497
    %2500 = vrot.lane.b32.xlu0 %v2498, 64
    %v2501 = vpop.permute.xlu0 %2500
    %v2503 = vmul.f32 %v2485, %v2501
    %2505 = vrot.lane.b32.xlu0 %v2503, 32
    %v2506 = vpop.permute.xlu0 %2505
    %2508 = vst.msk [vmem:[#allocation3 + $0x10] sm:$0x3] %vm1094, %v2506
    %v2509 = vld [vmem:[#allocation3] sm:$0xff]
    %v2510 = vld [vmem:[#allocation3 + $0x8] sm:$0xff]
    %v2511 = vld [vmem:[#allocation3 + $0x10] sm:$0x3]
    %v2512 = vld [vmem:[%s17] sm:$0x1]
    %v2513 = vld [vmem:[%s18] sm:$0x1]
    %v2514 = vsel %vm97, %v2509, 0.0
    %2515 = vadd.xlane.f32.xlu0 %v2514
    %v2516 = vpop.xlane.xlu0 %2515
    %v2517 = vsel %vm97, %v2510, 0.0
    %2518 = vadd.xlane.f32.xlu0 %v2517
    %v2519 = vpop.xlane.xlu0 %2518
    %v2520 = vsel %vm1094, %v2511, 0.0
    %2521 = vadd.xlane.f32.xlu0 %v2520
    %v2522 = vpop.xlane.xlu0 %2521
    %v2523 = vmul.f32 %v2516, %v1098
    %v2524 = vmul.f32 %v2519, %v1098
    %v2525 = vmul.f32 %v2522, %v1098
    %v2526 = vsub.f32 %v2509, %v2523
    %v2527 = vsub.f32 %v2510, %v2524
    %v2528 = vsub.f32 %v2511, %v2525
    %v2529 = vmul.f32 %v2526, %v2526
    %v2530 = vmul.f32 %v2527, %v2527
    %v2531 = vmul.f32 %v2528, %v2528
    %v2532 = vsel %vm97, %v2529, 0.0
    %2533 = vadd.xlane.f32.xlu0 %v2532
    %v2534 = vpop.xlane.xlu0 %2533
    %v2535 = vsel %vm97, %v2530, 0.0
    %2536 = vadd.xlane.f32.xlu0 %v2535
    %v2537 = vpop.xlane.xlu0 %2536
    %v2538 = vsel %vm1094, %v2531, 0.0
    %2539 = vadd.xlane.f32.xlu0 %v2538
    %v2540 = vpop.xlane.xlu0 %2539
    %v2541 = vmul.f32 %v2534, %v1098
    %v2542 = vmul.f32 %v2537, %v1098
    %v2543 = vmul.f32 %v2540, %v1098
    %v2544 = vadd.f32 %v2541, 1e-05
    %v2545 = vadd.f32 %v2542, 1e-05
    %v2546 = vadd.f32 %v2543, 1e-05
    %v2547 = vrsqrt.pop %v2544
    %v2548 = vrsqrt.pop %v2545
    %v2549 = vrsqrt.pop %v2546
    %v2550 = vmul.f32 %v2526, %v2547
    %v2551 = vmul.f32 %v2527, %v2548
    %v2552 = vmul.f32 %v2528, %v2549
    %v2554 = vlaneseq
    %v2555 = vshrl.u32 %v2554, 7
    %v2556 = vsub.s32 0, %v2555
    %v2557 = vrot.slane %v2512, %v2556
    %v2559 = vmul.f32 %v2550, %v2557
    %v2560 = vmul.f32 %v2551, %v2557
    %v2561 = vmul.f32 %v2552, %v2557
    %v2563 = vlaneseq
    %v2564 = vshrl.u32 %v2563, 7
    %v2565 = vsub.s32 0, %v2564
    %v2566 = vrot.slane %v2513, %v2565
    %v2568 = vadd.f32 %v2559, %v2566
    %v2569 = vadd.f32 %v2560, %v2566
    %v2570 = vadd.f32 %v2561, %v2566
    %v2571 = vmax.f32 %v2568, 0.0
    %v2572 = vmax.f32 %v2569, 0.0
    %v2573 = vmax.f32 %v2570, 0.0
    %v2574 = vld [vmem:[%s19] sm:$0xff]
    %v2575 = vld [vmem:[%s19 + $0x8] sm:$0xff]
    %v2576 = vld [vmem:[%s19 + $0x10] sm:$0xff]
    %v2577 = vld [vmem:[%s19 + $0x18] sm:$0xff]
    %v2578 = vld [vmem:[%s20] sm:$0x1]
    %v2580 = vlaneseq
    %v2581 = vshrl.u32 %v2580, 7
    %v2582 = vsub.s32 0, %v2581
    %v2583 = vrot.slane %v2578, %v2582
    %v2586 = vsel %vm97, %v2571, 0
    %v2589 = vsel %vm97, %v2572, 0
    %v2592 = vsel %vm97, %v2573, 0
    %2594 = vmatprep.subr.mxu0 0.0
    %2595 = vmatpush1.msra.mxu0 %v2574
    %2596 = vmatprep.subr.mxu0 0.0
    %2597 = vmatpush1.msra.mxu0 %v2575
    %2598 = vmatprep.subr.mxu0 0.0
    %2599 = vmatpush1.msra.mxu0 %v2576
    %2600 = vmatprep.subr.mxu0 0.0
    %2601 = vmatpush1.msra.mxu0 %v2577
    %2602 = vmatprep.subr.mxu0 0.0
    %2603 = vmatpush1.msra.mxu0 0.0
    %2604 = vmatprep.subr.mxu0 0.0
    %2605 = vmatpush1.msra.mxu0 0.0
    %2606 = vmatprep.subr.mxu0 0.0
    %2607 = vmatpush1.msra.mxu0 0.0
    %2608 = vmatprep.subr.mxu0 0.0
    %2609 = vmatpush1.msra.mxu0 0.0
    %2610 = vmatprep.subr.mxu0 0.0
    %2611 = vmatpush1.msra.mxu0 0.0
    %2612 = vmatprep.subr.mxu0 0.0
    %2613 = vmatpush1.msra.mxu0 0.0
    %2614 = vmatprep.subr.mxu0 0.0
    %2615 = vmatpush1.msra.mxu0 0.0
    %2616 = vmatprep.subr.mxu0 0.0
    %2617 = vmatpush1.msra.mxu0 0.0
    %2618 = vmatprep.subr.mxu0 0.0
    %2619 = vmatpush1.msra.mxu0 0.0
    %2620 = vmatprep.subr.mxu0 0.0
    %2621 = vmatpush1.msra.mxu0 0.0
    %2622 = vmatprep.subr.mxu0 0.0
    %2623 = vmatpush1.msra.mxu0 0.0
    %2624 = vmatprep.subr.mxu0 0.0
    %2625 = vmatpush1.msra.mxu0 0.0
    %2626 = vmatprep.subr.mxu0 0.0
    %2627 = vmatpush1.msra.mxu0 0.0
    %2628 = vmatprep.subr.mxu0 0.0
    %2629 = vmatpush1.msra.mxu0 0.0
    %2630 = vmatprep.subr.mxu0 0.0
    %2631 = vmatpush1.msra.mxu0 0.0
    %2632 = vmatprep.subr.mxu0 0.0
    %2633 = vmatpush1.msra.mxu0 0.0
    %2634 = vmatprep.subr.mxu0 0.0
    %2635 = vmatpush1.msra.mxu0 0.0
    %2636 = vmatprep.subr.mxu0 0.0
    %2637 = vmatpush1.msra.mxu0 0.0
    %2638 = vmatprep.subr.mxu0 0.0
    %2639 = vmatpush1.msra.mxu0 0.0
    %2640 = vmatprep.subr.mxu0 0.0
    %2641 = vmatpush1.msra.mxu0 0.0
    %2642 = vmatprep.subr.mxu0 0.0
    %2643 = vmatpush1.msra.mxu0 0.0
    %2644 = vmatprep.subr.mxu0 0.0
    %2645 = vmatpush1.msra.mxu0 0.0
    %2646 = vmatprep.subr.mxu0 0.0
    %2647 = vmatpush1.msra.mxu0 0.0
    %2648 = vmatprep.subr.mxu0 0.0
    %2649 = vmatpush1.msra.mxu0 0.0
    %2650 = vmatprep.subr.mxu0 0.0
    %2651 = vmatpush1.msra.mxu0 0.0
    %2652 = vmatprep.subr.mxu0 0.0
    %2653 = vmatpush1.msra.mxu0 0.0
    %2654 = vmatprep.subr.mxu0 0.0
    %2655 = vmatpush1.msra.mxu0 0.0
    %2656 = vmatprep.subr.mxu0 0.0
    %2657 = vmatpush1.msra.mxu0 0.0
    %2658 = vmatprep.mubr.f32.mxu0 0.0
    %2659 = vmatmul.mubr.f32.gmra.mrb[0].mxu0 %v2586
    %v2660 = vpop.f32.mrb[0].mxu0
    %v2661 = vadd.f32 %v2583, %v2660
    %v2662 = vpop.f32.mrb[0].mxu0
    %2663 = vmatprep.mubr.f32.mxu0 0.0
    %2664 = vmatmul.mubr.f32.gmra.mrb[0].mxu0 %v2589
    %v2665 = vpop.f32.mrb[0].mxu0
    %v2666 = vadd.f32 %v2583, %v2665
    %v2667 = vpop.f32.mrb[0].mxu0
    %2668 = vmatprep.mubr.f32.mxu0 0.0
    %2669 = vmatmul.mubr.f32.gmra.mrb[0].mxu0 %v2592
    %v2670 = vpop.f32.mrb[0].mxu0
    %v2671 = vadd.f32 %v2583, %v2670
    %v2672 = vpop.f32.mrb[0].mxu0
    %2673 = vdwg.mxu0
    %2674 = vmax.xlane.f32.xlu0 %v2661
    %v2675 = vpop.xlane.xlu0 %2674
    %2676 = vmax.xlane.f32.xlu0 %v2666
    %v2677 = vpop.xlane.xlu0 %2676
    %vm2678 = vcmask 1041408
    %v2679 = vsel %vm2678, %v2671, -inf
    %2680 = vmax.xlane.f32.xlu0 %v2679
    %v2681 = vpop.xlane.xlu0 %2680
    %v2682 = vsub.f32 %v2661, %v2675
    %v2683 = vsub.f32 %v2666, %v2677
    %v2684 = vsub.f32 %v2671, %v2681
    %v2685 = vmul.f32 %v2682, 1.442695
    %v2686 = vpow.pop %v2685
    %v2687 = vmul.f32 %v2683, 1.442695
    %v2688 = vpow.pop %v2687
    %v2689 = vmul.f32 %v2684, 1.442695
    %v2690 = vpow.pop %v2689
    %2691 = vadd.xlane.f32.xlu0 %v2686
    %v2692 = vpop.xlane.xlu0 %2691
    %2693 = vadd.xlane.f32.xlu0 %v2688
    %v2694 = vpop.xlane.xlu0 %2693
    %v2695 = vsel %vm2678, %v2690, 0.0
    %2696 = vadd.xlane.f32.xlu0 %v2695
    %v2697 = vpop.xlane.xlu0 %2696
    %v2698 = vlog2.pop %v2692
    %v2699 = vmul.f32 %v2698, 0.6931472
    %v2700 = vlog2.pop %v2694
    %v2701 = vmul.f32 %v2700, 0.6931472
    %v2702 = vlog2.pop %v2697
    %v2703 = vmul.f32 %v2702, 0.6931472
    %v2704 = vsub.f32 %v2682, %v2699
    %v2705 = vsub.f32 %v2683, %v2701
    %v2706 = vsub.f32 %v2684, %v2703
    %2707 = vst [vmem:[%s21] sm:$0xff] %v2704
    %2708 = vst [vmem:[%s21 + $0x8] sm:$0xff] %v2705
    %2709 = vst [vmem:[%s21 + $0x10] sm:$0x3] %v2706
    // Predicated region
    $region90: #{model_forward.1} parent=1 // pred_check
      _
    $region91: #{model_forward.1} parent=1 // pred_check_branch
      %2711 = sbr.rel (0) target = $region93
    $region92: #{model_forward.1} parent=1 // pred_region
      _
    $region93: #{model_forward.1} parent=1 // pred_fallthru
      _
    // Predicated region
    $region94: #{model_forward.1} parent=1 // pred_check
      _
    $region95: #{model_forward.1} parent=1 // pred_check_branch
      %2713 = sbr.rel (0) target = $region97
    $region96: #{model_forward.1} parent=1 // pred_region
      _
    $region97: #{model_forward.1} parent=1 // pred_fallthru
      _
    %2714 = vsyncpa [#allocation5], 1

</llo_original>
